<compile_context>
chip_gen: v5e
topology: v5e:2x2
jax: 0.10.0
libtpu: 0.0.40
codegen_flags: <defaults>
</compile_context>

<pallas_src>
import math
from functools import partial

import jax
import jax.numpy as jnp
from jax.experimental import pallas as pl
from jax.experimental.pallas import tpu as pltpu


# ------------------------ shared math helpers ------------------------------
# These operate on traced values, so the same code is used inside the Pallas
# kernel and in the pure-JAX reference (only the approx reciprocal differs).

def _layer_norm(y2d, g, b, eps=1e-5):
    """LayerNorm over the last dim; callers pass (residual + x) pre-fused."""
    mu = jnp.mean(y2d, axis=-1, keepdims=True)
    var = jnp.mean((y2d - mu) ** 2, axis=-1, keepdims=True)
    return (y2d - mu) * jax.lax.rsqrt(var + eps) * g + b


def _feed_forward(y2d, w1, b1, w2, b2):
    hdn = jnp.dot(y2d, w1, preferred_element_type=jnp.float32) + b1
    hdn = jnp.maximum(hdn, 0.0)
    return jnp.dot(hdn, w2, preferred_element_type=jnp.float32) + b2


def _mha(xq2d, xkv2d, is_self, B, Tq, Tk, heads, wqkv, bqkv, wo, bo, bias,
         use_approx_recip=True):
    """Multi-head attention.

    xq2d: (B*Tq, E), xkv2d: (B*Tk, E); wqkv: (E, 3E) with columns [q | k | v];
    bias: (B, 1, Tk) additive key mask (0 or -1e9), broadcast over queries.
    Heads are static lane slices; attention is a batched einsum over B.
    """
    E = wo.shape[0]
    Dh = E // heads
    scale = 1.0 / math.sqrt(Dh)

    if is_self:
        qkv = jnp.dot(xq2d, wqkv, preferred_element_type=jnp.float32) + bqkv
        q2d = qkv[:, 0:E]            # (B*Tq, E)
        kv2d = qkv[:, E:3 * E]       # (B*Tk, 2E) = [k | v]
    else:
        q2d = (jnp.dot(xq2d, wqkv[:, 0:E], preferred_element_type=jnp.float32)
               + bqkv[:, 0:E])
        kv2d = (jnp.dot(xkv2d, wqkv[:, E:3 * E],
                        preferred_element_type=jnp.float32) + bqkv[:, E:3 * E])

    acc = None
    for hh in range(heads):
        qh = q2d[:, hh * Dh:(hh + 1) * Dh].reshape(B, Tq, Dh)
        kh = kv2d[:, hh * Dh:(hh + 1) * Dh].reshape(B, Tk, Dh)
        vh = kv2d[:, E + hh * Dh:E + (hh + 1) * Dh].reshape(B, Tk, Dh)

        s = jnp.einsum('bqd,bkd->bqk', qh, kh,
                       preferred_element_type=jnp.float32) * scale
        s = s + bias                                    # broadcast (B,1,Tk)
        s = s - jnp.max(s, axis=-1, keepdims=True)
        p = jnp.exp(s)
        denom = jnp.sum(p, axis=-1, keepdims=True)
        if use_approx_recip:
            p = p * pl.reciprocal(denom, approx=True)   # EUP slot, ~free
        else:
            p = p / denom
        oh = jnp.einsum('bqk,bkd->bqd', p, vh,
                        preferred_element_type=jnp.float32)

        # Fold the output projection per head: sum_h o_h @ wo[h*Dh:(h+1)*Dh]
        contrib = jnp.dot(oh.reshape(B * Tq, Dh),
                          wo[hh * Dh:(hh + 1) * Dh, :],
                          preferred_element_type=jnp.float32)
        acc = contrib if acc is None else acc + contrib
    return acc + bo


# ------------------------- the fused Pallas kernel --------------------------

def _transformer_fwd_kernel(heads,
                            x_ref, h_ref, mask_ref,
                            tok_w, tok_b,
                            e_wqkv, e_bqkv, e_wo, e_bo, e_ln1g, e_ln1b,
                            e_w1, e_b1, e_w2, e_b2, e_ln2g, e_ln2b,
                            ds_wqkv, ds_bqkv, ds_wo, ds_bo, d_ln1g, d_ln1b,
                            dc_wqkv, dc_bqkv, dc_wo, dc_bo, d_ln2g, d_ln2b,
                            d_w1, d_b1, d_w2, d_b2, d_ln3g, d_ln3b,
                            out_w, out_b,
                            out_ref, tok_ref):
    B, Tx, _ = x_ref.shape
    Th = h_ref.shape[1]
    E = h_ref.shape[2]
    T = Tx + Th

    # ---- token embedding + concat(h): write straight into the tokens output.
    # Per-batch loop keeps every reshape/store aligned to the (8,128) tiling
    # (Tx=6 is not a sublane multiple, so we never merge B*Tx).
    for b_i in range(B):
        xb = x_ref[b_i]                                        # (Tx, Din)
        tok_ref[b_i, 0:Tx, :] = (jnp.dot(xb, tok_w[...],
                                         preferred_element_type=jnp.float32)
                                 + tok_b[...])
        tok_ref[b_i, Tx:T, :] = h_ref[b_i]                     # (Th, E)

    tokens2d = tok_ref[...].reshape(B * T, E)                  # aligned (T=8)

    # additive key-padding mask, broadcast inside the kernel
    bias = (1.0 - mask_ref[...]) * (-1e9)                      # (B, 1, T)

    # -------------------------------- encoder --------------------------------
    att = _mha(tokens2d, tokens2d, True, B, T, T, heads,
               e_wqkv[...], e_bqkv[...], e_wo[...], e_bo[...], bias)
    y = _layer_norm(att + tokens2d, e_ln1g[...], e_ln1b[...])
    f = _feed_forward(y, e_w1[...], e_b1[...], e_w2[...], e_b2[...])
    enc2d = _layer_norm(f + y, e_ln2g[...], e_ln2b[...])

    # -------------------------------- decoder --------------------------------
    sa = _mha(tokens2d, tokens2d, True, B, T, T, heads,
              ds_wqkv[...], ds_bqkv[...], ds_wo[...], ds_bo[...], bias)
    y = _layer_norm(sa + tokens2d, d_ln1g[...], d_ln1b[...])
    ca = _mha(y, enc2d, False, B, T, T, heads,
              dc_wqkv[...], dc_bqkv[...], dc_wo[...], dc_bo[...], bias)
    y2 = _layer_norm(ca + y, d_ln2g[...], d_ln2b[...])
    f = _feed_forward(y2, d_w1[...], d_b1[...], d_w2[...], d_b2[...])
    y3 = _layer_norm(f + y2, d_ln3g[...], d_ln3b[...])

    # ---------------------------- output projection --------------------------
    out2d = jnp.dot(y3, out_w[...], preferred_element_type=jnp.float32) + out_b[...]
    out_ref[...] = out2d.reshape(out_ref.shape)


# --------------------------- wrapper / parameters ----------------------------

def _flatten_params(params):
    p = params
    e = p["encoder"]
    d = p["decoder"]
    return (
        p["tok_w"], p["tok_b"],
        e["attn"]["wqkv"], e["attn"]["bqkv"], e["attn"]["wo"], e["attn"]["bo"],
        e["ln1_g"], e["ln1_b"],
        e["ff_w1"], e["ff_b1"], e["ff_w2"], e["ff_b2"],
        e["ln2_g"], e["ln2_b"],
        d["self_attn"]["wqkv"], d["self_attn"]["bqkv"],
        d["self_attn"]["wo"], d["self_attn"]["bo"],
        d["ln1_g"], d["ln1_b"],
        d["cross_attn"]["wqkv"], d["cross_attn"]["bqkv"],
        d["cross_attn"]["wo"], d["cross_attn"]["bo"],
        d["ln2_g"], d["ln2_b"],
        d["ff_w1"], d["ff_b1"], d["ff_w2"], d["ff_b2"],
        d["ln3_g"], d["ln3_b"],
        p["out_w"], p["out_b"],
    )


def transformer_forward(params, args, x, h, mask):
    """Mirrors Transformer.forward (dummy=False path): returns (logits, tokens).

    Single fused pallas_call; every weight stays resident in VMEM (~0.2 MiB,
    far under the 32 MiB scoped default and v7x's 64 MiB physical VMEM).
    """
    B, Tx, _ = x.shape
    Th = h.shape[1]
    E = args["emb"]
    T = Tx + Th
    Dout = args["output_dim"]
    heads = args["heads"]

    mask_b = mask.astype(jnp.float32).reshape(B, 1, T)

    out, tokens = pl.pallas_call(
        partial(_transformer_fwd_kernel, heads),
        out_shape=(jax.ShapeDtypeStruct((B, T, Dout), jnp.float32),
                   jax.ShapeDtypeStruct((B, T, E), jnp.float32)),
        compiler_params=pltpu.CompilerParams(
            vmem_limit_bytes=32 * 1024 * 1024),
    )(x, h, mask_b, *_flatten_params(params))
    return out, tokens


def init_params(key, args, input_dim):
    E = args["emb"]
    FF = args["ff_hidden_mult"] * E
    keys = iter(jax.random.split(key, 64))

    def dense(din, dout):
        w = jax.random.normal(next(keys), (din, dout), jnp.float32) * 0.02
        return w, jnp.zeros((1, dout), jnp.float32)

    def attn_params():
        wqkv, bqkv = dense(E, 3 * E)           # fused QKV, columns [q | k | v]
        wo, bo = dense(E, E)
        return dict(wqkv=wqkv, bqkv=bqkv, wo=wo, bo=bo)

    def ln():
        return jnp.ones((1, E), jnp.float32), jnp.zeros((1, E), jnp.float32)

    tok_w, tok_b = dense(input_dim, E)
    qry_w, qry_b = dense(input_dim, E)   # query_embedding: unused when query=None
    out_w, out_b = dense(E, args["output_dim"])

    enc = {"attn": attn_params()}
    enc["ln1_g"], enc["ln1_b"] = ln()
    enc["ff_w1"], enc["ff_b1"] = dense(E, FF)
    enc["ff_w2"], enc["ff_b2"] = dense(FF, E)
    enc["ln2_g"], enc["ln2_b"] = ln()

    dec = {"self_attn": attn_params(), "cross_attn": attn_params()}
    dec["ln1_g"], dec["ln1_b"] = ln()
    dec["ln2_g"], dec["ln2_b"] = ln()
    dec["ff_w1"], dec["ff_b1"] = dense(E, FF)
    dec["ff_w2"], dec["ff_b2"] = dense(FF, E)
    dec["ln3_g"], dec["ln3_b"] = ln()

    return dict(tok_w=tok_w, tok_b=tok_b, qry_w=qry_w, qry_b=qry_b,
                out_w=out_w, out_b=out_b, encoder=enc, decoder=dec)


# --------------------------- pure-JAX reference ------------------------------

def _ref_forward(params, args, x, h, mask):
    B, Tx, Din = x.shape
    Th = h.shape[1]
    E = args["emb"]
    T = Tx + Th
    heads = args["heads"]
    p = params

    tok = jnp.dot(x.reshape(B * Tx, Din), p["tok_w"]) + p["tok_b"]
    tokens = jnp.concatenate([tok.reshape(B, Tx, E), h], axis=1)
    tok2d = tokens.reshape(B * T, E)
    bias = (1.0 - mask.astype(jnp.float32)).reshape(B, 1, T) * (-1e9)

    e = p["encoder"]
    att = _mha(tok2d, tok2d, True, B, T, T, heads, e["attn"]["wqkv"],
               e["attn"]["bqkv"], e["attn"]["wo"], e["attn"]["bo"], bias,
               use_approx_recip=False)
    y = _layer_norm(att + tok2d, e["ln1_g"], e["ln1_b"])
    f = _feed_forward(y, e["ff_w1"], e["ff_b1"], e["ff_w2"], e["ff_b2"])
    enc2d = _layer_norm(f + y, e["ln2_g"], e["ln2_b"])

    d = p["decoder"]
    sa = _mha(tok2d, tok2d, True, B, T, T, heads, d["self_attn"]["wqkv"],
              d["self_attn"]["bqkv"], d["self_attn"]["wo"], d["self_attn"]["bo"],
              bias, use_approx_recip=False)
    y = _layer_norm(sa + tok2d, d["ln1_g"], d["ln1_b"])
    ca = _mha(y, enc2d, False, B, T, T, heads, d["cross_attn"]["wqkv"],
              d["cross_attn"]["bqkv"], d["cross_attn"]["wo"],
              d["cross_attn"]["bo"], bias, use_approx_recip=False)
    y2 = _layer_norm(ca + y, d["ln2_g"], d["ln2_b"])
    f = _feed_forward(y2, d["ff_w1"], d["ff_b1"], d["ff_w2"], d["ff_b2"])
    y3 = _layer_norm(f + y2, d["ln3_g"], d["ln3_b"])

    out = (jnp.dot(y3, p["out_w"]) + p["out_b"]).reshape(B, T, args["output_dim"])
    return out, tokens


# ---------------------------------- main -------------------------------------

if __name__ == "__main__":
    args = dict(emb=32, heads=4, ff_hidden_mult=4, max_agents_len=7,
                output_dim=10)
    input_dim = 16
    B, Tx, Th = 2, 6, 2            # h carries 2 extra "hidden" tokens -> t = 8
    T = Tx + Th

    key = jax.random.PRNGKey(0)
    kp, kx, kh = jax.random.split(key, 3)
    params = init_params(kp, args, input_dim)

    x = jax.random.normal(kx, (B, Tx, input_dim), jnp.float32)
    h = jax.random.normal(kh, (B, Th, args["emb"]), jnp.float32)
    mask = jnp.ones((B, T), jnp.float32).at[1, -1].set(0.0)  # mask one key

    fwd = jax.jit(lambda p, xx, hh, mm: transformer_forward(p, args, xx, hh, mm))
    out, tokens = fwd(params, x, h, mask)
    jax.block_until_ready((out, tokens))

    ref_out, ref_tokens = _ref_forward(params, args, x, h, mask)

    assert out.shape == (B, T, args["output_dim"])
    assert tokens.shape == (B, T, args["emb"])
    assert bool(jnp.all(jnp.isfinite(out))) and bool(jnp.all(jnp.isfinite(tokens)))
    # Loose tolerances: the kernel uses the EUP approx reciprocal in softmax
    # and the XLA reference may use a different f32 matmul pass count.
    assert bool(jnp.allclose(tokens, ref_tokens, rtol=1e-2, atol=5e-3))
    assert bool(jnp.allclose(out, ref_out, rtol=3e-2, atol=3e-2))
    print("KERNEL_OK")
</pallas_src>

<mosaic_0001>
module attributes {stable_mosaic.version = 11 : i64} {
  func.func @_transformer_fwd_kernel(%arg0: memref<2x6x16xf32, #tpu.memory_space<vmem>>, %arg1: memref<2x2x32xf32, #tpu.memory_space<vmem>>, %arg2: memref<2x1x8xf32, #tpu.memory_space<vmem>>, %arg3: memref<16x32xf32, #tpu.memory_space<vmem>>, %arg4: memref<1x32xf32, #tpu.memory_space<vmem>>, %arg5: memref<32x96xf32, #tpu.memory_space<vmem>>, %arg6: memref<1x96xf32, #tpu.memory_space<vmem>>, %arg7: memref<32x32xf32, #tpu.memory_space<vmem>>, %arg8: memref<1x32xf32, #tpu.memory_space<vmem>>, %arg9: memref<1x32xf32, #tpu.memory_space<vmem>>, %arg10: memref<1x32xf32, #tpu.memory_space<vmem>>, %arg11: memref<32x128xf32, #tpu.memory_space<vmem>>, %arg12: memref<1x128xf32, #tpu.memory_space<vmem>>, %arg13: memref<128x32xf32, #tpu.memory_space<vmem>>, %arg14: memref<1x32xf32, #tpu.memory_space<vmem>>, %arg15: memref<1x32xf32, #tpu.memory_space<vmem>>, %arg16: memref<1x32xf32, #tpu.memory_space<vmem>>, %arg17: memref<32x96xf32, #tpu.memory_space<vmem>>, %arg18: memref<1x96xf32, #tpu.memory_space<vmem>>, %arg19: memref<32x32xf32, #tpu.memory_space<vmem>>, %arg20: memref<1x32xf32, #tpu.memory_space<vmem>>, %arg21: memref<1x32xf32, #tpu.memory_space<vmem>>, %arg22: memref<1x32xf32, #tpu.memory_space<vmem>>, %arg23: memref<32x96xf32, #tpu.memory_space<vmem>>, %arg24: memref<1x96xf32, #tpu.memory_space<vmem>>, %arg25: memref<32x32xf32, #tpu.memory_space<vmem>>, %arg26: memref<1x32xf32, #tpu.memory_space<vmem>>, %arg27: memref<1x32xf32, #tpu.memory_space<vmem>>, %arg28: memref<1x32xf32, #tpu.memory_space<vmem>>, %arg29: memref<32x128xf32, #tpu.memory_space<vmem>>, %arg30: memref<1x128xf32, #tpu.memory_space<vmem>>, %arg31: memref<128x32xf32, #tpu.memory_space<vmem>>, %arg32: memref<1x32xf32, #tpu.memory_space<vmem>>, %arg33: memref<1x32xf32, #tpu.memory_space<vmem>>, %arg34: memref<1x32xf32, #tpu.memory_space<vmem>>, %arg35: memref<32x10xf32, #tpu.memory_space<vmem>>, %arg36: memref<1x10xf32, #tpu.memory_space<vmem>>, %arg37: memref<2x8x10xf32, #tpu.memory_space<vmem>>, %arg38: memref<2x8x32xf32, #tpu.memory_space<vmem>>) attributes {dimension_semantics = [], scalar_prefetch = 0 : i64, scratch_operands = 0 : i64, tpu.core_type = #tpu.core_type<tc>} {
    %c0 = arith.constant 0 : index
    %c0_0 = arith.constant 0 : index
    %c0_1 = arith.constant 0 : index
    %0 = vector.load %arg0[%c0, %c0_0, %c0_1] : memref<2x6x16xf32, #tpu.memory_space<vmem>>, vector<1x6x16xf32>
    %1 = vector.shape_cast %0 : vector<1x6x16xf32> to vector<6x16xf32>
    %c0_2 = arith.constant 0 : index
    %c0_3 = arith.constant 0 : index
    %2 = vector.load %arg3[%c0_2, %c0_3] : memref<16x32xf32, #tpu.memory_space<vmem>>, vector<16x32xf32>
    %cst = arith.constant dense<0.000000e+00> : vector<6x32xf32>
    %3 = tpu.matmul %1, %2, %cst {dimension_numbers = #tpu.dot_dimension_numbers<[1], [0], [0], [1], [0, 0, 1, 1], [], []>} : vector<6x16xf32>, vector<16x32xf32>, vector<6x32xf32> -> vector<6x32xf32>
    %c0_4 = arith.constant 0 : index
    %c0_5 = arith.constant 0 : index
    %4 = vector.load %arg4[%c0_4, %c0_5] : memref<1x32xf32, #tpu.memory_space<vmem>>, vector<1x32xf32>
    %5 = vector.broadcast %4 : vector<1x32xf32> to vector<6x32xf32>
    %6 = arith.addf %3, %5 : vector<6x32xf32>
    %c0_6 = arith.constant 0 : index
    %c0_7 = arith.constant 0 : index
    %c0_8 = arith.constant 0 : index
    %7 = vector.load %arg38[%c0_6, %c0_7, %c0_8] : memref<2x8x32xf32, #tpu.memory_space<vmem>>, vector<1x6x32xf32>
    %8 = vector.shape_cast %7 : vector<1x6x32xf32> to vector<6x32xf32>
    %9 = vector.shape_cast %6 : vector<6x32xf32> to vector<1x6x32xf32>
    tpu.vector_store %arg38[%c0_6, %c0_7, %c0_8], %9 {strides = array<i32>} : memref<2x8x32xf32, #tpu.memory_space<vmem>>, vector<1x6x32xf32>,
    %c0_9 = arith.constant 0 : index
    %c0_10 = arith.constant 0 : index
    %c0_11 = arith.constant 0 : index
    %10 = vector.load %arg1[%c0_9, %c0_10, %c0_11] : memref<2x2x32xf32, #tpu.memory_space<vmem>>, vector<1x2x32xf32>
    %11 = vector.shape_cast %10 : vector<1x2x32xf32> to vector<2x32xf32>
    %c0_12 = arith.constant 0 : index
    %c6 = arith.constant 6 : index
    %c0_13 = arith.constant 0 : index
    %12 = vector.load %arg38[%c0_12, %c6, %c0_13] : memref<2x8x32xf32, #tpu.memory_space<vmem>>, vector<1x2x32xf32>
    %13 = vector.shape_cast %12 : vector<1x2x32xf32> to vector<2x32xf32>
    %14 = vector.shape_cast %11 : vector<2x32xf32> to vector<1x2x32xf32>
    tpu.vector_store %arg38[%c0_12, %c6, %c0_13], %14 {strides = array<i32>} : memref<2x8x32xf32, #tpu.memory_space<vmem>>, vector<1x2x32xf32>,
    %c1 = arith.constant 1 : index
    %c0_14 = arith.constant 0 : index
    %c0_15 = arith.constant 0 : index
    %15 = vector.load %arg0[%c1, %c0_14, %c0_15] : memref<2x6x16xf32, #tpu.memory_space<vmem>>, vector<1x6x16xf32>
    %16 = vector.shape_cast %15 : vector<1x6x16xf32> to vector<6x16xf32>
    %c0_16 = arith.constant 0 : index
    %c0_17 = arith.constant 0 : index
    %17 = vector.load %arg3[%c0_16, %c0_17] : memref<16x32xf32, #tpu.memory_space<vmem>>, vector<16x32xf32>
    %cst_18 = arith.constant dense<0.000000e+00> : vector<6x32xf32>
    %18 = tpu.matmul %16, %17, %cst_18 {dimension_numbers = #tpu.dot_dimension_numbers<[1], [0], [0], [1], [0, 0, 1, 1], [], []>} : vector<6x16xf32>, vector<16x32xf32>, vector<6x32xf32> -> vector<6x32xf32>
    %c0_19 = arith.constant 0 : index
    %c0_20 = arith.constant 0 : index
    %19 = vector.load %arg4[%c0_19, %c0_20] : memref<1x32xf32, #tpu.memory_space<vmem>>, vector<1x32xf32>
    %20 = vector.broadcast %19 : vector<1x32xf32> to vector<6x32xf32>
    %21 = arith.addf %18, %20 : vector<6x32xf32>
    %c1_21 = arith.constant 1 : index
    %c0_22 = arith.constant 0 : index
    %c0_23 = arith.constant 0 : index
    %22 = vector.load %arg38[%c1_21, %c0_22, %c0_23] : memref<2x8x32xf32, #tpu.memory_space<vmem>>, vector<1x6x32xf32>
    %23 = vector.shape_cast %22 : vector<1x6x32xf32> to vector<6x32xf32>
    %24 = vector.shape_cast %21 : vector<6x32xf32> to vector<1x6x32xf32>
    tpu.vector_store %arg38[%c1_21, %c0_22, %c0_23], %24 {strides = array<i32>} : memref<2x8x32xf32, #tpu.memory_space<vmem>>, vector<1x6x32xf32>,
    %c1_24 = arith.constant 1 : index
    %c0_25 = arith.constant 0 : index
    %c0_26 = arith.constant 0 : index
    %25 = vector.load %arg1[%c1_24, %c0_25, %c0_26] : memref<2x2x32xf32, #tpu.memory_space<vmem>>, vector<1x2x32xf32>
    %26 = vector.shape_cast %25 : vector<1x2x32xf32> to vector<2x32xf32>
    %c1_27 = arith.constant 1 : index
    %c6_28 = arith.constant 6 : index
    %c0_29 = arith.constant 0 : index
    %27 = vector.load %arg38[%c1_27, %c6_28, %c0_29] : memref<2x8x32xf32, #tpu.memory_space<vmem>>, vector<1x2x32xf32>
    %28 = vector.shape_cast %27 : vector<1x2x32xf32> to vector<2x32xf32>
    %29 = vector.shape_cast %26 : vector<2x32xf32> to vector<1x2x32xf32>
    tpu.vector_store %arg38[%c1_27, %c6_28, %c0_29], %29 {strides = array<i32>} : memref<2x8x32xf32, #tpu.memory_space<vmem>>, vector<1x2x32xf32>,
    %c0_30 = arith.constant 0 : index
    %c0_31 = arith.constant 0 : index
    %c0_32 = arith.constant 0 : index
    %30 = vector.load %arg38[%c0_30, %c0_31, %c0_32] : memref<2x8x32xf32, #tpu.memory_space<vmem>>, vector<2x8x32xf32>
    %31 = vector.shape_cast %30 : vector<2x8x32xf32> to vector<16x32xf32>
    %c0_33 = arith.constant 0 : index
    %c0_34 = arith.constant 0 : index
    %c0_35 = arith.constant 0 : index
    %32 = vector.load %arg2[%c0_33, %c0_34, %c0_35] : memref<2x1x8xf32, #tpu.memory_space<vmem>>, vector<2x1x8xf32>
    %cst_36 = arith.constant 1.000000e+00 : f32
    %33 = vector.broadcast %cst_36 : f32 to vector<2x1x8xf32>
    %34 = arith.subf %33, %32 : vector<2x1x8xf32>
    %cst_37 = arith.constant -1.000000e+09 : f32
    %35 = vector.broadcast %cst_37 : f32 to vector<2x1x8xf32>
    %36 = arith.mulf %34, %35 : vector<2x1x8xf32>
    %c0_38 = arith.constant 0 : index
    %c0_39 = arith.constant 0 : index
    %37 = vector.load %arg5[%c0_38, %c0_39] : memref<32x96xf32, #tpu.memory_space<vmem>>, vector<32x96xf32>
    %c0_40 = arith.constant 0 : index
    %c0_41 = arith.constant 0 : index
    %38 = vector.load %arg6[%c0_40, %c0_41] : memref<1x96xf32, #tpu.memory_space<vmem>>, vector<1x96xf32>
    %c0_42 = arith.constant 0 : index
    %c0_43 = arith.constant 0 : index
    %39 = vector.load %arg7[%c0_42, %c0_43] : memref<32x32xf32, #tpu.memory_space<vmem>>, vector<32x32xf32>
    %c0_44 = arith.constant 0 : index
    %c0_45 = arith.constant 0 : index
    %40 = vector.load %arg8[%c0_44, %c0_45] : memref<1x32xf32, #tpu.memory_space<vmem>>, vector<1x32xf32>
    %cst_46 = arith.constant dense<0.000000e+00> : vector<16x96xf32>
    %41 = tpu.matmul %31, %37, %cst_46 {dimension_numbers = #tpu.dot_dimension_numbers<[1], [0], [0], [1], [0, 0, 1, 1], [], []>} : vector<16x32xf32>, vector<32x96xf32>, vector<16x96xf32> -> vector<16x96xf32>
    %42 = vector.broadcast %38 : vector<1x96xf32> to vector<16x96xf32>
    %43 = arith.addf %41, %42 : vector<16x96xf32>
    %44 = vector.extract_strided_slice %43 {offsets = [0, 0], sizes = [16, 32], strides = [1, 1]} : vector<16x96xf32> to vector<16x32xf32>
    %45 = vector.extract_strided_slice %43 {offsets = [0, 32], sizes = [16, 64], strides = [1, 1]} : vector<16x96xf32> to vector<16x64xf32>
    %46 = vector.extract_strided_slice %44 {offsets = [0, 0], sizes = [16, 8], strides = [1, 1]} : vector<16x32xf32> to vector<16x8xf32>
    %47 = vector.shape_cast %46 : vector<16x8xf32> to vector<2x8x8xf32>
    %48 = vector.extract_strided_slice %45 {offsets = [0, 0], sizes = [16, 8], strides = [1, 1]} : vector<16x64xf32> to vector<16x8xf32>
    %49 = vector.shape_cast %48 : vector<16x8xf32> to vector<2x8x8xf32>
    %50 = vector.extract_strided_slice %45 {offsets = [0, 32], sizes = [16, 8], strides = [1, 1]} : vector<16x64xf32> to vector<16x8xf32>
    %51 = vector.shape_cast %50 : vector<16x8xf32> to vector<2x8x8xf32>
    "tpu.trace_start"() <{level = 10 : i32, message = "bqd,bkd->bqk"}> : () -> ()
    %cst_47 = arith.constant dense<0.000000e+00> : vector<2x8x8xf32>
    %52 = tpu.matmul %47, %49, %cst_47 {dimension_numbers = #tpu.dot_dimension_numbers<[2], [2], [1], [1], [0, 0, 0, 1, 1, 1], [0], [0]>} : vector<2x8x8xf32>, vector<2x8x8xf32>, vector<2x8x8xf32> -> vector<2x8x8xf32>
    "tpu.trace_stop"() : () -> ()
    %cst_48 = arith.constant 0.353553385 : f32
    %53 = vector.broadcast %cst_48 : f32 to vector<2x8x8xf32>
    %54 = arith.mulf %52, %53 : vector<2x8x8xf32>
    %55 = vector.broadcast %36 : vector<2x1x8xf32> to vector<2x8x8xf32>
    %56 = arith.addf %54, %55 : vector<2x8x8xf32>
    %cst_49 = arith.constant dense<0xFF800000> : vector<2x8xf32>
    %57 = vector.multi_reduction <maximumf>, %56, %cst_49 [2] : vector<2x8x8xf32> to vector<2x8xf32>
    %58 = vector.shape_cast %57 : vector<2x8xf32> to vector<2x8x1xf32>
    %59 = vector.broadcast %58 : vector<2x8x1xf32> to vector<2x8x8xf32>
    %60 = arith.subf %56, %59 : vector<2x8x8xf32>
    %61 = math.exp %60 : vector<2x8x8xf32>
    %cst_50 = arith.constant dense<0.000000e+00> : vector<2x8xf32>
    %62 = vector.multi_reduction <add>, %61, %cst_50 [2] : vector<2x8x8xf32> to vector<2x8xf32>
    %63 = vector.shape_cast %62 : vector<2x8xf32> to vector<2x8x1xf32>
    %64 = tpu.reciprocal %63 {approx = true} : vector<2x8x1xf32> -> vector<2x8x1xf32>
    %65 = vector.broadcast %64 : vector<2x8x1xf32> to vector<2x8x8xf32>
    %66 = arith.mulf %61, %65 : vector<2x8x8xf32>
    "tpu.trace_start"() <{level = 10 : i32, message = "bqk,bkd->bqd"}> : () -> ()
    %cst_51 = arith.constant dense<0.000000e+00> : vector<2x8x8xf32>
    %67 = tpu.matmul %66, %51, %cst_51 {dimension_numbers = #tpu.dot_dimension_numbers<[2], [1], [1], [2], [0, 0, 0, 1, 1, 2], [0], [0]>} : vector<2x8x8xf32>, vector<2x8x8xf32>, vector<2x8x8xf32> -> vector<2x8x8xf32>
    "tpu.trace_stop"() : () -> ()
    %68 = vector.shape_cast %67 : vector<2x8x8xf32> to vector<16x8xf32>
    %69 = vector.extract_strided_slice %39 {offsets = [0, 0], sizes = [8, 32], strides = [1, 1]} : vector<32x32xf32> to vector<8x32xf32>
    %cst_52 = arith.constant dense<0.000000e+00> : vector<16x32xf32>
    %70 = tpu.matmul %68, %69, %cst_52 {dimension_numbers = #tpu.dot_dimension_numbers<[1], [0], [0], [1], [0, 0, 1, 1], [], []>} : vector<16x8xf32>, vector<8x32xf32>, vector<16x32xf32> -> vector<16x32xf32>
    %71 = vector.extract_strided_slice %44 {offsets = [0, 8], sizes = [16, 8], strides = [1, 1]} : vector<16x32xf32> to vector<16x8xf32>
    %72 = vector.shape_cast %71 : vector<16x8xf32> to vector<2x8x8xf32>
    %73 = vector.extract_strided_slice %45 {offsets = [0, 8], sizes = [16, 8], strides = [1, 1]} : vector<16x64xf32> to vector<16x8xf32>
    %74 = vector.shape_cast %73 : vector<16x8xf32> to vector<2x8x8xf32>
    %75 = vector.extract_strided_slice %45 {offsets = [0, 40], sizes = [16, 8], strides = [1, 1]} : vector<16x64xf32> to vector<16x8xf32>
    %76 = vector.shape_cast %75 : vector<16x8xf32> to vector<2x8x8xf32>
    "tpu.trace_start"() <{level = 10 : i32, message = "bqd,bkd->bqk"}> : () -> ()
    %cst_53 = arith.constant dense<0.000000e+00> : vector<2x8x8xf32>
    %77 = tpu.matmul %72, %74, %cst_53 {dimension_numbers = #tpu.dot_dimension_numbers<[2], [2], [1], [1], [0, 0, 0, 1, 1, 1], [0], [0]>} : vector<2x8x8xf32>, vector<2x8x8xf32>, vector<2x8x8xf32> -> vector<2x8x8xf32>
    "tpu.trace_stop"() : () -> ()
    %cst_54 = arith.constant 0.353553385 : f32
    %78 = vector.broadcast %cst_54 : f32 to vector<2x8x8xf32>
    %79 = arith.mulf %77, %78 : vector<2x8x8xf32>
    %80 = vector.broadcast %36 : vector<2x1x8xf32> to vector<2x8x8xf32>
    %81 = arith.addf %79, %80 : vector<2x8x8xf32>
    %cst_55 = arith.constant dense<0xFF800000> : vector<2x8xf32>
    %82 = vector.multi_reduction <maximumf>, %81, %cst_55 [2] : vector<2x8x8xf32> to vector<2x8xf32>
    %83 = vector.shape_cast %82 : vector<2x8xf32> to vector<2x8x1xf32>
    %84 = vector.broadcast %83 : vector<2x8x1xf32> to vector<2x8x8xf32>
    %85 = arith.subf %81, %84 : vector<2x8x8xf32>
    %86 = math.exp %85 : vector<2x8x8xf32>
    %cst_56 = arith.constant dense<0.000000e+00> : vector<2x8xf32>
    %87 = vector.multi_reduction <add>, %86, %cst_56 [2] : vector<2x8x8xf32> to vector<2x8xf32>
    %88 = vector.shape_cast %87 : vector<2x8xf32> to vector<2x8x1xf32>
    %89 = tpu.reciprocal %88 {approx = true} : vector<2x8x1xf32> -> vector<2x8x1xf32>
    %90 = vector.broadcast %89 : vector<2x8x1xf32> to vector<2x8x8xf32>
    %91 = arith.mulf %86, %90 : vector<2x8x8xf32>
    "tpu.trace_start"() <{level = 10 : i32, message = "bqk,bkd->bqd"}> : () -> ()
    %cst_57 = arith.constant dense<0.000000e+00> : vector<2x8x8xf32>
    %92 = tpu.matmul %91, %76, %cst_57 {dimension_numbers = #tpu.dot_dimension_numbers<[2], [1], [1], [2], [0, 0, 0, 1, 1, 2], [0], [0]>} : vector<2x8x8xf32>, vector<2x8x8xf32>, vector<2x8x8xf32> -> vector<2x8x8xf32>
    "tpu.trace_stop"() : () -> ()
    %93 = vector.shape_cast %92 : vector<2x8x8xf32> to vector<16x8xf32>
    %94 = vector.extract_strided_slice %39 {offsets = [8, 0], sizes = [8, 32], strides = [1, 1]} : vector<32x32xf32> to vector<8x32xf32>
    %cst_58 = arith.constant dense<0.000000e+00> : vector<16x32xf32>
    %95 = tpu.matmul %93, %94, %cst_58 {dimension_numbers = #tpu.dot_dimension_numbers<[1], [0], [0], [1], [0, 0, 1, 1], [], []>} : vector<16x8xf32>, vector<8x32xf32>, vector<16x32xf32> -> vector<16x32xf32>
    %96 = arith.addf %70, %95 : vector<16x32xf32>
    %97 = vector.extract_strided_slice %44 {offsets = [0, 16], sizes = [16, 8], strides = [1, 1]} : vector<16x32xf32> to vector<16x8xf32>
    %98 = vector.shape_cast %97 : vector<16x8xf32> to vector<2x8x8xf32>
    %99 = vector.extract_strided_slice %45 {offsets = [0, 16], sizes = [16, 8], strides = [1, 1]} : vector<16x64xf32> to vector<16x8xf32>
    %100 = vector.shape_cast %99 : vector<16x8xf32> to vector<2x8x8xf32>
    %101 = vector.extract_strided_slice %45 {offsets = [0, 48], sizes = [16, 8], strides = [1, 1]} : vector<16x64xf32> to vector<16x8xf32>
    %102 = vector.shape_cast %101 : vector<16x8xf32> to vector<2x8x8xf32>
    "tpu.trace_start"() <{level = 10 : i32, message = "bqd,bkd->bqk"}> : () -> ()
    %cst_59 = arith.constant dense<0.000000e+00> : vector<2x8x8xf32>
    %103 = tpu.matmul %98, %100, %cst_59 {dimension_numbers = #tpu.dot_dimension_numbers<[2], [2], [1], [1], [0, 0, 0, 1, 1, 1], [0], [0]>} : vector<2x8x8xf32>, vector<2x8x8xf32>, vector<2x8x8xf32> -> vector<2x8x8xf32>
    "tpu.trace_stop"() : () -> ()
    %cst_60 = arith.constant 0.353553385 : f32
    %104 = vector.broadcast %cst_60 : f32 to vector<2x8x8xf32>
    %105 = arith.mulf %103, %104 : vector<2x8x8xf32>
    %106 = vector.broadcast %36 : vector<2x1x8xf32> to vector<2x8x8xf32>
    %107 = arith.addf %105, %106 : vector<2x8x8xf32>
    %cst_61 = arith.constant dense<0xFF800000> : vector<2x8xf32>
    %108 = vector.multi_reduction <maximumf>, %107, %cst_61 [2] : vector<2x8x8xf32> to vector<2x8xf32>
    %109 = vector.shape_cast %108 : vector<2x8xf32> to vector<2x8x1xf32>
    %110 = vector.broadcast %109 : vector<2x8x1xf32> to vector<2x8x8xf32>
    %111 = arith.subf %107, %110 : vector<2x8x8xf32>
    %112 = math.exp %111 : vector<2x8x8xf32>
    %cst_62 = arith.constant dense<0.000000e+00> : vector<2x8xf32>
    %113 = vector.multi_reduction <add>, %112, %cst_62 [2] : vector<2x8x8xf32> to vector<2x8xf32>
    %114 = vector.shape_cast %113 : vector<2x8xf32> to vector<2x8x1xf32>
    %115 = tpu.reciprocal %114 {approx = true} : vector<2x8x1xf32> -> vector<2x8x1xf32>
    %116 = vector.broadcast %115 : vector<2x8x1xf32> to vector<2x8x8xf32>
    %117 = arith.mulf %112, %116 : vector<2x8x8xf32>
    "tpu.trace_start"() <{level = 10 : i32, message = "bqk,bkd->bqd"}> : () -> ()
    %cst_63 = arith.constant dense<0.000000e+00> : vector<2x8x8xf32>
    %118 = tpu.matmul %117, %102, %cst_63 {dimension_numbers = #tpu.dot_dimension_numbers<[2], [1], [1], [2], [0, 0, 0, 1, 1, 2], [0], [0]>} : vector<2x8x8xf32>, vector<2x8x8xf32>, vector<2x8x8xf32> -> vector<2x8x8xf32>
    "tpu.trace_stop"() : () -> ()
    %119 = vector.shape_cast %118 : vector<2x8x8xf32> to vector<16x8xf32>
    %120 = vector.extract_strided_slice %39 {offsets = [16, 0], sizes = [8, 32], strides = [1, 1]} : vector<32x32xf32> to vector<8x32xf32>
    %cst_64 = arith.constant dense<0.000000e+00> : vector<16x32xf32>
    %121 = tpu.matmul %119, %120, %cst_64 {dimension_numbers = #tpu.dot_dimension_numbers<[1], [0], [0], [1], [0, 0, 1, 1], [], []>} : vector<16x8xf32>, vector<8x32xf32>, vector<16x32xf32> -> vector<16x32xf32>
    %122 = arith.addf %96, %121 : vector<16x32xf32>
    %123 = vector.extract_strided_slice %44 {offsets = [0, 24], sizes = [16, 8], strides = [1, 1]} : vector<16x32xf32> to vector<16x8xf32>
    %124 = vector.shape_cast %123 : vector<16x8xf32> to vector<2x8x8xf32>
    %125 = vector.extract_strided_slice %45 {offsets = [0, 24], sizes = [16, 8], strides = [1, 1]} : vector<16x64xf32> to vector<16x8xf32>
    %126 = vector.shape_cast %125 : vector<16x8xf32> to vector<2x8x8xf32>
    %127 = vector.extract_strided_slice %45 {offsets = [0, 56], sizes = [16, 8], strides = [1, 1]} : vector<16x64xf32> to vector<16x8xf32>
    %128 = vector.shape_cast %127 : vector<16x8xf32> to vector<2x8x8xf32>
    "tpu.trace_start"() <{level = 10 : i32, message = "bqd,bkd->bqk"}> : () -> ()
    %cst_65 = arith.constant dense<0.000000e+00> : vector<2x8x8xf32>
    %129 = tpu.matmul %124, %126, %cst_65 {dimension_numbers = #tpu.dot_dimension_numbers<[2], [2], [1], [1], [0, 0, 0, 1, 1, 1], [0], [0]>} : vector<2x8x8xf32>, vector<2x8x8xf32>, vector<2x8x8xf32> -> vector<2x8x8xf32>
    "tpu.trace_stop"() : () -> ()
    %cst_66 = arith.constant 0.353553385 : f32
    %130 = vector.broadcast %cst_66 : f32 to vector<2x8x8xf32>
    %131 = arith.mulf %129, %130 : vector<2x8x8xf32>
    %132 = vector.broadcast %36 : vector<2x1x8xf32> to vector<2x8x8xf32>
    %133 = arith.addf %131, %132 : vector<2x8x8xf32>
    %cst_67 = arith.constant dense<0xFF800000> : vector<2x8xf32>
    %134 = vector.multi_reduction <maximumf>, %133, %cst_67 [2] : vector<2x8x8xf32> to vector<2x8xf32>
    %135 = vector.shape_cast %134 : vector<2x8xf32> to vector<2x8x1xf32>
    %136 = vector.broadcast %135 : vector<2x8x1xf32> to vector<2x8x8xf32>
    %137 = arith.subf %133, %136 : vector<2x8x8xf32>
    %138 = math.exp %137 : vector<2x8x8xf32>
    %cst_68 = arith.constant dense<0.000000e+00> : vector<2x8xf32>
    %139 = vector.multi_reduction <add>, %138, %cst_68 [2] : vector<2x8x8xf32> to vector<2x8xf32>
    %140 = vector.shape_cast %139 : vector<2x8xf32> to vector<2x8x1xf32>
    %141 = tpu.reciprocal %140 {approx = true} : vector<2x8x1xf32> -> vector<2x8x1xf32>
    %142 = vector.broadcast %141 : vector<2x8x1xf32> to vector<2x8x8xf32>
    %143 = arith.mulf %138, %142 : vector<2x8x8xf32>
    "tpu.trace_start"() <{level = 10 : i32, message = "bqk,bkd->bqd"}> : () -> ()
    %cst_69 = arith.constant dense<0.000000e+00> : vector<2x8x8xf32>
    %144 = tpu.matmul %143, %128, %cst_69 {dimension_numbers = #tpu.dot_dimension_numbers<[2], [1], [1], [2], [0, 0, 0, 1, 1, 2], [0], [0]>} : vector<2x8x8xf32>, vector<2x8x8xf32>, vector<2x8x8xf32> -> vector<2x8x8xf32>
    "tpu.trace_stop"() : () -> ()
    %145 = vector.shape_cast %144 : vector<2x8x8xf32> to vector<16x8xf32>
    %146 = vector.extract_strided_slice %39 {offsets = [24, 0], sizes = [8, 32], strides = [1, 1]} : vector<32x32xf32> to vector<8x32xf32>
    %cst_70 = arith.constant dense<0.000000e+00> : vector<16x32xf32>
    %147 = tpu.matmul %145, %146, %cst_70 {dimension_numbers = #tpu.dot_dimension_numbers<[1], [0], [0], [1], [0, 0, 1, 1], [], []>} : vector<16x8xf32>, vector<8x32xf32>, vector<16x32xf32> -> vector<16x32xf32>
    %148 = arith.addf %122, %147 : vector<16x32xf32>
    %149 = vector.broadcast %40 : vector<1x32xf32> to vector<16x32xf32>
    %150 = arith.addf %148, %149 : vector<16x32xf32>
    %151 = arith.addf %150, %31 : vector<16x32xf32>
    %c0_71 = arith.constant 0 : index
    %c0_72 = arith.constant 0 : index
    %152 = vector.load %arg9[%c0_71, %c0_72] : memref<1x32xf32, #tpu.memory_space<vmem>>, vector<1x32xf32>
    %c0_73 = arith.constant 0 : index
    %c0_74 = arith.constant 0 : index
    %153 = vector.load %arg10[%c0_73, %c0_74] : memref<1x32xf32, #tpu.memory_space<vmem>>, vector<1x32xf32>
    %cst_75 = arith.constant dense<0.000000e+00> : vector<16xf32>
    %154 = vector.multi_reduction <add>, %151, %cst_75 [1] : vector<16x32xf32> to vector<16xf32>
    %155 = vector.shape_cast %154 : vector<16xf32> to vector<16x1xf32>
    %cst_76 = arith.constant 3.200000e+01 : f32
    %156 = vector.broadcast %cst_76 : f32 to vector<16x1xf32>
    %157 = arith.divf %155, %156 : vector<16x1xf32>
    %158 = vector.broadcast %157 : vector<16x1xf32> to vector<16x32xf32>
    %159 = arith.subf %151, %158 : vector<16x32xf32>
    %160 = arith.mulf %159, %159 : vector<16x32xf32>
    %cst_77 = arith.constant dense<0.000000e+00> : vector<16xf32>
    %161 = vector.multi_reduction <add>, %160, %cst_77 [1] : vector<16x32xf32> to vector<16xf32>
    %162 = vector.shape_cast %161 : vector<16xf32> to vector<16x1xf32>
    %cst_78 = arith.constant 3.200000e+01 : f32
    %163 = vector.broadcast %cst_78 : f32 to vector<16x1xf32>
    %164 = arith.divf %162, %163 : vector<16x1xf32>
    %165 = vector.broadcast %157 : vector<16x1xf32> to vector<16x32xf32>
    %166 = arith.subf %151, %165 : vector<16x32xf32>
    %cst_79 = arith.constant 9.99999974E-6 : f32
    %167 = vector.broadcast %cst_79 : f32 to vector<16x1xf32>
    %168 = arith.addf %164, %167 : vector<16x1xf32>
    %169 = math.rsqrt %168 : vector<16x1xf32>
    %170 = vector.broadcast %169 : vector<16x1xf32> to vector<16x32xf32>
    %171 = arith.mulf %166, %170 : vector<16x32xf32>
    %172 = vector.broadcast %152 : vector<1x32xf32> to vector<16x32xf32>
    %173 = arith.mulf %171, %172 : vector<16x32xf32>
    %174 = vector.broadcast %153 : vector<1x32xf32> to vector<16x32xf32>
    %175 = arith.addf %173, %174 : vector<16x32xf32>
    %c0_80 = arith.constant 0 : index
    %c0_81 = arith.constant 0 : index
    %176 = vector.load %arg11[%c0_80, %c0_81] : memref<32x128xf32, #tpu.memory_space<vmem>>, vector<32x128xf32>
    %c0_82 = arith.constant 0 : index
    %c0_83 = arith.constant 0 : index
    %177 = vector.load %arg12[%c0_82, %c0_83] : memref<1x128xf32, #tpu.memory_space<vmem>>, vector<1x128xf32>
    %c0_84 = arith.constant 0 : index
    %c0_85 = arith.constant 0 : index
    %178 = vector.load %arg13[%c0_84, %c0_85] : memref<128x32xf32, #tpu.memory_space<vmem>>, vector<128x32xf32>
    %c0_86 = arith.constant 0 : index
    %c0_87 = arith.constant 0 : index
    %179 = vector.load %arg14[%c0_86, %c0_87] : memref<1x32xf32, #tpu.memory_space<vmem>>, vector<1x32xf32>
    %cst_88 = arith.constant dense<0.000000e+00> : vector<16x128xf32>
    %180 = tpu.matmul %175, %176, %cst_88 {dimension_numbers = #tpu.dot_dimension_numbers<[1], [0], [0], [1], [0, 0, 1, 1], [], []>} : vector<16x32xf32>, vector<32x128xf32>, vector<16x128xf32> -> vector<16x128xf32>
    %181 = vector.broadcast %177 : vector<1x128xf32> to vector<16x128xf32>
    %182 = arith.addf %180, %181 : vector<16x128xf32>
    %cst_89 = arith.constant 0.000000e+00 : f32
    %183 = vector.broadcast %cst_89 : f32 to vector<16x128xf32>
    %184 = arith.maximumf %182, %183 : vector<16x128xf32>
    %cst_90 = arith.constant dense<0.000000e+00> : vector<16x32xf32>
    %185 = tpu.matmul %184, %178, %cst_90 {dimension_numbers = #tpu.dot_dimension_numbers<[1], [0], [0], [1], [0, 0, 1, 1], [], []>} : vector<16x128xf32>, vector<128x32xf32>, vector<16x32xf32> -> vector<16x32xf32>
    %186 = vector.broadcast %179 : vector<1x32xf32> to vector<16x32xf32>
    %187 = arith.addf %185, %186 : vector<16x32xf32>
    %188 = arith.addf %187, %175 : vector<16x32xf32>
    %c0_91 = arith.constant 0 : index
    %c0_92 = arith.constant 0 : index
    %189 = vector.load %arg15[%c0_91, %c0_92] : memref<1x32xf32, #tpu.memory_space<vmem>>, vector<1x32xf32>
    %c0_93 = arith.constant 0 : index
    %c0_94 = arith.constant 0 : index
    %190 = vector.load %arg16[%c0_93, %c0_94] : memref<1x32xf32, #tpu.memory_space<vmem>>, vector<1x32xf32>
    %cst_95 = arith.constant dense<0.000000e+00> : vector<16xf32>
    %191 = vector.multi_reduction <add>, %188, %cst_95 [1] : vector<16x32xf32> to vector<16xf32>
    %192 = vector.shape_cast %191 : vector<16xf32> to vector<16x1xf32>
    %cst_96 = arith.constant 3.200000e+01 : f32
    %193 = vector.broadcast %cst_96 : f32 to vector<16x1xf32>
    %194 = arith.divf %192, %193 : vector<16x1xf32>
    %195 = vector.broadcast %194 : vector<16x1xf32> to vector<16x32xf32>
    %196 = arith.subf %188, %195 : vector<16x32xf32>
    %197 = arith.mulf %196, %196 : vector<16x32xf32>
    %cst_97 = arith.constant dense<0.000000e+00> : vector<16xf32>
    %198 = vector.multi_reduction <add>, %197, %cst_97 [1] : vector<16x32xf32> to vector<16xf32>
    %199 = vector.shape_cast %198 : vector<16xf32> to vector<16x1xf32>
    %cst_98 = arith.constant 3.200000e+01 : f32
    %200 = vector.broadcast %cst_98 : f32 to vector<16x1xf32>
    %201 = arith.divf %199, %200 : vector<16x1xf32>
    %202 = vector.broadcast %194 : vector<16x1xf32> to vector<16x32xf32>
    %203 = arith.subf %188, %202 : vector<16x32xf32>
    %cst_99 = arith.constant 9.99999974E-6 : f32
    %204 = vector.broadcast %cst_99 : f32 to vector<16x1xf32>
    %205 = arith.addf %201, %204 : vector<16x1xf32>
    %206 = math.rsqrt %205 : vector<16x1xf32>
    %207 = vector.broadcast %206 : vector<16x1xf32> to vector<16x32xf32>
    %208 = arith.mulf %203, %207 : vector<16x32xf32>
    %209 = vector.broadcast %189 : vector<1x32xf32> to vector<16x32xf32>
    %210 = arith.mulf %208, %209 : vector<16x32xf32>
    %211 = vector.broadcast %190 : vector<1x32xf32> to vector<16x32xf32>
    %212 = arith.addf %210, %211 : vector<16x32xf32>
    %c0_100 = arith.constant 0 : index
    %c0_101 = arith.constant 0 : index
    %213 = vector.load %arg17[%c0_100, %c0_101] : memref<32x96xf32, #tpu.memory_space<vmem>>, vector<32x96xf32>
    %c0_102 = arith.constant 0 : index
    %c0_103 = arith.constant 0 : index
    %214 = vector.load %arg18[%c0_102, %c0_103] : memref<1x96xf32, #tpu.memory_space<vmem>>, vector<1x96xf32>
    %c0_104 = arith.constant 0 : index
    %c0_105 = arith.constant 0 : index
    %215 = vector.load %arg19[%c0_104, %c0_105] : memref<32x32xf32, #tpu.memory_space<vmem>>, vector<32x32xf32>
    %c0_106 = arith.constant 0 : index
    %c0_107 = arith.constant 0 : index
    %216 = vector.load %arg20[%c0_106, %c0_107] : memref<1x32xf32, #tpu.memory_space<vmem>>, vector<1x32xf32>
    %cst_108 = arith.constant dense<0.000000e+00> : vector<16x96xf32>
    %217 = tpu.matmul %31, %213, %cst_108 {dimension_numbers = #tpu.dot_dimension_numbers<[1], [0], [0], [1], [0, 0, 1, 1], [], []>} : vector<16x32xf32>, vector<32x96xf32>, vector<16x96xf32> -> vector<16x96xf32>
    %218 = vector.broadcast %214 : vector<1x96xf32> to vector<16x96xf32>
    %219 = arith.addf %217, %218 : vector<16x96xf32>
    %220 = vector.extract_strided_slice %219 {offsets = [0, 0], sizes = [16, 32], strides = [1, 1]} : vector<16x96xf32> to vector<16x32xf32>
    %221 = vector.extract_strided_slice %219 {offsets = [0, 32], sizes = [16, 64], strides = [1, 1]} : vector<16x96xf32> to vector<16x64xf32>
    %222 = vector.extract_strided_slice %220 {offsets = [0, 0], sizes = [16, 8], strides = [1, 1]} : vector<16x32xf32> to vector<16x8xf32>
    %223 = vector.shape_cast %222 : vector<16x8xf32> to vector<2x8x8xf32>
    %224 = vector.extract_strided_slice %221 {offsets = [0, 0], sizes = [16, 8], strides = [1, 1]} : vector<16x64xf32> to vector<16x8xf32>
    %225 = vector.shape_cast %224 : vector<16x8xf32> to vector<2x8x8xf32>
    %226 = vector.extract_strided_slice %221 {offsets = [0, 32], sizes = [16, 8], strides = [1, 1]} : vector<16x64xf32> to vector<16x8xf32>
    %227 = vector.shape_cast %226 : vector<16x8xf32> to vector<2x8x8xf32>
    "tpu.trace_start"() <{level = 10 : i32, message = "bqd,bkd->bqk"}> : () -> ()
    %cst_109 = arith.constant dense<0.000000e+00> : vector<2x8x8xf32>
    %228 = tpu.matmul %223, %225, %cst_109 {dimension_numbers = #tpu.dot_dimension_numbers<[2], [2], [1], [1], [0, 0, 0, 1, 1, 1], [0], [0]>} : vector<2x8x8xf32>, vector<2x8x8xf32>, vector<2x8x8xf32> -> vector<2x8x8xf32>
    "tpu.trace_stop"() : () -> ()
    %cst_110 = arith.constant 0.353553385 : f32
    %229 = vector.broadcast %cst_110 : f32 to vector<2x8x8xf32>
    %230 = arith.mulf %228, %229 : vector<2x8x8xf32>
    %231 = vector.broadcast %36 : vector<2x1x8xf32> to vector<2x8x8xf32>
    %232 = arith.addf %230, %231 : vector<2x8x8xf32>
    %cst_111 = arith.constant dense<0xFF800000> : vector<2x8xf32>
    %233 = vector.multi_reduction <maximumf>, %232, %cst_111 [2] : vector<2x8x8xf32> to vector<2x8xf32>
    %234 = vector.shape_cast %233 : vector<2x8xf32> to vector<2x8x1xf32>
    %235 = vector.broadcast %234 : vector<2x8x1xf32> to vector<2x8x8xf32>
    %236 = arith.subf %232, %235 : vector<2x8x8xf32>
    %237 = math.exp %236 : vector<2x8x8xf32>
    %cst_112 = arith.constant dense<0.000000e+00> : vector<2x8xf32>
    %238 = vector.multi_reduction <add>, %237, %cst_112 [2] : vector<2x8x8xf32> to vector<2x8xf32>
    %239 = vector.shape_cast %238 : vector<2x8xf32> to vector<2x8x1xf32>
    %240 = tpu.reciprocal %239 {approx = true} : vector<2x8x1xf32> -> vector<2x8x1xf32>
    %241 = vector.broadcast %240 : vector<2x8x1xf32> to vector<2x8x8xf32>
    %242 = arith.mulf %237, %241 : vector<2x8x8xf32>
    "tpu.trace_start"() <{level = 10 : i32, message = "bqk,bkd->bqd"}> : () -> ()
    %cst_113 = arith.constant dense<0.000000e+00> : vector<2x8x8xf32>
    %243 = tpu.matmul %242, %227, %cst_113 {dimension_numbers = #tpu.dot_dimension_numbers<[2], [1], [1], [2], [0, 0, 0, 1, 1, 2], [0], [0]>} : vector<2x8x8xf32>, vector<2x8x8xf32>, vector<2x8x8xf32> -> vector<2x8x8xf32>
    "tpu.trace_stop"() : () -> ()
    %244 = vector.shape_cast %243 : vector<2x8x8xf32> to vector<16x8xf32>
    %245 = vector.extract_strided_slice %215 {offsets = [0, 0], sizes = [8, 32], strides = [1, 1]} : vector<32x32xf32> to vector<8x32xf32>
    %cst_114 = arith.constant dense<0.000000e+00> : vector<16x32xf32>
    %246 = tpu.matmul %244, %245, %cst_114 {dimension_numbers = #tpu.dot_dimension_numbers<[1], [0], [0], [1], [0, 0, 1, 1], [], []>} : vector<16x8xf32>, vector<8x32xf32>, vector<16x32xf32> -> vector<16x32xf32>
    %247 = vector.extract_strided_slice %220 {offsets = [0, 8], sizes = [16, 8], strides = [1, 1]} : vector<16x32xf32> to vector<16x8xf32>
    %248 = vector.shape_cast %247 : vector<16x8xf32> to vector<2x8x8xf32>
    %249 = vector.extract_strided_slice %221 {offsets = [0, 8], sizes = [16, 8], strides = [1, 1]} : vector<16x64xf32> to vector<16x8xf32>
    %250 = vector.shape_cast %249 : vector<16x8xf32> to vector<2x8x8xf32>
    %251 = vector.extract_strided_slice %221 {offsets = [0, 40], sizes = [16, 8], strides = [1, 1]} : vector<16x64xf32> to vector<16x8xf32>
    %252 = vector.shape_cast %251 : vector<16x8xf32> to vector<2x8x8xf32>
    "tpu.trace_start"() <{level = 10 : i32, message = "bqd,bkd->bqk"}> : () -> ()
    %cst_115 = arith.constant dense<0.000000e+00> : vector<2x8x8xf32>
    %253 = tpu.matmul %248, %250, %cst_115 {dimension_numbers = #tpu.dot_dimension_numbers<[2], [2], [1], [1], [0, 0, 0, 1, 1, 1], [0], [0]>} : vector<2x8x8xf32>, vector<2x8x8xf32>, vector<2x8x8xf32> -> vector<2x8x8xf32>
    "tpu.trace_stop"() : () -> ()
    %cst_116 = arith.constant 0.353553385 : f32
    %254 = vector.broadcast %cst_116 : f32 to vector<2x8x8xf32>
    %255 = arith.mulf %253, %254 : vector<2x8x8xf32>
    %256 = vector.broadcast %36 : vector<2x1x8xf32> to vector<2x8x8xf32>
    %257 = arith.addf %255, %256 : vector<2x8x8xf32>
    %cst_117 = arith.constant dense<0xFF800000> : vector<2x8xf32>
    %258 = vector.multi_reduction <maximumf>, %257, %cst_117 [2] : vector<2x8x8xf32> to vector<2x8xf32>
    %259 = vector.shape_cast %258 : vector<2x8xf32> to vector<2x8x1xf32>
    %260 = vector.broadcast %259 : vector<2x8x1xf32> to vector<2x8x8xf32>
    %261 = arith.subf %257, %260 : vector<2x8x8xf32>
    %262 = math.exp %261 : vector<2x8x8xf32>
    %cst_118 = arith.constant dense<0.000000e+00> : vector<2x8xf32>
    %263 = vector.multi_reduction <add>, %262, %cst_118 [2] : vector<2x8x8xf32> to vector<2x8xf32>
    %264 = vector.shape_cast %263 : vector<2x8xf32> to vector<2x8x1xf32>
    %265 = tpu.reciprocal %264 {approx = true} : vector<2x8x1xf32> -> vector<2x8x1xf32>
    %266 = vector.broadcast %265 : vector<2x8x1xf32> to vector<2x8x8xf32>
    %267 = arith.mulf %262, %266 : vector<2x8x8xf32>
    "tpu.trace_start"() <{level = 10 : i32, message = "bqk,bkd->bqd"}> : () -> ()
    %cst_119 = arith.constant dense<0.000000e+00> : vector<2x8x8xf32>
    %268 = tpu.matmul %267, %252, %cst_119 {dimension_numbers = #tpu.dot_dimension_numbers<[2], [1], [1], [2], [0, 0, 0, 1, 1, 2], [0], [0]>} : vector<2x8x8xf32>, vector<2x8x8xf32>, vector<2x8x8xf32> -> vector<2x8x8xf32>
    "tpu.trace_stop"() : () -> ()
    %269 = vector.shape_cast %268 : vector<2x8x8xf32> to vector<16x8xf32>
    %270 = vector.extract_strided_slice %215 {offsets = [8, 0], sizes = [8, 32], strides = [1, 1]} : vector<32x32xf32> to vector<8x32xf32>
    %cst_120 = arith.constant dense<0.000000e+00> : vector<16x32xf32>
    %271 = tpu.matmul %269, %270, %cst_120 {dimension_numbers = #tpu.dot_dimension_numbers<[1], [0], [0], [1], [0, 0, 1, 1], [], []>} : vector<16x8xf32>, vector<8x32xf32>, vector<16x32xf32> -> vector<16x32xf32>
    %272 = arith.addf %246, %271 : vector<16x32xf32>
    %273 = vector.extract_strided_slice %220 {offsets = [0, 16], sizes = [16, 8], strides = [1, 1]} : vector<16x32xf32> to vector<16x8xf32>
    %274 = vector.shape_cast %273 : vector<16x8xf32> to vector<2x8x8xf32>
    %275 = vector.extract_strided_slice %221 {offsets = [0, 16], sizes = [16, 8], strides = [1, 1]} : vector<16x64xf32> to vector<16x8xf32>
    %276 = vector.shape_cast %275 : vector<16x8xf32> to vector<2x8x8xf32>
    %277 = vector.extract_strided_slice %221 {offsets = [0, 48], sizes = [16, 8], strides = [1, 1]} : vector<16x64xf32> to vector<16x8xf32>
    %278 = vector.shape_cast %277 : vector<16x8xf32> to vector<2x8x8xf32>
    "tpu.trace_start"() <{level = 10 : i32, message = "bqd,bkd->bqk"}> : () -> ()
    %cst_121 = arith.constant dense<0.000000e+00> : vector<2x8x8xf32>
    %279 = tpu.matmul %274, %276, %cst_121 {dimension_numbers = #tpu.dot_dimension_numbers<[2], [2], [1], [1], [0, 0, 0, 1, 1, 1], [0], [0]>} : vector<2x8x8xf32>, vector<2x8x8xf32>, vector<2x8x8xf32> -> vector<2x8x8xf32>
    "tpu.trace_stop"() : () -> ()
    %cst_122 = arith.constant 0.353553385 : f32
    %280 = vector.broadcast %cst_122 : f32 to vector<2x8x8xf32>
    %281 = arith.mulf %279, %280 : vector<2x8x8xf32>
    %282 = vector.broadcast %36 : vector<2x1x8xf32> to vector<2x8x8xf32>
    %283 = arith.addf %281, %282 : vector<2x8x8xf32>
    %cst_123 = arith.constant dense<0xFF800000> : vector<2x8xf32>
    %284 = vector.multi_reduction <maximumf>, %283, %cst_123 [2] : vector<2x8x8xf32> to vector<2x8xf32>
    %285 = vector.shape_cast %284 : vector<2x8xf32> to vector<2x8x1xf32>
    %286 = vector.broadcast %285 : vector<2x8x1xf32> to vector<2x8x8xf32>
    %287 = arith.subf %283, %286 : vector<2x8x8xf32>
    %288 = math.exp %287 : vector<2x8x8xf32>
    %cst_124 = arith.constant dense<0.000000e+00> : vector<2x8xf32>
    %289 = vector.multi_reduction <add>, %288, %cst_124 [2] : vector<2x8x8xf32> to vector<2x8xf32>
    %290 = vector.shape_cast %289 : vector<2x8xf32> to vector<2x8x1xf32>
    %291 = tpu.reciprocal %290 {approx = true} : vector<2x8x1xf32> -> vector<2x8x1xf32>
    %292 = vector.broadcast %291 : vector<2x8x1xf32> to vector<2x8x8xf32>
    %293 = arith.mulf %288, %292 : vector<2x8x8xf32>
    "tpu.trace_start"() <{level = 10 : i32, message = "bqk,bkd->bqd"}> : () -> ()
    %cst_125 = arith.constant dense<0.000000e+00> : vector<2x8x8xf32>
    %294 = tpu.matmul %293, %278, %cst_125 {dimension_numbers = #tpu.dot_dimension_numbers<[2], [1], [1], [2], [0, 0, 0, 1, 1, 2], [0], [0]>} : vector<2x8x8xf32>, vector<2x8x8xf32>, vector<2x8x8xf32> -> vector<2x8x8xf32>
    "tpu.trace_stop"() : () -> ()
    %295 = vector.shape_cast %294 : vector<2x8x8xf32> to vector<16x8xf32>
    %296 = vector.extract_strided_slice %215 {offsets = [16, 0], sizes = [8, 32], strides = [1, 1]} : vector<32x32xf32> to vector<8x32xf32>
    %cst_126 = arith.constant dense<0.000000e+00> : vector<16x32xf32>
    %297 = tpu.matmul %295, %296, %cst_126 {dimension_numbers = #tpu.dot_dimension_numbers<[1], [0], [0], [1], [0, 0, 1, 1], [], []>} : vector<16x8xf32>, vector<8x32xf32>, vector<16x32xf32> -> vector<16x32xf32>
    %298 = arith.addf %272, %297 : vector<16x32xf32>
    %299 = vector.extract_strided_slice %220 {offsets = [0, 24], sizes = [16, 8], strides = [1, 1]} : vector<16x32xf32> to vector<16x8xf32>
    %300 = vector.shape_cast %299 : vector<16x8xf32> to vector<2x8x8xf32>
    %301 = vector.extract_strided_slice %221 {offsets = [0, 24], sizes = [16, 8], strides = [1, 1]} : vector<16x64xf32> to vector<16x8xf32>
    %302 = vector.shape_cast %301 : vector<16x8xf32> to vector<2x8x8xf32>
    %303 = vector.extract_strided_slice %221 {offsets = [0, 56], sizes = [16, 8], strides = [1, 1]} : vector<16x64xf32> to vector<16x8xf32>
    %304 = vector.shape_cast %303 : vector<16x8xf32> to vector<2x8x8xf32>
    "tpu.trace_start"() <{level = 10 : i32, message = "bqd,bkd->bqk"}> : () -> ()
    %cst_127 = arith.constant dense<0.000000e+00> : vector<2x8x8xf32>
    %305 = tpu.matmul %300, %302, %cst_127 {dimension_numbers = #tpu.dot_dimension_numbers<[2], [2], [1], [1], [0, 0, 0, 1, 1, 1], [0], [0]>} : vector<2x8x8xf32>, vector<2x8x8xf32>, vector<2x8x8xf32> -> vector<2x8x8xf32>
    "tpu.trace_stop"() : () -> ()
    %cst_128 = arith.constant 0.353553385 : f32
    %306 = vector.broadcast %cst_128 : f32 to vector<2x8x8xf32>
    %307 = arith.mulf %305, %306 : vector<2x8x8xf32>
    %308 = vector.broadcast %36 : vector<2x1x8xf32> to vector<2x8x8xf32>
    %309 = arith.addf %307, %308 : vector<2x8x8xf32>
    %cst_129 = arith.constant dense<0xFF800000> : vector<2x8xf32>
    %310 = vector.multi_reduction <maximumf>, %309, %cst_129 [2] : vector<2x8x8xf32> to vector<2x8xf32>
    %311 = vector.shape_cast %310 : vector<2x8xf32> to vector<2x8x1xf32>
    %312 = vector.broadcast %311 : vector<2x8x1xf32> to vector<2x8x8xf32>
    %313 = arith.subf %309, %312 : vector<2x8x8xf32>
    %314 = math.exp %313 : vector<2x8x8xf32>
    %cst_130 = arith.constant dense<0.000000e+00> : vector<2x8xf32>
    %315 = vector.multi_reduction <add>, %314, %cst_130 [2] : vector<2x8x8xf32> to vector<2x8xf32>
    %316 = vector.shape_cast %315 : vector<2x8xf32> to vector<2x8x1xf32>
    %317 = tpu.reciprocal %316 {approx = true} : vector<2x8x1xf32> -> vector<2x8x1xf32>
    %318 = vector.broadcast %317 : vector<2x8x1xf32> to vector<2x8x8xf32>
    %319 = arith.mulf %314, %318 : vector<2x8x8xf32>
    "tpu.trace_start"() <{level = 10 : i32, message = "bqk,bkd->bqd"}> : () -> ()
    %cst_131 = arith.constant dense<0.000000e+00> : vector<2x8x8xf32>
    %320 = tpu.matmul %319, %304, %cst_131 {dimension_numbers = #tpu.dot_dimension_numbers<[2], [1], [1], [2], [0, 0, 0, 1, 1, 2], [0], [0]>} : vector<2x8x8xf32>, vector<2x8x8xf32>, vector<2x8x8xf32> -> vector<2x8x8xf32>
    "tpu.trace_stop"() : () -> ()
    %321 = vector.shape_cast %320 : vector<2x8x8xf32> to vector<16x8xf32>
    %322 = vector.extract_strided_slice %215 {offsets = [24, 0], sizes = [8, 32], strides = [1, 1]} : vector<32x32xf32> to vector<8x32xf32>
    %cst_132 = arith.constant dense<0.000000e+00> : vector<16x32xf32>
    %323 = tpu.matmul %321, %322, %cst_132 {dimension_numbers = #tpu.dot_dimension_numbers<[1], [0], [0], [1], [0, 0, 1, 1], [], []>} : vector<16x8xf32>, vector<8x32xf32>, vector<16x32xf32> -> vector<16x32xf32>
    %324 = arith.addf %298, %323 : vector<16x32xf32>
    %325 = vector.broadcast %216 : vector<1x32xf32> to vector<16x32xf32>
    %326 = arith.addf %324, %325 : vector<16x32xf32>
    %327 = arith.addf %326, %31 : vector<16x32xf32>
    %c0_133 = arith.constant 0 : index
    %c0_134 = arith.constant 0 : index
    %328 = vector.load %arg21[%c0_133, %c0_134] : memref<1x32xf32, #tpu.memory_space<vmem>>, vector<1x32xf32>
    %c0_135 = arith.constant 0 : index
    %c0_136 = arith.constant 0 : index
    %329 = vector.load %arg22[%c0_135, %c0_136] : memref<1x32xf32, #tpu.memory_space<vmem>>, vector<1x32xf32>
    %cst_137 = arith.constant dense<0.000000e+00> : vector<16xf32>
    %330 = vector.multi_reduction <add>, %327, %cst_137 [1] : vector<16x32xf32> to vector<16xf32>
    %331 = vector.shape_cast %330 : vector<16xf32> to vector<16x1xf32>
    %cst_138 = arith.constant 3.200000e+01 : f32
    %332 = vector.broadcast %cst_138 : f32 to vector<16x1xf32>
    %333 = arith.divf %331, %332 : vector<16x1xf32>
    %334 = vector.broadcast %333 : vector<16x1xf32> to vector<16x32xf32>
    %335 = arith.subf %327, %334 : vector<16x32xf32>
    %336 = arith.mulf %335, %335 : vector<16x32xf32>
    %cst_139 = arith.constant dense<0.000000e+00> : vector<16xf32>
    %337 = vector.multi_reduction <add>, %336, %cst_139 [1] : vector<16x32xf32> to vector<16xf32>
    %338 = vector.shape_cast %337 : vector<16xf32> to vector<16x1xf32>
    %cst_140 = arith.constant 3.200000e+01 : f32
    %339 = vector.broadcast %cst_140 : f32 to vector<16x1xf32>
    %340 = arith.divf %338, %339 : vector<16x1xf32>
    %341 = vector.broadcast %333 : vector<16x1xf32> to vector<16x32xf32>
    %342 = arith.subf %327, %341 : vector<16x32xf32>
    %cst_141 = arith.constant 9.99999974E-6 : f32
    %343 = vector.broadcast %cst_141 : f32 to vector<16x1xf32>
    %344 = arith.addf %340, %343 : vector<16x1xf32>
    %345 = math.rsqrt %344 : vector<16x1xf32>
    %346 = vector.broadcast %345 : vector<16x1xf32> to vector<16x32xf32>
    %347 = arith.mulf %342, %346 : vector<16x32xf32>
    %348 = vector.broadcast %328 : vector<1x32xf32> to vector<16x32xf32>
    %349 = arith.mulf %347, %348 : vector<16x32xf32>
    %350 = vector.broadcast %329 : vector<1x32xf32> to vector<16x32xf32>
    %351 = arith.addf %349, %350 : vector<16x32xf32>
    %c0_142 = arith.constant 0 : index
    %c0_143 = arith.constant 0 : index
    %352 = vector.load %arg23[%c0_142, %c0_143] : memref<32x96xf32, #tpu.memory_space<vmem>>, vector<32x96xf32>
    %c0_144 = arith.constant 0 : index
    %c0_145 = arith.constant 0 : index
    %353 = vector.load %arg24[%c0_144, %c0_145] : memref<1x96xf32, #tpu.memory_space<vmem>>, vector<1x96xf32>
    %c0_146 = arith.constant 0 : index
    %c0_147 = arith.constant 0 : index
    %354 = vector.load %arg25[%c0_146, %c0_147] : memref<32x32xf32, #tpu.memory_space<vmem>>, vector<32x32xf32>
    %c0_148 = arith.constant 0 : index
    %c0_149 = arith.constant 0 : index
    %355 = vector.load %arg26[%c0_148, %c0_149] : memref<1x32xf32, #tpu.memory_space<vmem>>, vector<1x32xf32>
    %356 = vector.extract_strided_slice %352 {offsets = [0, 0], sizes = [32, 32], strides = [1, 1]} : vector<32x96xf32> to vector<32x32xf32>
    %cst_150 = arith.constant dense<0.000000e+00> : vector<16x32xf32>
    %357 = tpu.matmul %351, %356, %cst_150 {dimension_numbers = #tpu.dot_dimension_numbers<[1], [0], [0], [1], [0, 0, 1, 1], [], []>} : vector<16x32xf32>, vector<32x32xf32>, vector<16x32xf32> -> vector<16x32xf32>
    %358 = vector.extract_strided_slice %353 {offsets = [0, 0], sizes = [1, 32], strides = [1, 1]} : vector<1x96xf32> to vector<1x32xf32>
    %359 = vector.broadcast %358 : vector<1x32xf32> to vector<16x32xf32>
    %360 = arith.addf %357, %359 : vector<16x32xf32>
    %361 = vector.extract_strided_slice %352 {offsets = [0, 32], sizes = [32, 64], strides = [1, 1]} : vector<32x96xf32> to vector<32x64xf32>
    %cst_151 = arith.constant dense<0.000000e+00> : vector<16x64xf32>
    %362 = tpu.matmul %212, %361, %cst_151 {dimension_numbers = #tpu.dot_dimension_numbers<[1], [0], [0], [1], [0, 0, 1, 1], [], []>} : vector<16x32xf32>, vector<32x64xf32>, vector<16x64xf32> -> vector<16x64xf32>
    %363 = vector.extract_strided_slice %353 {offsets = [0, 32], sizes = [1, 64], strides = [1, 1]} : vector<1x96xf32> to vector<1x64xf32>
    %364 = vector.broadcast %363 : vector<1x64xf32> to vector<16x64xf32>
    %365 = arith.addf %362, %364 : vector<16x64xf32>
    %366 = vector.extract_strided_slice %360 {offsets = [0, 0], sizes = [16, 8], strides = [1, 1]} : vector<16x32xf32> to vector<16x8xf32>
    %367 = vector.shape_cast %366 : vector<16x8xf32> to vector<2x8x8xf32>
    %368 = vector.extract_strided_slice %365 {offsets = [0, 0], sizes = [16, 8], strides = [1, 1]} : vector<16x64xf32> to vector<16x8xf32>
    %369 = vector.shape_cast %368 : vector<16x8xf32> to vector<2x8x8xf32>
    %370 = vector.extract_strided_slice %365 {offsets = [0, 32], sizes = [16, 8], strides = [1, 1]} : vector<16x64xf32> to vector<16x8xf32>
    %371 = vector.shape_cast %370 : vector<16x8xf32> to vector<2x8x8xf32>
    "tpu.trace_start"() <{level = 10 : i32, message = "bqd,bkd->bqk"}> : () -> ()
    %cst_152 = arith.constant dense<0.000000e+00> : vector<2x8x8xf32>
    %372 = tpu.matmul %367, %369, %cst_152 {dimension_numbers = #tpu.dot_dimension_numbers<[2], [2], [1], [1], [0, 0, 0, 1, 1, 1], [0], [0]>} : vector<2x8x8xf32>, vector<2x8x8xf32>, vector<2x8x8xf32> -> vector<2x8x8xf32>
    "tpu.trace_stop"() : () -> ()
    %cst_153 = arith.constant 0.353553385 : f32
    %373 = vector.broadcast %cst_153 : f32 to vector<2x8x8xf32>
    %374 = arith.mulf %372, %373 : vector<2x8x8xf32>
    %375 = vector.broadcast %36 : vector<2x1x8xf32> to vector<2x8x8xf32>
    %376 = arith.addf %374, %375 : vector<2x8x8xf32>
    %cst_154 = arith.constant dense<0xFF800000> : vector<2x8xf32>
    %377 = vector.multi_reduction <maximumf>, %376, %cst_154 [2] : vector<2x8x8xf32> to vector<2x8xf32>
    %378 = vector.shape_cast %377 : vector<2x8xf32> to vector<2x8x1xf32>
    %379 = vector.broadcast %378 : vector<2x8x1xf32> to vector<2x8x8xf32>
    %380 = arith.subf %376, %379 : vector<2x8x8xf32>
    %381 = math.exp %380 : vector<2x8x8xf32>
    %cst_155 = arith.constant dense<0.000000e+00> : vector<2x8xf32>
    %382 = vector.multi_reduction <add>, %381, %cst_155 [2] : vector<2x8x8xf32> to vector<2x8xf32>
    %383 = vector.shape_cast %382 : vector<2x8xf32> to vector<2x8x1xf32>
    %384 = tpu.reciprocal %383 {approx = true} : vector<2x8x1xf32> -> vector<2x8x1xf32>
    %385 = vector.broadcast %384 : vector<2x8x1xf32> to vector<2x8x8xf32>
    %386 = arith.mulf %381, %385 : vector<2x8x8xf32>
    "tpu.trace_start"() <{level = 10 : i32, message = "bqk,bkd->bqd"}> : () -> ()
    %cst_156 = arith.constant dense<0.000000e+00> : vector<2x8x8xf32>
    %387 = tpu.matmul %386, %371, %cst_156 {dimension_numbers = #tpu.dot_dimension_numbers<[2], [1], [1], [2], [0, 0, 0, 1, 1, 2], [0], [0]>} : vector<2x8x8xf32>, vector<2x8x8xf32>, vector<2x8x8xf32> -> vector<2x8x8xf32>
    "tpu.trace_stop"() : () -> ()
    %388 = vector.shape_cast %387 : vector<2x8x8xf32> to vector<16x8xf32>
    %389 = vector.extract_strided_slice %354 {offsets = [0, 0], sizes = [8, 32], strides = [1, 1]} : vector<32x32xf32> to vector<8x32xf32>
    %cst_157 = arith.constant dense<0.000000e+00> : vector<16x32xf32>
    %390 = tpu.matmul %388, %389, %cst_157 {dimension_numbers = #tpu.dot_dimension_numbers<[1], [0], [0], [1], [0, 0, 1, 1], [], []>} : vector<16x8xf32>, vector<8x32xf32>, vector<16x32xf32> -> vector<16x32xf32>
    %391 = vector.extract_strided_slice %360 {offsets = [0, 8], sizes = [16, 8], strides = [1, 1]} : vector<16x32xf32> to vector<16x8xf32>
    %392 = vector.shape_cast %391 : vector<16x8xf32> to vector<2x8x8xf32>
    %393 = vector.extract_strided_slice %365 {offsets = [0, 8], sizes = [16, 8], strides = [1, 1]} : vector<16x64xf32> to vector<16x8xf32>
    %394 = vector.shape_cast %393 : vector<16x8xf32> to vector<2x8x8xf32>
    %395 = vector.extract_strided_slice %365 {offsets = [0, 40], sizes = [16, 8], strides = [1, 1]} : vector<16x64xf32> to vector<16x8xf32>
    %396 = vector.shape_cast %395 : vector<16x8xf32> to vector<2x8x8xf32>
    "tpu.trace_start"() <{level = 10 : i32, message = "bqd,bkd->bqk"}> : () -> ()
    %cst_158 = arith.constant dense<0.000000e+00> : vector<2x8x8xf32>
    %397 = tpu.matmul %392, %394, %cst_158 {dimension_numbers = #tpu.dot_dimension_numbers<[2], [2], [1], [1], [0, 0, 0, 1, 1, 1], [0], [0]>} : vector<2x8x8xf32>, vector<2x8x8xf32>, vector<2x8x8xf32> -> vector<2x8x8xf32>
    "tpu.trace_stop"() : () -> ()
    %cst_159 = arith.constant 0.353553385 : f32
    %398 = vector.broadcast %cst_159 : f32 to vector<2x8x8xf32>
    %399 = arith.mulf %397, %398 : vector<2x8x8xf32>
    %400 = vector.broadcast %36 : vector<2x1x8xf32> to vector<2x8x8xf32>
    %401 = arith.addf %399, %400 : vector<2x8x8xf32>
    %cst_160 = arith.constant dense<0xFF800000> : vector<2x8xf32>
    %402 = vector.multi_reduction <maximumf>, %401, %cst_160 [2] : vector<2x8x8xf32> to vector<2x8xf32>
    %403 = vector.shape_cast %402 : vector<2x8xf32> to vector<2x8x1xf32>
    %404 = vector.broadcast %403 : vector<2x8x1xf32> to vector<2x8x8xf32>
    %405 = arith.subf %401, %404 : vector<2x8x8xf32>
    %406 = math.exp %405 : vector<2x8x8xf32>
    %cst_161 = arith.constant dense<0.000000e+00> : vector<2x8xf32>
    %407 = vector.multi_reduction <add>, %406, %cst_161 [2] : vector<2x8x8xf32> to vector<2x8xf32>
    %408 = vector.shape_cast %407 : vector<2x8xf32> to vector<2x8x1xf32>
    %409 = tpu.reciprocal %408 {approx = true} : vector<2x8x1xf32> -> vector<2x8x1xf32>
    %410 = vector.broadcast %409 : vector<2x8x1xf32> to vector<2x8x8xf32>
    %411 = arith.mulf %406, %410 : vector<2x8x8xf32>
    "tpu.trace_start"() <{level = 10 : i32, message = "bqk,bkd->bqd"}> : () -> ()
    %cst_162 = arith.constant dense<0.000000e+00> : vector<2x8x8xf32>
    %412 = tpu.matmul %411, %396, %cst_162 {dimension_numbers = #tpu.dot_dimension_numbers<[2], [1], [1], [2], [0, 0, 0, 1, 1, 2], [0], [0]>} : vector<2x8x8xf32>, vector<2x8x8xf32>, vector<2x8x8xf32> -> vector<2x8x8xf32>
    "tpu.trace_stop"() : () -> ()
    %413 = vector.shape_cast %412 : vector<2x8x8xf32> to vector<16x8xf32>
    %414 = vector.extract_strided_slice %354 {offsets = [8, 0], sizes = [8, 32], strides = [1, 1]} : vector<32x32xf32> to vector<8x32xf32>
    %cst_163 = arith.constant dense<0.000000e+00> : vector<16x32xf32>
    %415 = tpu.matmul %413, %414, %cst_163 {dimension_numbers = #tpu.dot_dimension_numbers<[1], [0], [0], [1], [0, 0, 1, 1], [], []>} : vector<16x8xf32>, vector<8x32xf32>, vector<16x32xf32> -> vector<16x32xf32>
    %416 = arith.addf %390, %415 : vector<16x32xf32>
    %417 = vector.extract_strided_slice %360 {offsets = [0, 16], sizes = [16, 8], strides = [1, 1]} : vector<16x32xf32> to vector<16x8xf32>
    %418 = vector.shape_cast %417 : vector<16x8xf32> to vector<2x8x8xf32>
    %419 = vector.extract_strided_slice %365 {offsets = [0, 16], sizes = [16, 8], strides = [1, 1]} : vector<16x64xf32> to vector<16x8xf32>
    %420 = vector.shape_cast %419 : vector<16x8xf32> to vector<2x8x8xf32>
    %421 = vector.extract_strided_slice %365 {offsets = [0, 48], sizes = [16, 8], strides = [1, 1]} : vector<16x64xf32> to vector<16x8xf32>
    %422 = vector.shape_cast %421 : vector<16x8xf32> to vector<2x8x8xf32>
    "tpu.trace_start"() <{level = 10 : i32, message = "bqd,bkd->bqk"}> : () -> ()
    %cst_164 = arith.constant dense<0.000000e+00> : vector<2x8x8xf32>
    %423 = tpu.matmul %418, %420, %cst_164 {dimension_numbers = #tpu.dot_dimension_numbers<[2], [2], [1], [1], [0, 0, 0, 1, 1, 1], [0], [0]>} : vector<2x8x8xf32>, vector<2x8x8xf32>, vector<2x8x8xf32> -> vector<2x8x8xf32>
    "tpu.trace_stop"() : () -> ()
    %cst_165 = arith.constant 0.353553385 : f32
    %424 = vector.broadcast %cst_165 : f32 to vector<2x8x8xf32>
    %425 = arith.mulf %423, %424 : vector<2x8x8xf32>
    %426 = vector.broadcast %36 : vector<2x1x8xf32> to vector<2x8x8xf32>
    %427 = arith.addf %425, %426 : vector<2x8x8xf32>
    %cst_166 = arith.constant dense<0xFF800000> : vector<2x8xf32>
    %428 = vector.multi_reduction <maximumf>, %427, %cst_166 [2] : vector<2x8x8xf32> to vector<2x8xf32>
    %429 = vector.shape_cast %428 : vector<2x8xf32> to vector<2x8x1xf32>
    %430 = vector.broadcast %429 : vector<2x8x1xf32> to vector<2x8x8xf32>
    %431 = arith.subf %427, %430 : vector<2x8x8xf32>
    %432 = math.exp %431 : vector<2x8x8xf32>
    %cst_167 = arith.constant dense<0.000000e+00> : vector<2x8xf32>
    %433 = vector.multi_reduction <add>, %432, %cst_167 [2] : vector<2x8x8xf32> to vector<2x8xf32>
    %434 = vector.shape_cast %433 : vector<2x8xf32> to vector<2x8x1xf32>
    %435 = tpu.reciprocal %434 {approx = true} : vector<2x8x1xf32> -> vector<2x8x1xf32>
    %436 = vector.broadcast %435 : vector<2x8x1xf32> to vector<2x8x8xf32>
    %437 = arith.mulf %432, %436 : vector<2x8x8xf32>
    "tpu.trace_start"() <{level = 10 : i32, message = "bqk,bkd->bqd"}> : () -> ()
    %cst_168 = arith.constant dense<0.000000e+00> : vector<2x8x8xf32>
    %438 = tpu.matmul %437, %422, %cst_168 {dimension_numbers = #tpu.dot_dimension_numbers<[2], [1], [1], [2], [0, 0, 0, 1, 1, 2], [0], [0]>} : vector<2x8x8xf32>, vector<2x8x8xf32>, vector<2x8x8xf32> -> vector<2x8x8xf32>
    "tpu.trace_stop"() : () -> ()
    %439 = vector.shape_cast %438 : vector<2x8x8xf32> to vector<16x8xf32>
    %440 = vector.extract_strided_slice %354 {offsets = [16, 0], sizes = [8, 32], strides = [1, 1]} : vector<32x32xf32> to vector<8x32xf32>
    %cst_169 = arith.constant dense<0.000000e+00> : vector<16x32xf32>
    %441 = tpu.matmul %439, %440, %cst_169 {dimension_numbers = #tpu.dot_dimension_numbers<[1], [0], [0], [1], [0, 0, 1, 1], [], []>} : vector<16x8xf32>, vector<8x32xf32>, vector<16x32xf32> -> vector<16x32xf32>
    %442 = arith.addf %416, %441 : vector<16x32xf32>
    %443 = vector.extract_strided_slice %360 {offsets = [0, 24], sizes = [16, 8], strides = [1, 1]} : vector<16x32xf32> to vector<16x8xf32>
    %444 = vector.shape_cast %443 : vector<16x8xf32> to vector<2x8x8xf32>
    %445 = vector.extract_strided_slice %365 {offsets = [0, 24], sizes = [16, 8], strides = [1, 1]} : vector<16x64xf32> to vector<16x8xf32>
    %446 = vector.shape_cast %445 : vector<16x8xf32> to vector<2x8x8xf32>
    %447 = vector.extract_strided_slice %365 {offsets = [0, 56], sizes = [16, 8], strides = [1, 1]} : vector<16x64xf32> to vector<16x8xf32>
    %448 = vector.shape_cast %447 : vector<16x8xf32> to vector<2x8x8xf32>
    "tpu.trace_start"() <{level = 10 : i32, message = "bqd,bkd->bqk"}> : () -> ()
    %cst_170 = arith.constant dense<0.000000e+00> : vector<2x8x8xf32>
    %449 = tpu.matmul %444, %446, %cst_170 {dimension_numbers = #tpu.dot_dimension_numbers<[2], [2], [1], [1], [0, 0, 0, 1, 1, 1], [0], [0]>} : vector<2x8x8xf32>, vector<2x8x8xf32>, vector<2x8x8xf32> -> vector<2x8x8xf32>
    "tpu.trace_stop"() : () -> ()
    %cst_171 = arith.constant 0.353553385 : f32
    %450 = vector.broadcast %cst_171 : f32 to vector<2x8x8xf32>
    %451 = arith.mulf %449, %450 : vector<2x8x8xf32>
    %452 = vector.broadcast %36 : vector<2x1x8xf32> to vector<2x8x8xf32>
    %453 = arith.addf %451, %452 : vector<2x8x8xf32>
    %cst_172 = arith.constant dense<0xFF800000> : vector<2x8xf32>
    %454 = vector.multi_reduction <maximumf>, %453, %cst_172 [2] : vector<2x8x8xf32> to vector<2x8xf32>
    %455 = vector.shape_cast %454 : vector<2x8xf32> to vector<2x8x1xf32>
    %456 = vector.broadcast %455 : vector<2x8x1xf32> to vector<2x8x8xf32>
    %457 = arith.subf %453, %456 : vector<2x8x8xf32>
    %458 = math.exp %457 : vector<2x8x8xf32>
    %cst_173 = arith.constant dense<0.000000e+00> : vector<2x8xf32>
    %459 = vector.multi_reduction <add>, %458, %cst_173 [2] : vector<2x8x8xf32> to vector<2x8xf32>
    %460 = vector.shape_cast %459 : vector<2x8xf32> to vector<2x8x1xf32>
    %461 = tpu.reciprocal %460 {approx = true} : vector<2x8x1xf32> -> vector<2x8x1xf32>
    %462 = vector.broadcast %461 : vector<2x8x1xf32> to vector<2x8x8xf32>
    %463 = arith.mulf %458, %462 : vector<2x8x8xf32>
    "tpu.trace_start"() <{level = 10 : i32, message = "bqk,bkd->bqd"}> : () -> ()
    %cst_174 = arith.constant dense<0.000000e+00> : vector<2x8x8xf32>
    %464 = tpu.matmul %463, %448, %cst_174 {dimension_numbers = #tpu.dot_dimension_numbers<[2], [1], [1], [2], [0, 0, 0, 1, 1, 2], [0], [0]>} : vector<2x8x8xf32>, vector<2x8x8xf32>, vector<2x8x8xf32> -> vector<2x8x8xf32>
    "tpu.trace_stop"() : () -> ()
    %465 = vector.shape_cast %464 : vector<2x8x8xf32> to vector<16x8xf32>
    %466 = vector.extract_strided_slice %354 {offsets = [24, 0], sizes = [8, 32], strides = [1, 1]} : vector<32x32xf32> to vector<8x32xf32>
    %cst_175 = arith.constant dense<0.000000e+00> : vector<16x32xf32>
    %467 = tpu.matmul %465, %466, %cst_175 {dimension_numbers = #tpu.dot_dimension_numbers<[1], [0], [0], [1], [0, 0, 1, 1], [], []>} : vector<16x8xf32>, vector<8x32xf32>, vector<16x32xf32> -> vector<16x32xf32>
    %468 = arith.addf %442, %467 : vector<16x32xf32>
    %469 = vector.broadcast %355 : vector<1x32xf32> to vector<16x32xf32>
    %470 = arith.addf %468, %469 : vector<16x32xf32>
    %471 = arith.addf %470, %351 : vector<16x32xf32>
    %c0_176 = arith.constant 0 : index
    %c0_177 = arith.constant 0 : index
    %472 = vector.load %arg27[%c0_176, %c0_177] : memref<1x32xf32, #tpu.memory_space<vmem>>, vector<1x32xf32>
    %c0_178 = arith.constant 0 : index
    %c0_179 = arith.constant 0 : index
    %473 = vector.load %arg28[%c0_178, %c0_179] : memref<1x32xf32, #tpu.memory_space<vmem>>, vector<1x32xf32>
    %cst_180 = arith.constant dense<0.000000e+00> : vector<16xf32>
    %474 = vector.multi_reduction <add>, %471, %cst_180 [1] : vector<16x32xf32> to vector<16xf32>
    %475 = vector.shape_cast %474 : vector<16xf32> to vector<16x1xf32>
    %cst_181 = arith.constant 3.200000e+01 : f32
    %476 = vector.broadcast %cst_181 : f32 to vector<16x1xf32>
    %477 = arith.divf %475, %476 : vector<16x1xf32>
    %478 = vector.broadcast %477 : vector<16x1xf32> to vector<16x32xf32>
    %479 = arith.subf %471, %478 : vector<16x32xf32>
    %480 = arith.mulf %479, %479 : vector<16x32xf32>
    %cst_182 = arith.constant dense<0.000000e+00> : vector<16xf32>
    %481 = vector.multi_reduction <add>, %480, %cst_182 [1] : vector<16x32xf32> to vector<16xf32>
    %482 = vector.shape_cast %481 : vector<16xf32> to vector<16x1xf32>
    %cst_183 = arith.constant 3.200000e+01 : f32
    %483 = vector.broadcast %cst_183 : f32 to vector<16x1xf32>
    %484 = arith.divf %482, %483 : vector<16x1xf32>
    %485 = vector.broadcast %477 : vector<16x1xf32> to vector<16x32xf32>
    %486 = arith.subf %471, %485 : vector<16x32xf32>
    %cst_184 = arith.constant 9.99999974E-6 : f32
    %487 = vector.broadcast %cst_184 : f32 to vector<16x1xf32>
    %488 = arith.addf %484, %487 : vector<16x1xf32>
    %489 = math.rsqrt %488 : vector<16x1xf32>
    %490 = vector.broadcast %489 : vector<16x1xf32> to vector<16x32xf32>
    %491 = arith.mulf %486, %490 : vector<16x32xf32>
    %492 = vector.broadcast %472 : vector<1x32xf32> to vector<16x32xf32>
    %493 = arith.mulf %491, %492 : vector<16x32xf32>
    %494 = vector.broadcast %473 : vector<1x32xf32> to vector<16x32xf32>
    %495 = arith.addf %493, %494 : vector<16x32xf32>
    %c0_185 = arith.constant 0 : index
    %c0_186 = arith.constant 0 : index
    %496 = vector.load %arg29[%c0_185, %c0_186] : memref<32x128xf32, #tpu.memory_space<vmem>>, vector<32x128xf32>
    %c0_187 = arith.constant 0 : index
    %c0_188 = arith.constant 0 : index
    %497 = vector.load %arg30[%c0_187, %c0_188] : memref<1x128xf32, #tpu.memory_space<vmem>>, vector<1x128xf32>
    %c0_189 = arith.constant 0 : index
    %c0_190 = arith.constant 0 : index
    %498 = vector.load %arg31[%c0_189, %c0_190] : memref<128x32xf32, #tpu.memory_space<vmem>>, vector<128x32xf32>
    %c0_191 = arith.constant 0 : index
    %c0_192 = arith.constant 0 : index
    %499 = vector.load %arg32[%c0_191, %c0_192] : memref<1x32xf32, #tpu.memory_space<vmem>>, vector<1x32xf32>
    %cst_193 = arith.constant dense<0.000000e+00> : vector<16x128xf32>
    %500 = tpu.matmul %495, %496, %cst_193 {dimension_numbers = #tpu.dot_dimension_numbers<[1], [0], [0], [1], [0, 0, 1, 1], [], []>} : vector<16x32xf32>, vector<32x128xf32>, vector<16x128xf32> -> vector<16x128xf32>
    %501 = vector.broadcast %497 : vector<1x128xf32> to vector<16x128xf32>
    %502 = arith.addf %500, %501 : vector<16x128xf32>
    %cst_194 = arith.constant 0.000000e+00 : f32
    %503 = vector.broadcast %cst_194 : f32 to vector<16x128xf32>
    %504 = arith.maximumf %502, %503 : vector<16x128xf32>
    %cst_195 = arith.constant dense<0.000000e+00> : vector<16x32xf32>
    %505 = tpu.matmul %504, %498, %cst_195 {dimension_numbers = #tpu.dot_dimension_numbers<[1], [0], [0], [1], [0, 0, 1, 1], [], []>} : vector<16x128xf32>, vector<128x32xf32>, vector<16x32xf32> -> vector<16x32xf32>
    %506 = vector.broadcast %499 : vector<1x32xf32> to vector<16x32xf32>
    %507 = arith.addf %505, %506 : vector<16x32xf32>
    %508 = arith.addf %507, %495 : vector<16x32xf32>
    %c0_196 = arith.constant 0 : index
    %c0_197 = arith.constant 0 : index
    %509 = vector.load %arg33[%c0_196, %c0_197] : memref<1x32xf32, #tpu.memory_space<vmem>>, vector<1x32xf32>
    %c0_198 = arith.constant 0 : index
    %c0_199 = arith.constant 0 : index
    %510 = vector.load %arg34[%c0_198, %c0_199] : memref<1x32xf32, #tpu.memory_space<vmem>>, vector<1x32xf32>
    %cst_200 = arith.constant dense<0.000000e+00> : vector<16xf32>
    %511 = vector.multi_reduction <add>, %508, %cst_200 [1] : vector<16x32xf32> to vector<16xf32>
    %512 = vector.shape_cast %511 : vector<16xf32> to vector<16x1xf32>
    %cst_201 = arith.constant 3.200000e+01 : f32
    %513 = vector.broadcast %cst_201 : f32 to vector<16x1xf32>
    %514 = arith.divf %512, %513 : vector<16x1xf32>
    %515 = vector.broadcast %514 : vector<16x1xf32> to vector<16x32xf32>
    %516 = arith.subf %508, %515 : vector<16x32xf32>
    %517 = arith.mulf %516, %516 : vector<16x32xf32>
    %cst_202 = arith.constant dense<0.000000e+00> : vector<16xf32>
    %518 = vector.multi_reduction <add>, %517, %cst_202 [1] : vector<16x32xf32> to vector<16xf32>
    %519 = vector.shape_cast %518 : vector<16xf32> to vector<16x1xf32>
    %cst_203 = arith.constant 3.200000e+01 : f32
    %520 = vector.broadcast %cst_203 : f32 to vector<16x1xf32>
    %521 = arith.divf %519, %520 : vector<16x1xf32>
    %522 = vector.broadcast %514 : vector<16x1xf32> to vector<16x32xf32>
    %523 = arith.subf %508, %522 : vector<16x32xf32>
    %cst_204 = arith.constant 9.99999974E-6 : f32
    %524 = vector.broadcast %cst_204 : f32 to vector<16x1xf32>
    %525 = arith.addf %521, %524 : vector<16x1xf32>
    %526 = math.rsqrt %525 : vector<16x1xf32>
    %527 = vector.broadcast %526 : vector<16x1xf32> to vector<16x32xf32>
    %528 = arith.mulf %523, %527 : vector<16x32xf32>
    %529 = vector.broadcast %509 : vector<1x32xf32> to vector<16x32xf32>
    %530 = arith.mulf %528, %529 : vector<16x32xf32>
    %531 = vector.broadcast %510 : vector<1x32xf32> to vector<16x32xf32>
    %532 = arith.addf %530, %531 : vector<16x32xf32>
    %c0_205 = arith.constant 0 : index
    %c0_206 = arith.constant 0 : index
    %533 = vector.load %arg35[%c0_205, %c0_206] : memref<32x10xf32, #tpu.memory_space<vmem>>, vector<32x10xf32>
    %cst_207 = arith.constant dense<0.000000e+00> : vector<16x10xf32>
    %534 = tpu.matmul %532, %533, %cst_207 {dimension_numbers = #tpu.dot_dimension_numbers<[1], [0], [0], [1], [0, 0, 1, 1], [], []>} : vector<16x32xf32>, vector<32x10xf32>, vector<16x10xf32> -> vector<16x10xf32>
    %c0_208 = arith.constant 0 : index
    %c0_209 = arith.constant 0 : index
    %535 = vector.load %arg36[%c0_208, %c0_209] : memref<1x10xf32, #tpu.memory_space<vmem>>, vector<1x10xf32>
    %536 = vector.broadcast %535 : vector<1x10xf32> to vector<16x10xf32>
    %537 = arith.addf %534, %536 : vector<16x10xf32>
    %538 = vector.shape_cast %537 : vector<16x10xf32> to vector<2x8x10xf32>
    %c0_210 = arith.constant 0 : index
    %c0_211 = arith.constant 0 : index
    %c0_212 = arith.constant 0 : index
    %539 = vector.load %arg37[%c0_210, %c0_211, %c0_212] : memref<2x8x10xf32, #tpu.memory_space<vmem>>, vector<2x8x10xf32>
    tpu.vector_store %arg37[%c0_210, %c0_211, %c0_212], %538 {strides = array<i32>} : memref<2x8x10xf32, #tpu.memory_space<vmem>>, vector<2x8x10xf32>,
    return
  }
}

</mosaic_0001>

<llo_original>
// kernel: _lambda_.1
$region0: #{_lambda_.1}
  #allocation0 [shape = 'u32[]', space=smem, size = 0x4, offset = 0x4, fixed_abs, tag = 'smem constant byte address 0x4 - core index']
  #allocation1 [shape = 'u32[72,128]{1,0:T(1,128)}', space=vmem, size = 0x9000, scoped, tag = 'internal scratch']
  %s0 = inlined_call_operand.smem [shape: u32[39], index: -1, kind: input, shape index: {}]
  %s1 = sld [smem:[%s0]]
  %s2 = scalar_lea.smem %s0, 1
  %s3 = sld [smem:[%s2]]
  %s4 = scalar_lea.smem %s0, 2
  %s5 = sld [smem:[%s4]]
  %s6 = scalar_lea.smem %s0, 3
  %s7 = sld [smem:[%s6]]
  %s8 = scalar_lea.smem %s0, 4
  %s9 = sld [smem:[%s8]]
  %s10 = scalar_lea.smem %s0, 5
  %s11 = sld [smem:[%s10]]
  %s12 = scalar_lea.smem %s0, 6
  %s13 = sld [smem:[%s12]]
  %s14 = scalar_lea.smem %s0, 7
  %s15 = sld [smem:[%s14]]
  %s16 = scalar_lea.smem %s0, 8
  %s17 = sld [smem:[%s16]]
  %s18 = scalar_lea.smem %s0, 9
  %s19 = sld [smem:[%s18]]
  %s20 = scalar_lea.smem %s0, 10
  %s21 = sld [smem:[%s20]]
  %s22 = scalar_lea.smem %s0, 11
  %s23 = sld [smem:[%s22]]
  %s24 = scalar_lea.smem %s0, 12
  %s25 = sld [smem:[%s24]]
  %s26 = scalar_lea.smem %s0, 13
  %s27 = sld [smem:[%s26]]
  %s28 = scalar_lea.smem %s0, 14
  %s29 = sld [smem:[%s28]]
  %s30 = scalar_lea.smem %s0, 15
  %s31 = sld [smem:[%s30]]
  %s32 = scalar_lea.smem %s0, 16
  %s33 = sld [smem:[%s32]]
  %s34 = scalar_lea.smem %s0, 17
  %s35 = sld [smem:[%s34]]
  %s36 = scalar_lea.smem %s0, 18
  %s37 = sld [smem:[%s36]]
  %s38 = scalar_lea.smem %s0, 19
  %s39 = sld [smem:[%s38]]
  %s40 = scalar_lea.smem %s0, 20
  %s41 = sld [smem:[%s40]]
  %s42 = scalar_lea.smem %s0, 21
  %s43 = sld [smem:[%s42]]
  %s44 = scalar_lea.smem %s0, 22
  %s45 = sld [smem:[%s44]]
  %s46 = scalar_lea.smem %s0, 23
  %s47 = sld [smem:[%s46]]
  %s48 = scalar_lea.smem %s0, 24
  %s49 = sld [smem:[%s48]]
  %s50 = scalar_lea.smem %s0, 25
  %s51 = sld [smem:[%s50]]
  %s52 = scalar_lea.smem %s0, 26
  %s53 = sld [smem:[%s52]]
  %s54 = scalar_lea.smem %s0, 27
  %s55 = sld [smem:[%s54]]
  %s56 = scalar_lea.smem %s0, 28
  %s57 = sld [smem:[%s56]]
  %s58 = scalar_lea.smem %s0, 29
  %s59 = sld [smem:[%s58]]
  %s60 = scalar_lea.smem %s0, 30
  %s61 = sld [smem:[%s60]]
  %s62 = scalar_lea.smem %s0, 31
  %s63 = sld [smem:[%s62]]
  %s64 = scalar_lea.smem %s0, 32
  %s65 = sld [smem:[%s64]]
  %s66 = scalar_lea.smem %s0, 33
  %s67 = sld [smem:[%s66]]
  %s68 = scalar_lea.smem %s0, 34
  %s69 = sld [smem:[%s68]]
  %s70 = scalar_lea.smem %s0, 35
  %s71 = sld [smem:[%s70]]
  %s72 = scalar_lea.smem %s0, 36
  %s73 = sld [smem:[%s72]]
  %s74 = scalar_lea.smem %s0, 37
  %s75 = sld [smem:[%s74]]
  %s76 = scalar_lea.smem %s0, 38
  %s77 = sld [smem:[%s76]]
  %78 = xla_tuple %s75, %s77
  %s79 = sld [smem:[#allocation0]]
  $region166: #{_lambda_.1} parent=0
    _
  %s81 = ssub.s32 1, %s79
  %s82 = scalar_select 0, %s81, %s79
  $region1: #{_lambda_.1} parent=0
    #allocation2 [shape = 'u8[8192]{0}', space=vmem, size = 0x2000, scoped, tag = 'output window, operand 0, single buffered']
    #allocation3 [shape = 's32[1]{0}', space=sflag, size = 0x4, scoped, tag = 'scoped memory for _lambda_.1']
    #allocation4 [shape = 'u8[8192]{0}', space=vmem, size = 0x2000, scoped, tag = 'output window, operand 1, single buffered']
    #allocation5 [shape = 's32[1]{0}', space=sflag, size = 0x4, scoped, tag = 'scoped memory for _lambda_.1']
    %83 = vsyncpa [#allocation3], 0
    %84 = vsyncpa [#allocation5], 0
    // Predicated region
    $region2: #{_lambda_.1} parent=1 // pred_check
      _
    $region3: #{_lambda_.1} parent=1 // pred_check_branch
      %86 = sbr.rel (0) target = $region5
    $region4: #{_lambda_.1} parent=1 // pred_region
      _
    $region5: #{_lambda_.1} parent=1 // pred_fallthru
      _
    // Predicated region
    $region6: #{_lambda_.1} parent=1 // pred_check
      _
    $region7: #{_lambda_.1} parent=1 // pred_check_branch
      %88 = sbr.rel (0) target = $region9
    $region8: #{_lambda_.1} parent=1 // pred_region
      _
    $region9: #{_lambda_.1} parent=1 // pred_fallthru
      _
    // Predicated region
    $region10: #{_lambda_.1} parent=1 // pred_check
      _
    $region11: #{_lambda_.1} parent=1 // pred_check_branch
      %90 = sbr.rel (0) target = $region13
    $region12: #{_lambda_.1} parent=1 // pred_region
      _
    $region13: #{_lambda_.1} parent=1 // pred_fallthru
      _
    // Predicated region
    $region14: #{_lambda_.1} parent=1 // pred_check
      _
    $region15: #{_lambda_.1} parent=1 // pred_check_branch
      %92 = sbr.rel (0) target = $region17
    $region16: #{_lambda_.1} parent=1 // pred_region
      _
    $region17: #{_lambda_.1} parent=1 // pred_fallthru
      _
    // Predicated region
    $region18: #{_lambda_.1} parent=1 // pred_check
      _
    $region19: #{_lambda_.1} parent=1 // pred_check_branch
      %94 = sbr.rel (0) target = $region21
    $region20: #{_lambda_.1} parent=1 // pred_region
      _
    $region21: #{_lambda_.1} parent=1 // pred_fallthru
      _
    // Predicated region
    $region22: #{_lambda_.1} parent=1 // pred_check
      _
    $region23: #{_lambda_.1} parent=1 // pred_check_branch
      %96 = sbr.rel (0) target = $region25
    $region24: #{_lambda_.1} parent=1 // pred_region
      _
    $region25: #{_lambda_.1} parent=1 // pred_fallthru
      _
    // Predicated region
    $region26: #{_lambda_.1} parent=1 // pred_check
      _
    $region27: #{_lambda_.1} parent=1 // pred_check_branch
      %98 = sbr.rel (0) target = $region29
    $region28: #{_lambda_.1} parent=1 // pred_region
      _
    $region29: #{_lambda_.1} parent=1 // pred_fallthru
      _
    // Predicated region
    $region30: #{_lambda_.1} parent=1 // pred_check
      _
    $region31: #{_lambda_.1} parent=1 // pred_check_branch
      %100 = sbr.rel (0) target = $region33
    $region32: #{_lambda_.1} parent=1 // pred_region
      _
    $region33: #{_lambda_.1} parent=1 // pred_fallthru
      _
    // Predicated region
    $region34: #{_lambda_.1} parent=1 // pred_check
      _
    $region35: #{_lambda_.1} parent=1 // pred_check_branch
      %102 = sbr.rel (0) target = $region37
    $region36: #{_lambda_.1} parent=1 // pred_region
      _
    $region37: #{_lambda_.1} parent=1 // pred_fallthru
      _
    // Predicated region
    $region38: #{_lambda_.1} parent=1 // pred_check
      _
    $region39: #{_lambda_.1} parent=1 // pred_check_branch
      %104 = sbr.rel (0) target = $region41
    $region40: #{_lambda_.1} parent=1 // pred_region
      _
    $region41: #{_lambda_.1} parent=1 // pred_fallthru
      _
    // Predicated region
    $region42: #{_lambda_.1} parent=1 // pred_check
      _
    $region43: #{_lambda_.1} parent=1 // pred_check_branch
      %106 = sbr.rel (0) target = $region45
    $region44: #{_lambda_.1} parent=1 // pred_region
      _
    $region45: #{_lambda_.1} parent=1 // pred_fallthru
      _
    // Predicated region
    $region46: #{_lambda_.1} parent=1 // pred_check
      _
    $region47: #{_lambda_.1} parent=1 // pred_check_branch
      %108 = sbr.rel (0) target = $region49
    $region48: #{_lambda_.1} parent=1 // pred_region
      _
    $region49: #{_lambda_.1} parent=1 // pred_fallthru
      _
    // Predicated region
    $region50: #{_lambda_.1} parent=1 // pred_check
      _
    $region51: #{_lambda_.1} parent=1 // pred_check_branch
      %110 = sbr.rel (0) target = $region53
    $region52: #{_lambda_.1} parent=1 // pred_region
      _
    $region53: #{_lambda_.1} parent=1 // pred_fallthru
      _
    // Predicated region
    $region54: #{_lambda_.1} parent=1 // pred_check
      _
    $region55: #{_lambda_.1} parent=1 // pred_check_branch
      %112 = sbr.rel (0) target = $region57
    $region56: #{_lambda_.1} parent=1 // pred_region
      _
    $region57: #{_lambda_.1} parent=1 // pred_fallthru
      _
    // Predicated region
    $region58: #{_lambda_.1} parent=1 // pred_check
      _
    $region59: #{_lambda_.1} parent=1 // pred_check_branch
      %114 = sbr.rel (0) target = $region61
    $region60: #{_lambda_.1} parent=1 // pred_region
      _
    $region61: #{_lambda_.1} parent=1 // pred_fallthru
      _
    // Predicated region
    $region62: #{_lambda_.1} parent=1 // pred_check
      _
    $region63: #{_lambda_.1} parent=1 // pred_check_branch
      %116 = sbr.rel (0) target = $region65
    $region64: #{_lambda_.1} parent=1 // pred_region
      _
    $region65: #{_lambda_.1} parent=1 // pred_fallthru
      _
    // Predicated region
    $region66: #{_lambda_.1} parent=1 // pred_check
      _
    $region67: #{_lambda_.1} parent=1 // pred_check_branch
      %118 = sbr.rel (0) target = $region69
    $region68: #{_lambda_.1} parent=1 // pred_region
      _
    $region69: #{_lambda_.1} parent=1 // pred_fallthru
      _
    // Predicated region
    $region70: #{_lambda_.1} parent=1 // pred_check
      _
    $region71: #{_lambda_.1} parent=1 // pred_check_branch
      %120 = sbr.rel (0) target = $region73
    $region72: #{_lambda_.1} parent=1 // pred_region
      _
    $region73: #{_lambda_.1} parent=1 // pred_fallthru
      _
    // Predicated region
    $region74: #{_lambda_.1} parent=1 // pred_check
      _
    $region75: #{_lambda_.1} parent=1 // pred_check_branch
      %122 = sbr.rel (0) target = $region77
    $region76: #{_lambda_.1} parent=1 // pred_region
      _
    $region77: #{_lambda_.1} parent=1 // pred_fallthru
      _
    // Predicated region
    $region78: #{_lambda_.1} parent=1 // pred_check
      _
    $region79: #{_lambda_.1} parent=1 // pred_check_branch
      %124 = sbr.rel (0) target = $region81
    $region80: #{_lambda_.1} parent=1 // pred_region
      _
    $region81: #{_lambda_.1} parent=1 // pred_fallthru
      _
    // Predicated region
    $region82: #{_lambda_.1} parent=1 // pred_check
      _
    $region83: #{_lambda_.1} parent=1 // pred_check_branch
      %126 = sbr.rel (0) target = $region85
    $region84: #{_lambda_.1} parent=1 // pred_region
      _
    $region85: #{_lambda_.1} parent=1 // pred_fallthru
      _
    // Predicated region
    $region86: #{_lambda_.1} parent=1 // pred_check
      _
    $region87: #{_lambda_.1} parent=1 // pred_check_branch
      %128 = sbr.rel (0) target = $region89
    $region88: #{_lambda_.1} parent=1 // pred_region
      _
    $region89: #{_lambda_.1} parent=1 // pred_fallthru
      _
    // Predicated region
    $region90: #{_lambda_.1} parent=1 // pred_check
      _
    $region91: #{_lambda_.1} parent=1 // pred_check_branch
      %130 = sbr.rel (0) target = $region93
    $region92: #{_lambda_.1} parent=1 // pred_region
      _
    $region93: #{_lambda_.1} parent=1 // pred_fallthru
      _
    // Predicated region
    $region94: #{_lambda_.1} parent=1 // pred_check
      _
    $region95: #{_lambda_.1} parent=1 // pred_check_branch
      %132 = sbr.rel (0) target = $region97
    $region96: #{_lambda_.1} parent=1 // pred_region
      _
    $region97: #{_lambda_.1} parent=1 // pred_fallthru
      _
    // Predicated region
    $region98: #{_lambda_.1} parent=1 // pred_check
      _
    $region99: #{_lambda_.1} parent=1 // pred_check_branch
      %134 = sbr.rel (0) target = $region101
    $region100: #{_lambda_.1} parent=1 // pred_region
      _
    $region101: #{_lambda_.1} parent=1 // pred_fallthru
      _
    // Predicated region
    $region102: #{_lambda_.1} parent=1 // pred_check
      _
    $region103: #{_lambda_.1} parent=1 // pred_check_branch
      %136 = sbr.rel (0) target = $region105
    $region104: #{_lambda_.1} parent=1 // pred_region
      _
    $region105: #{_lambda_.1} parent=1 // pred_fallthru
      _
    // Predicated region
    $region106: #{_lambda_.1} parent=1 // pred_check
      _
    $region107: #{_lambda_.1} parent=1 // pred_check_branch
      %138 = sbr.rel (0) target = $region109
    $region108: #{_lambda_.1} parent=1 // pred_region
      _
    $region109: #{_lambda_.1} parent=1 // pred_fallthru
      _
    // Predicated region
    $region110: #{_lambda_.1} parent=1 // pred_check
      _
    $region111: #{_lambda_.1} parent=1 // pred_check_branch
      %140 = sbr.rel (0) target = $region113
    $region112: #{_lambda_.1} parent=1 // pred_region
      _
    $region113: #{_lambda_.1} parent=1 // pred_fallthru
      _
    // Predicated region
    $region114: #{_lambda_.1} parent=1 // pred_check
      _
    $region115: #{_lambda_.1} parent=1 // pred_check_branch
      %142 = sbr.rel (0) target = $region117
    $region116: #{_lambda_.1} parent=1 // pred_region
      _
    $region117: #{_lambda_.1} parent=1 // pred_fallthru
      _
    // Predicated region
    $region118: #{_lambda_.1} parent=1 // pred_check
      _
    $region119: #{_lambda_.1} parent=1 // pred_check_branch
      %144 = sbr.rel (0) target = $region121
    $region120: #{_lambda_.1} parent=1 // pred_region
      _
    $region121: #{_lambda_.1} parent=1 // pred_fallthru
      _
    // Predicated region
    $region122: #{_lambda_.1} parent=1 // pred_check
      _
    $region123: #{_lambda_.1} parent=1 // pred_check_branch
      %146 = sbr.rel (0) target = $region125
    $region124: #{_lambda_.1} parent=1 // pred_region
      _
    $region125: #{_lambda_.1} parent=1 // pred_fallthru
      _
    // Predicated region
    $region126: #{_lambda_.1} parent=1 // pred_check
      _
    $region127: #{_lambda_.1} parent=1 // pred_check_branch
      %148 = sbr.rel (0) target = $region129
    $region128: #{_lambda_.1} parent=1 // pred_region
      _
    $region129: #{_lambda_.1} parent=1 // pred_fallthru
      _
    // Predicated region
    $region130: #{_lambda_.1} parent=1 // pred_check
      _
    $region131: #{_lambda_.1} parent=1 // pred_check_branch
      %150 = sbr.rel (0) target = $region133
    $region132: #{_lambda_.1} parent=1 // pred_region
      _
    $region133: #{_lambda_.1} parent=1 // pred_fallthru
      _
    // Predicated region
    $region134: #{_lambda_.1} parent=1 // pred_check
      _
    $region135: #{_lambda_.1} parent=1 // pred_check_branch
      %152 = sbr.rel (0) target = $region137
    $region136: #{_lambda_.1} parent=1 // pred_region
      _
    $region137: #{_lambda_.1} parent=1 // pred_fallthru
      _
    // Predicated region
    $region138: #{_lambda_.1} parent=1 // pred_check
      _
    $region139: #{_lambda_.1} parent=1 // pred_check_branch
      %154 = sbr.rel (0) target = $region141
    $region140: #{_lambda_.1} parent=1 // pred_region
      _
    $region141: #{_lambda_.1} parent=1 // pred_fallthru
      _
    // Predicated region
    $region142: #{_lambda_.1} parent=1 // pred_check
      _
    $region143: #{_lambda_.1} parent=1 // pred_check_branch
      %156 = sbr.rel (0) target = $region145
    $region144: #{_lambda_.1} parent=1 // pred_region
      _
    $region145: #{_lambda_.1} parent=1 // pred_fallthru
      _
    // Predicated region
    $region146: #{_lambda_.1} parent=1 // pred_check
      _
    $region147: #{_lambda_.1} parent=1 // pred_check_branch
      %158 = sbr.rel (0) target = $region149
    $region148: #{_lambda_.1} parent=1 // pred_region
      _
    $region149: #{_lambda_.1} parent=1 // pred_fallthru
      _
    %v159 = vld [vmem:[%s1] sm:$0x3f]
    %v160 = vld [vmem:[%s7] sm:$0xff]
    %v161 = vld [vmem:[%s7 + $0x8] sm:$0xff]
    %v162 = vld [vmem:[%s9] sm:$0x1]
    %v164 = vperm.slane %v162, 0
    %vm166 = vcmask 130048
    %v168 = vsel %vm166, %v159, 0
    %170 = vmatpush.msra.mxu0 0.0
    %171 = vmatpush.msra.mxu0 0.0
    %172 = vmatpush.msra.mxu0 0.0
    %173 = vmatpush.msra.mxu0 0.0
    %174 = vmatpush.msra.mxu0 0.0
    %175 = vmatpush.msra.mxu0 0.0
    %176 = vmatpush.msra.mxu0 0.0
    %177 = vmatpush.msra.mxu0 0.0
    %178 = vmatpush.msra.mxu0 0.0
    %179 = vmatpush.msra.mxu0 0.0
    %180 = vmatpush.msra.mxu0 0.0
    %181 = vmatpush.msra.mxu0 0.0
    %182 = vmatpush.msra.mxu0 0.0
    %183 = vmatpush.msra.mxu0 0.0
    %184 = vmatpush.msra.mxu0 %v161
    %185 = vmatpush.msra.mxu0 %v160
    %186 = vmatmul.f32.gmra.mxu0 %v168
    %v187 = vpop.f32.mrf.mxu0
    %v188 = vadd.f32 %v164, %v187
    %189 = vdwg.mxu0
    %vm190 = vcmask 259072
    %191 = vst.msk [vmem:[#allocation4] sm:$0x3f] %vm190, %v188
    %v192 = vld [vmem:[%s3] sm:$0x3]
    %vm193 = vcmask 254976
    %194 = vst.msk [vmem:[#allocation4 + $0x6] sm:$0x3] %vm193, %v192
    %s195 = scalar_lea.vmem %s1, 8
    %v196 = vld [vmem:[%s195] sm:$0x3f]
    %v197 = vld [vmem:[%s7] sm:$0xff]
    %v198 = vld [vmem:[%s7 + $0x8] sm:$0xff]
    %v199 = vld [vmem:[%s9] sm:$0x1]
    %v201 = vperm.slane %v199, 0
    %v204 = vsel %vm166, %v196, 0
    %206 = vmatpush.msra.mxu0 0.0
    %207 = vmatpush.msra.mxu0 0.0
    %208 = vmatpush.msra.mxu0 0.0
    %209 = vmatpush.msra.mxu0 0.0
    %210 = vmatpush.msra.mxu0 0.0
    %211 = vmatpush.msra.mxu0 0.0
    %212 = vmatpush.msra.mxu0 0.0
    %213 = vmatpush.msra.mxu0 0.0
    %214 = vmatpush.msra.mxu0 0.0
    %215 = vmatpush.msra.mxu0 0.0
    %216 = vmatpush.msra.mxu0 0.0
    %217 = vmatpush.msra.mxu0 0.0
    %218 = vmatpush.msra.mxu0 0.0
    %219 = vmatpush.msra.mxu0 0.0
    %220 = vmatpush.msra.mxu0 %v198
    %221 = vmatpush.msra.mxu0 %v197
    %222 = vmatmul.f32.gmra.mxu0 %v204
    %v223 = vpop.f32.mrf.mxu0
    %v224 = vadd.f32 %v201, %v223
    %225 = vdwg.mxu0
    %s226 = scalar_lea.vmem [#allocation4], 8
    %227 = vst.msk [vmem:[%s226] sm:$0x3f] %vm190, %v224
    %s228 = scalar_lea.vmem %s3, 2
    %v229 = vld [vmem:[%s228] sm:$0x3]
    %230 = vst.msk [vmem:[%s226 + $0x6] sm:$0x3] %vm193, %v229
    %v231 = vld [vmem:[#allocation4] sm:$0xff]
    %v232 = vld [vmem:[#allocation4 + $0x8] sm:$0xff]
    %v233 = vld [vmem:[%s5] sm:$0x1]
    %v234 = vld [vmem:[%s5 + $0x1] sm:$0x1]
    %v235 = vsub.f32 1.0, %v233
    %v236 = vsub.f32 1.0, %v234
    %v237 = vmul.f32 %v235, -1e+09
    %v238 = vmul.f32 %v236, -1e+09
    %v239 = vld [vmem:[%s11] sm:$0xff]
    %v240 = vld [vmem:[%s11 + $0x8] sm:$0xff]
    %v241 = vld [vmem:[%s11 + $0x10] sm:$0xff]
    %v242 = vld [vmem:[%s11 + $0x18] sm:$0xff]
    %v243 = vld [vmem:[%s13] sm:$0x1]
    %v244 = vld [vmem:[%s15] sm:$0xff]
    %v245 = vld [vmem:[%s15 + $0x8] sm:$0xff]
    %v246 = vld [vmem:[%s15 + $0x10] sm:$0xff]
    %v247 = vld [vmem:[%s15 + $0x18] sm:$0xff]
    %v248 = vld [vmem:[%s17] sm:$0x1]
    %v250 = vperm.slane %v243, 0
    %vm252 = vcmask 261120
    %v254 = vsel %vm252, %v231, 0
    %v257 = vsel %vm252, %v232, 0
    %259 = vmatpush.msra.mxu0 0.0
    %260 = vmatpush.msra.mxu0 0.0
    %261 = vmatpush.msra.mxu0 0.0
    %262 = vmatpush.msra.mxu0 0.0
    %263 = vmatpush.msra.mxu0 0.0
    %264 = vmatpush.msra.mxu0 0.0
    %265 = vmatpush.msra.mxu0 0.0
    %266 = vmatpush.msra.mxu0 0.0
    %267 = vmatpush.msra.mxu0 0.0
    %268 = vmatpush.msra.mxu0 0.0
    %269 = vmatpush.msra.mxu0 0.0
    %270 = vmatpush.msra.mxu0 0.0
    %271 = vmatpush.msra.mxu0 %v242
    %272 = vmatpush.msra.mxu0 %v241
    %273 = vmatpush.msra.mxu0 %v240
    %274 = vmatpush.msra.mxu0 %v239
    %275 = vmatmul.f32.gmra.mxu0 %v254
    %v276 = vpop.f32.mrf.mxu0
    %v277 = vadd.f32 %v250, %v276
    %278 = vmatmul.f32.gmra.mxu0 %v257
    %v279 = vpop.f32.mrf.mxu0
    %v280 = vadd.f32 %v250, %v279
    %281 = vdwg.mxu0
    %283 = vrot.lane.b32.xlu0 %v277, 96
    %v284 = vpop.permute.xlu0 %283
    %vm285 = vcmask 64512
    %v286 = vsel %vm285, %v277, 0
    %v288 = vsel %vm285, %v284, 0
    %290 = vmatpush.xpose.msra.mxu0 0.0
    %291 = vmatpush.xpose.msra.mxu0 0.0
    %292 = vmatpush.xpose.msra.mxu0 0.0
    %293 = vmatpush.xpose.msra.mxu0 0.0
    %294 = vmatpush.xpose.msra.mxu0 0.0
    %295 = vmatpush.xpose.msra.mxu0 0.0
    %296 = vmatpush.xpose.msra.mxu0 0.0
    %297 = vmatpush.xpose.msra.mxu0 0.0
    %298 = vmatpush.xpose.msra.mxu0 0.0
    %299 = vmatpush.xpose.msra.mxu0 0.0
    %300 = vmatpush.xpose.msra.mxu0 0.0
    %301 = vmatpush.xpose.msra.mxu0 0.0
    %302 = vmatpush.xpose.msra.mxu0 0.0
    %303 = vmatpush.xpose.msra.mxu0 0.0
    %304 = vmatpush.xpose.msra.mxu0 0.0
    %305 = vmatpush.xpose.msra.mxu0 %v288
    %306 = vmatmul.f32.gmra.mxu0 %v286
    %v307 = vpop.f32.mrf.mxu0
    %v308 = vadd.f32 0.0, %v307
    %309 = vdwg.mxu0
    %311 = vrot.lane.b32.xlu0 %v280, 96
    %v312 = vpop.permute.xlu0 %311
    %v313 = vsel %vm285, %v280, 0
    %v315 = vsel %vm285, %v312, 0
    %317 = vmatpush.xpose.msra.mxu0 0.0
    %318 = vmatpush.xpose.msra.mxu0 0.0
    %319 = vmatpush.xpose.msra.mxu0 0.0
    %320 = vmatpush.xpose.msra.mxu0 0.0
    %321 = vmatpush.xpose.msra.mxu0 0.0
    %322 = vmatpush.xpose.msra.mxu0 0.0
    %323 = vmatpush.xpose.msra.mxu0 0.0
    %324 = vmatpush.xpose.msra.mxu0 0.0
    %325 = vmatpush.xpose.msra.mxu0 0.0
    %326 = vmatpush.xpose.msra.mxu0 0.0
    %327 = vmatpush.xpose.msra.mxu0 0.0
    %328 = vmatpush.xpose.msra.mxu0 0.0
    %329 = vmatpush.xpose.msra.mxu0 0.0
    %330 = vmatpush.xpose.msra.mxu0 0.0
    %331 = vmatpush.xpose.msra.mxu0 0.0
    %332 = vmatpush.xpose.msra.mxu0 %v315
    %333 = vmatmul.f32.gmra.mxu0 %v313
    %v334 = vpop.f32.mrf.mxu0
    %v335 = vadd.f32 0.0, %v334
    %336 = vdwg.mxu0
    %v337 = vmul.f32 %v308, 0.35355338
    %v338 = vmul.f32 %v335, 0.35355338
    %v341 = vperm.slane %v237, 0
    %v342 = vperm.slane %v238, 0
    %v345 = vadd.f32 %v337, %v341
    %v346 = vadd.f32 %v338, %v342
    %v347 = vsel %vm285, %v345, -inf
    %348 = vmax.xlane.f32.xlu0 %v347
    %v349 = vpop.xlane.xlu0 %348
    %v350 = vsel %vm285, %v346, -inf
    %351 = vmax.xlane.f32.xlu0 %v350
    %v352 = vpop.xlane.xlu0 %351
    %v353 = vsub.f32 %v345, %v349
    %v354 = vsub.f32 %v346, %v352
    %v355 = vmul.f32 %v353, 1.442695
    %v356 = vpow.pop %v355
    %v357 = vmul.f32 %v354, 1.442695
    %v358 = vpow.pop %v357
    %v359 = vsel %vm285, %v356, 0.0
    %360 = vadd.xlane.f32.xlu0 %v359
    %v361 = vpop.xlane.xlu0 %360
    %v362 = vsel %vm285, %v358, 0.0
    %363 = vadd.xlane.f32.xlu0 %v362
    %v364 = vpop.xlane.xlu0 %363
    %v365 = vrcp.pop %v361
    %v366 = vrcp.pop %v364
    %v367 = vmul.f32 %v356, %v365
    %v368 = vmul.f32 %v358, %v366
    %369 = vrot.lane.b32.xlu0 %v277, 64
    %v370 = vpop.permute.xlu0 %369
    %v373 = vsel %vm285, %v367, 0
    %375 = vmatpush.msra.mxu0 0.0
    %376 = vmatpush.msra.mxu0 0.0
    %377 = vmatpush.msra.mxu0 0.0
    %378 = vmatpush.msra.mxu0 0.0
    %379 = vmatpush.msra.mxu0 0.0
    %380 = vmatpush.msra.mxu0 0.0
    %381 = vmatpush.msra.mxu0 0.0
    %382 = vmatpush.msra.mxu0 0.0
    %383 = vmatpush.msra.mxu0 0.0
    %384 = vmatpush.msra.mxu0 0.0
    %385 = vmatpush.msra.mxu0 0.0
    %386 = vmatpush.msra.mxu0 0.0
    %387 = vmatpush.msra.mxu0 0.0
    %388 = vmatpush.msra.mxu0 0.0
    %389 = vmatpush.msra.mxu0 0.0
    %390 = vmatpush.msra.mxu0 %v370
    %391 = vmatmul.f32.gmra.mxu0 %v373
    %v392 = vpop.f32.mrf.mxu0
    %v393 = vadd.f32 0.0, %v392
    %394 = vdwg.mxu0
    %395 = vrot.lane.b32.xlu0 %v280, 64
    %v396 = vpop.permute.xlu0 %395
    %v399 = vsel %vm285, %v368, 0
    %401 = vmatpush.msra.mxu0 0.0
    %402 = vmatpush.msra.mxu0 0.0
    %403 = vmatpush.msra.mxu0 0.0
    %404 = vmatpush.msra.mxu0 0.0
    %405 = vmatpush.msra.mxu0 0.0
    %406 = vmatpush.msra.mxu0 0.0
    %407 = vmatpush.msra.mxu0 0.0
    %408 = vmatpush.msra.mxu0 0.0
    %409 = vmatpush.msra.mxu0 0.0
    %410 = vmatpush.msra.mxu0 0.0
    %411 = vmatpush.msra.mxu0 0.0
    %412 = vmatpush.msra.mxu0 0.0
    %413 = vmatpush.msra.mxu0 0.0
    %414 = vmatpush.msra.mxu0 0.0
    %415 = vmatpush.msra.mxu0 0.0
    %416 = vmatpush.msra.mxu0 %v396
    %417 = vmatmul.f32.gmra.mxu0 %v399
    %v418 = vpop.f32.mrf.mxu0
    %v419 = vadd.f32 0.0, %v418
    %420 = vdwg.mxu0
    %421 = vrot.lane.b32.xlu0 %v277, 120
    %v422 = vpop.permute.xlu0 %421
    %423 = vrot.lane.b32.xlu0 %v277, 88
    %v424 = vpop.permute.xlu0 %423
    %v425 = vsel %vm285, %v422, 0
    %v427 = vsel %vm285, %v424, 0
    %429 = vmatpush.xpose.msra.mxu0 0.0
    %430 = vmatpush.xpose.msra.mxu0 0.0
    %431 = vmatpush.xpose.msra.mxu0 0.0
    %432 = vmatpush.xpose.msra.mxu0 0.0
    %433 = vmatpush.xpose.msra.mxu0 0.0
    %434 = vmatpush.xpose.msra.mxu0 0.0
    %435 = vmatpush.xpose.msra.mxu0 0.0
    %436 = vmatpush.xpose.msra.mxu0 0.0
    %437 = vmatpush.xpose.msra.mxu0 0.0
    %438 = vmatpush.xpose.msra.mxu0 0.0
    %439 = vmatpush.xpose.msra.mxu0 0.0
    %440 = vmatpush.xpose.msra.mxu0 0.0
    %441 = vmatpush.xpose.msra.mxu0 0.0
    %442 = vmatpush.xpose.msra.mxu0 0.0
    %443 = vmatpush.xpose.msra.mxu0 0.0
    %444 = vmatpush.xpose.msra.mxu0 %v427
    %445 = vmatmul.f32.gmra.mxu0 %v425
    %v446 = vpop.f32.mrf.mxu0
    %v447 = vadd.f32 0.0, %v446
    %448 = vdwg.mxu0
    %449 = vrot.lane.b32.xlu0 %v280, 120
    %v450 = vpop.permute.xlu0 %449
    %451 = vrot.lane.b32.xlu0 %v280, 88
    %v452 = vpop.permute.xlu0 %451
    %v453 = vsel %vm285, %v450, 0
    %v455 = vsel %vm285, %v452, 0
    %457 = vmatpush.xpose.msra.mxu0 0.0
    %458 = vmatpush.xpose.msra.mxu0 0.0
    %459 = vmatpush.xpose.msra.mxu0 0.0
    %460 = vmatpush.xpose.msra.mxu0 0.0
    %461 = vmatpush.xpose.msra.mxu0 0.0
    %462 = vmatpush.xpose.msra.mxu0 0.0
    %463 = vmatpush.xpose.msra.mxu0 0.0
    %464 = vmatpush.xpose.msra.mxu0 0.0
    %465 = vmatpush.xpose.msra.mxu0 0.0
    %466 = vmatpush.xpose.msra.mxu0 0.0
    %467 = vmatpush.xpose.msra.mxu0 0.0
    %468 = vmatpush.xpose.msra.mxu0 0.0
    %469 = vmatpush.xpose.msra.mxu0 0.0
    %470 = vmatpush.xpose.msra.mxu0 0.0
    %471 = vmatpush.xpose.msra.mxu0 0.0
    %472 = vmatpush.xpose.msra.mxu0 %v455
    %473 = vmatmul.f32.gmra.mxu0 %v453
    %v474 = vpop.f32.mrf.mxu0
    %v475 = vadd.f32 0.0, %v474
    %476 = vdwg.mxu0
    %v477 = vmul.f32 %v447, 0.35355338
    %v478 = vmul.f32 %v475, 0.35355338
    %v479 = vadd.f32 %v477, %v341
    %v480 = vadd.f32 %v478, %v342
    %v481 = vsel %vm285, %v479, -inf
    %482 = vmax.xlane.f32.xlu0 %v481
    %v483 = vpop.xlane.xlu0 %482
    %v484 = vsel %vm285, %v480, -inf
    %485 = vmax.xlane.f32.xlu0 %v484
    %v486 = vpop.xlane.xlu0 %485
    %v487 = vsub.f32 %v479, %v483
    %v488 = vsub.f32 %v480, %v486
    %v489 = vmul.f32 %v487, 1.442695
    %v490 = vpow.pop %v489
    %v491 = vmul.f32 %v488, 1.442695
    %v492 = vpow.pop %v491
    %v493 = vsel %vm285, %v490, 0.0
    %494 = vadd.xlane.f32.xlu0 %v493
    %v495 = vpop.xlane.xlu0 %494
    %v496 = vsel %vm285, %v492, 0.0
    %497 = vadd.xlane.f32.xlu0 %v496
    %v498 = vpop.xlane.xlu0 %497
    %v499 = vrcp.pop %v495
    %v500 = vrcp.pop %v498
    %v501 = vmul.f32 %v490, %v499
    %v502 = vmul.f32 %v492, %v500
    %503 = vrot.lane.b32.xlu0 %v277, 56
    %v504 = vpop.permute.xlu0 %503
    %v507 = vsel %vm285, %v501, 0
    %509 = vmatpush.msra.mxu0 0.0
    %510 = vmatpush.msra.mxu0 0.0
    %511 = vmatpush.msra.mxu0 0.0
    %512 = vmatpush.msra.mxu0 0.0
    %513 = vmatpush.msra.mxu0 0.0
    %514 = vmatpush.msra.mxu0 0.0
    %515 = vmatpush.msra.mxu0 0.0
    %516 = vmatpush.msra.mxu0 0.0
    %517 = vmatpush.msra.mxu0 0.0
    %518 = vmatpush.msra.mxu0 0.0
    %519 = vmatpush.msra.mxu0 0.0
    %520 = vmatpush.msra.mxu0 0.0
    %521 = vmatpush.msra.mxu0 0.0
    %522 = vmatpush.msra.mxu0 0.0
    %523 = vmatpush.msra.mxu0 0.0
    %524 = vmatpush.msra.mxu0 %v504
    %525 = vmatmul.f32.gmra.mxu0 %v507
    %v526 = vpop.f32.mrf.mxu0
    %v527 = vadd.f32 0.0, %v526
    %528 = vdwg.mxu0
    %529 = vrot.lane.b32.xlu0 %v280, 56
    %v530 = vpop.permute.xlu0 %529
    %v533 = vsel %vm285, %v502, 0
    %535 = vmatpush.msra.mxu0 0.0
    %536 = vmatpush.msra.mxu0 0.0
    %537 = vmatpush.msra.mxu0 0.0
    %538 = vmatpush.msra.mxu0 0.0
    %539 = vmatpush.msra.mxu0 0.0
    %540 = vmatpush.msra.mxu0 0.0
    %541 = vmatpush.msra.mxu0 0.0
    %542 = vmatpush.msra.mxu0 0.0
    %543 = vmatpush.msra.mxu0 0.0
    %544 = vmatpush.msra.mxu0 0.0
    %545 = vmatpush.msra.mxu0 0.0
    %546 = vmatpush.msra.mxu0 0.0
    %547 = vmatpush.msra.mxu0 0.0
    %548 = vmatpush.msra.mxu0 0.0
    %549 = vmatpush.msra.mxu0 0.0
    %550 = vmatpush.msra.mxu0 %v530
    %551 = vmatmul.f32.gmra.mxu0 %v533
    %v552 = vpop.f32.mrf.mxu0
    %v553 = vadd.f32 0.0, %v552
    %554 = vdwg.mxu0
    %v556 = vsel %vm285, %v527, 0
    %v559 = vsel %vm285, %v553, 0
    %561 = vmatpush.msra.mxu0 0.0
    %562 = vmatpush.msra.mxu0 0.0
    %563 = vmatpush.msra.mxu0 0.0
    %564 = vmatpush.msra.mxu0 0.0
    %565 = vmatpush.msra.mxu0 0.0
    %566 = vmatpush.msra.mxu0 0.0
    %567 = vmatpush.msra.mxu0 0.0
    %568 = vmatpush.msra.mxu0 0.0
    %569 = vmatpush.msra.mxu0 0.0
    %570 = vmatpush.msra.mxu0 0.0
    %571 = vmatpush.msra.mxu0 0.0
    %572 = vmatpush.msra.mxu0 0.0
    %573 = vmatpush.msra.mxu0 0.0
    %574 = vmatpush.msra.mxu0 0.0
    %575 = vmatpush.msra.mxu0 0.0
    %576 = vmatpush.msra.mxu0 %v245
    %577 = vmatmul.f32.gmra.mxu0 %v556
    %v578 = vpop.f32.mrf.mxu0
    %v579 = vadd.f32 0.0, %v578
    %580 = vmatmul.f32.gmra.mxu0 %v559
    %v581 = vpop.f32.mrf.mxu0
    %v582 = vadd.f32 0.0, %v581
    %583 = vdwg.mxu0
    %v585 = vsel %vm285, %v393, 0
    %v588 = vsel %vm285, %v419, 0
    %590 = vmatpush.msra.mxu0 0.0
    %591 = vmatpush.msra.mxu0 0.0
    %592 = vmatpush.msra.mxu0 0.0
    %593 = vmatpush.msra.mxu0 0.0
    %594 = vmatpush.msra.mxu0 0.0
    %595 = vmatpush.msra.mxu0 0.0
    %596 = vmatpush.msra.mxu0 0.0
    %597 = vmatpush.msra.mxu0 0.0
    %598 = vmatpush.msra.mxu0 0.0
    %599 = vmatpush.msra.mxu0 0.0
    %600 = vmatpush.msra.mxu0 0.0
    %601 = vmatpush.msra.mxu0 0.0
    %602 = vmatpush.msra.mxu0 0.0
    %603 = vmatpush.msra.mxu0 0.0
    %604 = vmatpush.msra.mxu0 0.0
    %605 = vmatpush.msra.mxu0 %v244
    %606 = vmatmul.f32.gmra.mxu0 %v585
    %v607 = vpop.f32.mrf.mxu0
    %v608 = vadd.f32 %v579, %v607
    %609 = vmatmul.f32.gmra.mxu0 %v588
    %v610 = vpop.f32.mrf.mxu0
    %v611 = vadd.f32 %v582, %v610
    %612 = vdwg.mxu0
    %613 = vrot.lane.b32.xlu0 %v277, 112
    %v614 = vpop.permute.xlu0 %613
    %615 = vrot.lane.b32.xlu0 %v277, 80
    %v616 = vpop.permute.xlu0 %615
    %v617 = vsel %vm285, %v614, 0
    %v619 = vsel %vm285, %v616, 0
    %621 = vmatpush.xpose.msra.mxu0 0.0
    %622 = vmatpush.xpose.msra.mxu0 0.0
    %623 = vmatpush.xpose.msra.mxu0 0.0
    %624 = vmatpush.xpose.msra.mxu0 0.0
    %625 = vmatpush.xpose.msra.mxu0 0.0
    %626 = vmatpush.xpose.msra.mxu0 0.0
    %627 = vmatpush.xpose.msra.mxu0 0.0
    %628 = vmatpush.xpose.msra.mxu0 0.0
    %629 = vmatpush.xpose.msra.mxu0 0.0
    %630 = vmatpush.xpose.msra.mxu0 0.0
    %631 = vmatpush.xpose.msra.mxu0 0.0
    %632 = vmatpush.xpose.msra.mxu0 0.0
    %633 = vmatpush.xpose.msra.mxu0 0.0
    %634 = vmatpush.xpose.msra.mxu0 0.0
    %635 = vmatpush.xpose.msra.mxu0 0.0
    %636 = vmatpush.xpose.msra.mxu0 %v619
    %637 = vmatmul.f32.gmra.mxu0 %v617
    %v638 = vpop.f32.mrf.mxu0
    %v639 = vadd.f32 0.0, %v638
    %640 = vdwg.mxu0
    %641 = vrot.lane.b32.xlu0 %v280, 112
    %v642 = vpop.permute.xlu0 %641
    %643 = vrot.lane.b32.xlu0 %v280, 80
    %v644 = vpop.permute.xlu0 %643
    %v645 = vsel %vm285, %v642, 0
    %v647 = vsel %vm285, %v644, 0
    %649 = vmatpush.xpose.msra.mxu0 0.0
    %650 = vmatpush.xpose.msra.mxu0 0.0
    %651 = vmatpush.xpose.msra.mxu0 0.0
    %652 = vmatpush.xpose.msra.mxu0 0.0
    %653 = vmatpush.xpose.msra.mxu0 0.0
    %654 = vmatpush.xpose.msra.mxu0 0.0
    %655 = vmatpush.xpose.msra.mxu0 0.0
    %656 = vmatpush.xpose.msra.mxu0 0.0
    %657 = vmatpush.xpose.msra.mxu0 0.0
    %658 = vmatpush.xpose.msra.mxu0 0.0
    %659 = vmatpush.xpose.msra.mxu0 0.0
    %660 = vmatpush.xpose.msra.mxu0 0.0
    %661 = vmatpush.xpose.msra.mxu0 0.0
    %662 = vmatpush.xpose.msra.mxu0 0.0
    %663 = vmatpush.xpose.msra.mxu0 0.0
    %664 = vmatpush.xpose.msra.mxu0 %v647
    %665 = vmatmul.f32.gmra.mxu0 %v645
    %v666 = vpop.f32.mrf.mxu0
    %v667 = vadd.f32 0.0, %v666
    %668 = vdwg.mxu0
    %v669 = vmul.f32 %v639, 0.35355338
    %v670 = vmul.f32 %v667, 0.35355338
    %v671 = vadd.f32 %v669, %v341
    %v672 = vadd.f32 %v670, %v342
    %v673 = vsel %vm285, %v671, -inf
    %674 = vmax.xlane.f32.xlu0 %v673
    %v675 = vpop.xlane.xlu0 %674
    %v676 = vsel %vm285, %v672, -inf
    %677 = vmax.xlane.f32.xlu0 %v676
    %v678 = vpop.xlane.xlu0 %677
    %v679 = vsub.f32 %v671, %v675
    %v680 = vsub.f32 %v672, %v678
    %v681 = vmul.f32 %v679, 1.442695
    %v682 = vpow.pop %v681
    %v683 = vmul.f32 %v680, 1.442695
    %v684 = vpow.pop %v683
    %v685 = vsel %vm285, %v682, 0.0
    %686 = vadd.xlane.f32.xlu0 %v685
    %v687 = vpop.xlane.xlu0 %686
    %v688 = vsel %vm285, %v684, 0.0
    %689 = vadd.xlane.f32.xlu0 %v688
    %v690 = vpop.xlane.xlu0 %689
    %v691 = vrcp.pop %v687
    %v692 = vrcp.pop %v690
    %v693 = vmul.f32 %v682, %v691
    %v694 = vmul.f32 %v684, %v692
    %695 = vrot.lane.b32.xlu0 %v277, 48
    %v696 = vpop.permute.xlu0 %695
    %v699 = vsel %vm285, %v693, 0
    %701 = vmatpush.msra.mxu0 0.0
    %702 = vmatpush.msra.mxu0 0.0
    %703 = vmatpush.msra.mxu0 0.0
    %704 = vmatpush.msra.mxu0 0.0
    %705 = vmatpush.msra.mxu0 0.0
    %706 = vmatpush.msra.mxu0 0.0
    %707 = vmatpush.msra.mxu0 0.0
    %708 = vmatpush.msra.mxu0 0.0
    %709 = vmatpush.msra.mxu0 0.0
    %710 = vmatpush.msra.mxu0 0.0
    %711 = vmatpush.msra.mxu0 0.0
    %712 = vmatpush.msra.mxu0 0.0
    %713 = vmatpush.msra.mxu0 0.0
    %714 = vmatpush.msra.mxu0 0.0
    %715 = vmatpush.msra.mxu0 0.0
    %716 = vmatpush.msra.mxu0 %v696
    %717 = vmatmul.f32.gmra.mxu0 %v699
    %v718 = vpop.f32.mrf.mxu0
    %v719 = vadd.f32 0.0, %v718
    %720 = vdwg.mxu0
    %721 = vrot.lane.b32.xlu0 %v280, 48
    %v722 = vpop.permute.xlu0 %721
    %v725 = vsel %vm285, %v694, 0
    %727 = vmatpush.msra.mxu0 0.0
    %728 = vmatpush.msra.mxu0 0.0
    %729 = vmatpush.msra.mxu0 0.0
    %730 = vmatpush.msra.mxu0 0.0
    %731 = vmatpush.msra.mxu0 0.0
    %732 = vmatpush.msra.mxu0 0.0
    %733 = vmatpush.msra.mxu0 0.0
    %734 = vmatpush.msra.mxu0 0.0
    %735 = vmatpush.msra.mxu0 0.0
    %736 = vmatpush.msra.mxu0 0.0
    %737 = vmatpush.msra.mxu0 0.0
    %738 = vmatpush.msra.mxu0 0.0
    %739 = vmatpush.msra.mxu0 0.0
    %740 = vmatpush.msra.mxu0 0.0
    %741 = vmatpush.msra.mxu0 0.0
    %742 = vmatpush.msra.mxu0 %v722
    %743 = vmatmul.f32.gmra.mxu0 %v725
    %v744 = vpop.f32.mrf.mxu0
    %v745 = vadd.f32 0.0, %v744
    %746 = vdwg.mxu0
    %v748 = vsel %vm285, %v719, 0
    %v751 = vsel %vm285, %v745, 0
    %753 = vmatpush.msra.mxu0 0.0
    %754 = vmatpush.msra.mxu0 0.0
    %755 = vmatpush.msra.mxu0 0.0
    %756 = vmatpush.msra.mxu0 0.0
    %757 = vmatpush.msra.mxu0 0.0
    %758 = vmatpush.msra.mxu0 0.0
    %759 = vmatpush.msra.mxu0 0.0
    %760 = vmatpush.msra.mxu0 0.0
    %761 = vmatpush.msra.mxu0 0.0
    %762 = vmatpush.msra.mxu0 0.0
    %763 = vmatpush.msra.mxu0 0.0
    %764 = vmatpush.msra.mxu0 0.0
    %765 = vmatpush.msra.mxu0 0.0
    %766 = vmatpush.msra.mxu0 0.0
    %767 = vmatpush.msra.mxu0 0.0
    %768 = vmatpush.msra.mxu0 %v246
    %769 = vmatmul.f32.gmra.mxu0 %v748
    %v770 = vpop.f32.mrf.mxu0
    %v771 = vadd.f32 0.0, %v770
    %772 = vmatmul.f32.gmra.mxu0 %v751
    %v773 = vpop.f32.mrf.mxu0
    %v774 = vadd.f32 0.0, %v773
    %775 = vdwg.mxu0
    %v776 = vadd.f32 %v608, %v771
    %v777 = vadd.f32 %v611, %v774
    %778 = vrot.lane.b32.xlu0 %v277, 104
    %v779 = vpop.permute.xlu0 %778
    %780 = vrot.lane.b32.xlu0 %v277, 72
    %v781 = vpop.permute.xlu0 %780
    %v782 = vsel %vm285, %v779, 0
    %v784 = vsel %vm285, %v781, 0
    %786 = vmatpush.xpose.msra.mxu0 0.0
    %787 = vmatpush.xpose.msra.mxu0 0.0
    %788 = vmatpush.xpose.msra.mxu0 0.0
    %789 = vmatpush.xpose.msra.mxu0 0.0
    %790 = vmatpush.xpose.msra.mxu0 0.0
    %791 = vmatpush.xpose.msra.mxu0 0.0
    %792 = vmatpush.xpose.msra.mxu0 0.0
    %793 = vmatpush.xpose.msra.mxu0 0.0
    %794 = vmatpush.xpose.msra.mxu0 0.0
    %795 = vmatpush.xpose.msra.mxu0 0.0
    %796 = vmatpush.xpose.msra.mxu0 0.0
    %797 = vmatpush.xpose.msra.mxu0 0.0
    %798 = vmatpush.xpose.msra.mxu0 0.0
    %799 = vmatpush.xpose.msra.mxu0 0.0
    %800 = vmatpush.xpose.msra.mxu0 0.0
    %801 = vmatpush.xpose.msra.mxu0 %v784
    %802 = vmatmul.f32.gmra.mxu0 %v782
    %v803 = vpop.f32.mrf.mxu0
    %v804 = vadd.f32 0.0, %v803
    %805 = vdwg.mxu0
    %806 = vrot.lane.b32.xlu0 %v280, 104
    %v807 = vpop.permute.xlu0 %806
    %808 = vrot.lane.b32.xlu0 %v280, 72
    %v809 = vpop.permute.xlu0 %808
    %v810 = vsel %vm285, %v807, 0
    %v812 = vsel %vm285, %v809, 0
    %814 = vmatpush.xpose.msra.mxu0 0.0
    %815 = vmatpush.xpose.msra.mxu0 0.0
    %816 = vmatpush.xpose.msra.mxu0 0.0
    %817 = vmatpush.xpose.msra.mxu0 0.0
    %818 = vmatpush.xpose.msra.mxu0 0.0
    %819 = vmatpush.xpose.msra.mxu0 0.0
    %820 = vmatpush.xpose.msra.mxu0 0.0
    %821 = vmatpush.xpose.msra.mxu0 0.0
    %822 = vmatpush.xpose.msra.mxu0 0.0
    %823 = vmatpush.xpose.msra.mxu0 0.0
    %824 = vmatpush.xpose.msra.mxu0 0.0
    %825 = vmatpush.xpose.msra.mxu0 0.0
    %826 = vmatpush.xpose.msra.mxu0 0.0
    %827 = vmatpush.xpose.msra.mxu0 0.0
    %828 = vmatpush.xpose.msra.mxu0 0.0
    %829 = vmatpush.xpose.msra.mxu0 %v812
    %830 = vmatmul.f32.gmra.mxu0 %v810
    %v831 = vpop.f32.mrf.mxu0
    %v832 = vadd.f32 0.0, %v831
    %833 = vdwg.mxu0
    %v834 = vmul.f32 %v804, 0.35355338
    %v835 = vmul.f32 %v832, 0.35355338
    %v836 = vadd.f32 %v834, %v341
    %v837 = vadd.f32 %v835, %v342
    %v838 = vsel %vm285, %v836, -inf
    %839 = vmax.xlane.f32.xlu0 %v838
    %v840 = vpop.xlane.xlu0 %839
    %v841 = vsel %vm285, %v837, -inf
    %842 = vmax.xlane.f32.xlu0 %v841
    %v843 = vpop.xlane.xlu0 %842
    %v844 = vsub.f32 %v836, %v840
    %v845 = vsub.f32 %v837, %v843
    %v846 = vmul.f32 %v844, 1.442695
    %v847 = vpow.pop %v846
    %v848 = vmul.f32 %v845, 1.442695
    %v849 = vpow.pop %v848
    %v850 = vsel %vm285, %v847, 0.0
    %851 = vadd.xlane.f32.xlu0 %v850
    %v852 = vpop.xlane.xlu0 %851
    %v853 = vsel %vm285, %v849, 0.0
    %854 = vadd.xlane.f32.xlu0 %v853
    %v855 = vpop.xlane.xlu0 %854
    %v856 = vrcp.pop %v852
    %v857 = vrcp.pop %v855
    %v858 = vmul.f32 %v847, %v856
    %v859 = vmul.f32 %v849, %v857
    %860 = vrot.lane.b32.xlu0 %v277, 40
    %v861 = vpop.permute.xlu0 %860
    %v864 = vsel %vm285, %v858, 0
    %866 = vmatpush.msra.mxu0 0.0
    %867 = vmatpush.msra.mxu0 0.0
    %868 = vmatpush.msra.mxu0 0.0
    %869 = vmatpush.msra.mxu0 0.0
    %870 = vmatpush.msra.mxu0 0.0
    %871 = vmatpush.msra.mxu0 0.0
    %872 = vmatpush.msra.mxu0 0.0
    %873 = vmatpush.msra.mxu0 0.0
    %874 = vmatpush.msra.mxu0 0.0
    %875 = vmatpush.msra.mxu0 0.0
    %876 = vmatpush.msra.mxu0 0.0
    %877 = vmatpush.msra.mxu0 0.0
    %878 = vmatpush.msra.mxu0 0.0
    %879 = vmatpush.msra.mxu0 0.0
    %880 = vmatpush.msra.mxu0 0.0
    %881 = vmatpush.msra.mxu0 %v861
    %882 = vmatmul.f32.gmra.mxu0 %v864
    %v883 = vpop.f32.mrf.mxu0
    %v884 = vadd.f32 0.0, %v883
    %885 = vdwg.mxu0
    %886 = vrot.lane.b32.xlu0 %v280, 40
    %v887 = vpop.permute.xlu0 %886
    %v890 = vsel %vm285, %v859, 0
    %892 = vmatpush.msra.mxu0 0.0
    %893 = vmatpush.msra.mxu0 0.0
    %894 = vmatpush.msra.mxu0 0.0
    %895 = vmatpush.msra.mxu0 0.0
    %896 = vmatpush.msra.mxu0 0.0
    %897 = vmatpush.msra.mxu0 0.0
    %898 = vmatpush.msra.mxu0 0.0
    %899 = vmatpush.msra.mxu0 0.0
    %900 = vmatpush.msra.mxu0 0.0
    %901 = vmatpush.msra.mxu0 0.0
    %902 = vmatpush.msra.mxu0 0.0
    %903 = vmatpush.msra.mxu0 0.0
    %904 = vmatpush.msra.mxu0 0.0
    %905 = vmatpush.msra.mxu0 0.0
    %906 = vmatpush.msra.mxu0 0.0
    %907 = vmatpush.msra.mxu0 %v887
    %908 = vmatmul.f32.gmra.mxu0 %v890
    %v909 = vpop.f32.mrf.mxu0
    %v910 = vadd.f32 0.0, %v909
    %911 = vdwg.mxu0
    %v913 = vsel %vm285, %v884, 0
    %v916 = vsel %vm285, %v910, 0
    %918 = vmatpush.msra.mxu0 0.0
    %919 = vmatpush.msra.mxu0 0.0
    %920 = vmatpush.msra.mxu0 0.0
    %921 = vmatpush.msra.mxu0 0.0
    %922 = vmatpush.msra.mxu0 0.0
    %923 = vmatpush.msra.mxu0 0.0
    %924 = vmatpush.msra.mxu0 0.0
    %925 = vmatpush.msra.mxu0 0.0
    %926 = vmatpush.msra.mxu0 0.0
    %927 = vmatpush.msra.mxu0 0.0
    %928 = vmatpush.msra.mxu0 0.0
    %929 = vmatpush.msra.mxu0 0.0
    %930 = vmatpush.msra.mxu0 0.0
    %931 = vmatpush.msra.mxu0 0.0
    %932 = vmatpush.msra.mxu0 0.0
    %933 = vmatpush.msra.mxu0 %v247
    %934 = vmatmul.f32.gmra.mxu0 %v913
    %v935 = vpop.f32.mrf.mxu0
    %v936 = vadd.f32 0.0, %v935
    %937 = vmatmul.f32.gmra.mxu0 %v916
    %v938 = vpop.f32.mrf.mxu0
    %v939 = vadd.f32 0.0, %v938
    %940 = vdwg.mxu0
    %v941 = vadd.f32 %v776, %v936
    %v942 = vadd.f32 %v777, %v939
    %v944 = vperm.slane %v248, 0
    %v946 = vadd.f32 %v941, %v944
    %v947 = vadd.f32 %v942, %v944
    %v948 = vadd.f32 %v946, %v231
    %v949 = vadd.f32 %v947, %v232
    %v950 = vld [vmem:[%s19] sm:$0x1]
    %v951 = vld [vmem:[%s21] sm:$0x1]
    %v952 = vsel %vm252, %v948, 0.0
    %953 = vadd.xlane.f32.xlu0 %v952
    %v954 = vpop.xlane.xlu0 %953
    %v955 = vsel %vm252, %v949, 0.0
    %956 = vadd.xlane.f32.xlu0 %v955
    %v957 = vpop.xlane.xlu0 %956
    %v958 = vrcp.pop 32.0
    %v959 = vmul.f32 32.0, %v958
    %v960 = vsub.f32 1.0, %v959
    %v961 = vmul.f32 %v958, %v960
    %v962 = vadd.f32 %v958, %v961
    %vm963 = vweird.f32 %v958
    %v964 = vsel %vm963, %v958, %v962
    %v965 = vmul.f32 %v954, %v964
    %v966 = vmul.f32 %v957, %v964
    %v967 = vsub.f32 %v948, %v965
    %v968 = vsub.f32 %v949, %v966
    %v969 = vmul.f32 %v967, %v967
    %v970 = vmul.f32 %v968, %v968
    %v971 = vsel %vm252, %v969, 0.0
    %972 = vadd.xlane.f32.xlu0 %v971
    %v973 = vpop.xlane.xlu0 %972
    %v974 = vsel %vm252, %v970, 0.0
    %975 = vadd.xlane.f32.xlu0 %v974
    %v976 = vpop.xlane.xlu0 %975
    %v977 = vmul.f32 %v973, %v964
    %v978 = vmul.f32 %v976, %v964
    %v979 = vadd.f32 %v977, 1e-05
    %v980 = vadd.f32 %v978, 1e-05
    %v981 = vrsqrt.pop %v979
    %v982 = vmul.f32 %v981, %v979
    %v983 = vmul.f32 %v982, %v981
    %v984 = vmul.f32 0.5, %v983
    %v985 = vsub.f32 1.5, %v984
    %v986 = vmul.f32 %v981, %v985
    %vm987 = vweird.f32 %v979
    %vm988 = vweird.f32 %v981
    %vm989 = vmor %vm987, %vm988
    %v990 = vsel %vm989, %v981, %v986
    %v991 = vrsqrt.pop %v980
    %v992 = vmul.f32 %v991, %v980
    %v993 = vmul.f32 %v992, %v991
    %v994 = vmul.f32 0.5, %v993
    %v995 = vsub.f32 1.5, %v994
    %v996 = vmul.f32 %v991, %v995
    %vm997 = vweird.f32 %v980
    %vm998 = vweird.f32 %v991
    %vm999 = vmor %vm997, %vm998
    %v1000 = vsel %vm999, %v991, %v996
    %v1001 = vmul.f32 %v967, %v990
    %v1002 = vmul.f32 %v968, %v1000
    %v1004 = vperm.slane %v950, 0
    %v1006 = vmul.f32 %v1001, %v1004
    %v1007 = vmul.f32 %v1002, %v1004
    %v1009 = vperm.slane %v951, 0
    %v1011 = vadd.f32 %v1006, %v1009
    %v1012 = vadd.f32 %v1007, %v1009
    %v1013 = vld [vmem:[%s23] sm:$0xff]
    %v1014 = vld [vmem:[%s23 + $0x8] sm:$0xff]
    %v1015 = vld [vmem:[%s23 + $0x10] sm:$0xff]
    %v1016 = vld [vmem:[%s23 + $0x18] sm:$0xff]
    %v1017 = vld [vmem:[%s25] sm:$0x1]
    %v1018 = vld [vmem:[%s27] sm:$0xff]
    %v1019 = vld [vmem:[%s27 + $0x8] sm:$0xff]
    %v1020 = vld [vmem:[%s27 + $0x10] sm:$0xff]
    %v1021 = vld [vmem:[%s27 + $0x18] sm:$0xff]
    %v1022 = vld [vmem:[%s27 + $0x20] sm:$0xff]
    %v1023 = vld [vmem:[%s27 + $0x28] sm:$0xff]
    %v1024 = vld [vmem:[%s27 + $0x30] sm:$0xff]
    %v1025 = vld [vmem:[%s27 + $0x38] sm:$0xff]
    %v1026 = vld [vmem:[%s27 + $0x40] sm:$0xff]
    %v1027 = vld [vmem:[%s27 + $0x48] sm:$0xff]
    %v1028 = vld [vmem:[%s27 + $0x50] sm:$0xff]
    %v1029 = vld [vmem:[%s27 + $0x58] sm:$0xff]
    %v1030 = vld [vmem:[%s27 + $0x60] sm:$0xff]
    %v1031 = vld [vmem:[%s27 + $0x68] sm:$0xff]
    %v1032 = vld [vmem:[%s27 + $0x70] sm:$0xff]
    %v1033 = vld [vmem:[%s27 + $0x78] sm:$0xff]
    %v1034 = vld [vmem:[%s29] sm:$0x1]
    %v1036 = vperm.slane %v1017, 0
    %v1039 = vsel %vm252, %v1011, 0
    %v1042 = vsel %vm252, %v1012, 0
    %1044 = vmatpush.msra.mxu0 0.0
    %1045 = vmatpush.msra.mxu0 0.0
    %1046 = vmatpush.msra.mxu0 0.0
    %1047 = vmatpush.msra.mxu0 0.0
    %1048 = vmatpush.msra.mxu0 0.0
    %1049 = vmatpush.msra.mxu0 0.0
    %1050 = vmatpush.msra.mxu0 0.0
    %1051 = vmatpush.msra.mxu0 0.0
    %1052 = vmatpush.msra.mxu0 0.0
    %1053 = vmatpush.msra.mxu0 0.0
    %1054 = vmatpush.msra.mxu0 0.0
    %1055 = vmatpush.msra.mxu0 0.0
    %1056 = vmatpush.msra.mxu0 %v1016
    %1057 = vmatpush.msra.mxu0 %v1015
    %1058 = vmatpush.msra.mxu0 %v1014
    %1059 = vmatpush.msra.mxu0 %v1013
    %1060 = vmatmul.f32.gmra.mxu0 %v1039
    %v1061 = vpop.f32.mrf.mxu0
    %v1062 = vadd.f32 %v1036, %v1061
    %1063 = vmatmul.f32.gmra.mxu0 %v1042
    %v1064 = vpop.f32.mrf.mxu0
    %v1065 = vadd.f32 %v1036, %v1064
    %1066 = vdwg.mxu0
    %v1067 = vmax.f32 %v1062, 0.0
    %v1068 = vmax.f32 %v1065, 0.0
    %v1070 = vperm.slane %v1034, 0
    %1072 = vmatpush.msra.mxu0 %v1033
    %1073 = vmatpush.msra.mxu0 %v1032
    %1074 = vmatpush.msra.mxu0 %v1031
    %1075 = vmatpush.msra.mxu0 %v1030
    %1076 = vmatpush.msra.mxu0 %v1029
    %1077 = vmatpush.msra.mxu0 %v1028
    %1078 = vmatpush.msra.mxu0 %v1027
    %1079 = vmatpush.msra.mxu0 %v1026
    %1080 = vmatpush.msra.mxu0 %v1025
    %1081 = vmatpush.msra.mxu0 %v1024
    %1082 = vmatpush.msra.mxu0 %v1023
    %1083 = vmatpush.msra.mxu0 %v1022
    %1084 = vmatpush.msra.mxu0 %v1021
    %1085 = vmatpush.msra.mxu0 %v1020
    %1086 = vmatpush.msra.mxu0 %v1019
    %1087 = vmatpush.msra.mxu0 %v1018
    %1088 = vmatmul.f32.gmra.mxu0 %v1067
    %v1089 = vpop.f32.mrf.mxu0
    %v1090 = vadd.f32 %v1070, %v1089
    %1091 = vmatmul.f32.gmra.mxu0 %v1068
    %v1092 = vpop.f32.mrf.mxu0
    %v1093 = vadd.f32 %v1070, %v1092
    %1094 = vdwg.mxu0
    %v1095 = vadd.f32 %v1090, %v1011
    %v1096 = vadd.f32 %v1093, %v1012
    %v1097 = vld [vmem:[%s31] sm:$0x1]
    %v1098 = vld [vmem:[%s33] sm:$0x1]
    %v1099 = vsel %vm252, %v1095, 0.0
    %1100 = vadd.xlane.f32.xlu0 %v1099
    %v1101 = vpop.xlane.xlu0 %1100
    %v1102 = vsel %vm252, %v1096, 0.0
    %1103 = vadd.xlane.f32.xlu0 %v1102
    %v1104 = vpop.xlane.xlu0 %1103
    %v1105 = vmul.f32 %v1101, %v964
    %v1106 = vmul.f32 %v1104, %v964
    %v1107 = vsub.f32 %v1095, %v1105
    %v1108 = vsub.f32 %v1096, %v1106
    %v1109 = vmul.f32 %v1107, %v1107
    %v1110 = vmul.f32 %v1108, %v1108
    %v1111 = vsel %vm252, %v1109, 0.0
    %1112 = vadd.xlane.f32.xlu0 %v1111
    %v1113 = vpop.xlane.xlu0 %1112
    %v1114 = vsel %vm252, %v1110, 0.0
    %1115 = vadd.xlane.f32.xlu0 %v1114
    %v1116 = vpop.xlane.xlu0 %1115
    %v1117 = vmul.f32 %v1113, %v964
    %v1118 = vmul.f32 %v1116, %v964
    %v1119 = vadd.f32 %v1117, 1e-05
    %v1120 = vadd.f32 %v1118, 1e-05
    %v1121 = vrsqrt.pop %v1119
    %v1122 = vmul.f32 %v1121, %v1119
    %v1123 = vmul.f32 %v1122, %v1121
    %v1124 = vmul.f32 0.5, %v1123
    %v1125 = vsub.f32 1.5, %v1124
    %v1126 = vmul.f32 %v1121, %v1125
    %vm1127 = vweird.f32 %v1119
    %vm1128 = vweird.f32 %v1121
    %vm1129 = vmor %vm1127, %vm1128
    %v1130 = vsel %vm1129, %v1121, %v1126
    %v1131 = vrsqrt.pop %v1120
    %v1132 = vmul.f32 %v1131, %v1120
    %v1133 = vmul.f32 %v1132, %v1131
    %v1134 = vmul.f32 0.5, %v1133
    %v1135 = vsub.f32 1.5, %v1134
    %v1136 = vmul.f32 %v1131, %v1135
    %vm1137 = vweird.f32 %v1120
    %vm1138 = vweird.f32 %v1131
    %vm1139 = vmor %vm1137, %vm1138
    %v1140 = vsel %vm1139, %v1131, %v1136
    %v1141 = vmul.f32 %v1107, %v1130
    %v1142 = vmul.f32 %v1108, %v1140
    %v1144 = vperm.slane %v1097, 0
    %v1146 = vmul.f32 %v1141, %v1144
    %v1147 = vmul.f32 %v1142, %v1144
    %v1149 = vperm.slane %v1098, 0
    %v1151 = vadd.f32 %v1146, %v1149
    %v1152 = vadd.f32 %v1147, %v1149
    %v1153 = vld [vmem:[%s35] sm:$0xff]
    %v1154 = vld [vmem:[%s35 + $0x8] sm:$0xff]
    %v1155 = vld [vmem:[%s35 + $0x10] sm:$0xff]
    %v1156 = vld [vmem:[%s35 + $0x18] sm:$0xff]
    %v1157 = vld [vmem:[%s37] sm:$0x1]
    %v1158 = vld [vmem:[%s39] sm:$0xff]
    %v1159 = vld [vmem:[%s39 + $0x8] sm:$0xff]
    %v1160 = vld [vmem:[%s39 + $0x10] sm:$0xff]
    %v1161 = vld [vmem:[%s39 + $0x18] sm:$0xff]
    %v1162 = vld [vmem:[%s41] sm:$0x1]
    %v1164 = vperm.slane %v1157, 0
    %1166 = vmatpush.msra.mxu0 0.0
    %1167 = vmatpush.msra.mxu0 0.0
    %1168 = vmatpush.msra.mxu0 0.0
    %1169 = vmatpush.msra.mxu0 0.0
    %1170 = vmatpush.msra.mxu0 0.0
    %1171 = vmatpush.msra.mxu0 0.0
    %1172 = vmatpush.msra.mxu0 0.0
    %1173 = vmatpush.msra.mxu0 0.0
    %1174 = vmatpush.msra.mxu0 0.0
    %1175 = vmatpush.msra.mxu0 0.0
    %1176 = vmatpush.msra.mxu0 0.0
    %1177 = vmatpush.msra.mxu0 0.0
    %1178 = vmatpush.msra.mxu0 %v1156
    %1179 = vmatpush.msra.mxu0 %v1155
    %1180 = vmatpush.msra.mxu0 %v1154
    %1181 = vmatpush.msra.mxu0 %v1153
    %1182 = vmatmul.f32.gmra.mxu0 %v254
    %v1183 = vpop.f32.mrf.mxu0
    %v1184 = vadd.f32 %v1164, %v1183
    %1185 = vmatmul.f32.gmra.mxu0 %v257
    %v1186 = vpop.f32.mrf.mxu0
    %v1187 = vadd.f32 %v1164, %v1186
    %1188 = vdwg.mxu0
    %1190 = vrot.lane.b32.xlu0 %v1184, 96
    %v1191 = vpop.permute.xlu0 %1190
    %v1192 = vsel %vm285, %v1184, 0
    %v1194 = vsel %vm285, %v1191, 0
    %1196 = vmatpush.xpose.msra.mxu0 0.0
    %1197 = vmatpush.xpose.msra.mxu0 0.0
    %1198 = vmatpush.xpose.msra.mxu0 0.0
    %1199 = vmatpush.xpose.msra.mxu0 0.0
    %1200 = vmatpush.xpose.msra.mxu0 0.0
    %1201 = vmatpush.xpose.msra.mxu0 0.0
    %1202 = vmatpush.xpose.msra.mxu0 0.0
    %1203 = vmatpush.xpose.msra.mxu0 0.0
    %1204 = vmatpush.xpose.msra.mxu0 0.0
    %1205 = vmatpush.xpose.msra.mxu0 0.0
    %1206 = vmatpush.xpose.msra.mxu0 0.0
    %1207 = vmatpush.xpose.msra.mxu0 0.0
    %1208 = vmatpush.xpose.msra.mxu0 0.0
    %1209 = vmatpush.xpose.msra.mxu0 0.0
    %1210 = vmatpush.xpose.msra.mxu0 0.0
    %1211 = vmatpush.xpose.msra.mxu0 %v1194
    %1212 = vmatmul.f32.gmra.mxu0 %v1192
    %v1213 = vpop.f32.mrf.mxu0
    %v1214 = vadd.f32 0.0, %v1213
    %1215 = vdwg.mxu0
    %1217 = vrot.lane.b32.xlu0 %v1187, 96
    %v1218 = vpop.permute.xlu0 %1217
    %v1219 = vsel %vm285, %v1187, 0
    %v1221 = vsel %vm285, %v1218, 0
    %1223 = vmatpush.xpose.msra.mxu0 0.0
    %1224 = vmatpush.xpose.msra.mxu0 0.0
    %1225 = vmatpush.xpose.msra.mxu0 0.0
    %1226 = vmatpush.xpose.msra.mxu0 0.0
    %1227 = vmatpush.xpose.msra.mxu0 0.0
    %1228 = vmatpush.xpose.msra.mxu0 0.0
    %1229 = vmatpush.xpose.msra.mxu0 0.0
    %1230 = vmatpush.xpose.msra.mxu0 0.0
    %1231 = vmatpush.xpose.msra.mxu0 0.0
    %1232 = vmatpush.xpose.msra.mxu0 0.0
    %1233 = vmatpush.xpose.msra.mxu0 0.0
    %1234 = vmatpush.xpose.msra.mxu0 0.0
    %1235 = vmatpush.xpose.msra.mxu0 0.0
    %1236 = vmatpush.xpose.msra.mxu0 0.0
    %1237 = vmatpush.xpose.msra.mxu0 0.0
    %1238 = vmatpush.xpose.msra.mxu0 %v1221
    %1239 = vmatmul.f32.gmra.mxu0 %v1219
    %v1240 = vpop.f32.mrf.mxu0
    %v1241 = vadd.f32 0.0, %v1240
    %1242 = vdwg.mxu0
    %v1243 = vmul.f32 %v1214, 0.35355338
    %v1244 = vmul.f32 %v1241, 0.35355338
    %v1245 = vadd.f32 %v1243, %v341
    %v1246 = vadd.f32 %v1244, %v342
    %v1247 = vsel %vm285, %v1245, -inf
    %1248 = vmax.xlane.f32.xlu0 %v1247
    %v1249 = vpop.xlane.xlu0 %1248
    %v1250 = vsel %vm285, %v1246, -inf
    %1251 = vmax.xlane.f32.xlu0 %v1250
    %v1252 = vpop.xlane.xlu0 %1251
    %v1253 = vsub.f32 %v1245, %v1249
    %v1254 = vsub.f32 %v1246, %v1252
    %v1255 = vmul.f32 %v1253, 1.442695
    %v1256 = vpow.pop %v1255
    %v1257 = vmul.f32 %v1254, 1.442695
    %v1258 = vpow.pop %v1257
    %v1259 = vsel %vm285, %v1256, 0.0
    %1260 = vadd.xlane.f32.xlu0 %v1259
    %v1261 = vpop.xlane.xlu0 %1260
    %v1262 = vsel %vm285, %v1258, 0.0
    %1263 = vadd.xlane.f32.xlu0 %v1262
    %v1264 = vpop.xlane.xlu0 %1263
    %v1265 = vrcp.pop %v1261
    %v1266 = vrcp.pop %v1264
    %v1267 = vmul.f32 %v1256, %v1265
    %v1268 = vmul.f32 %v1258, %v1266
    %1269 = vrot.lane.b32.xlu0 %v1184, 64
    %v1270 = vpop.permute.xlu0 %1269
    %v1273 = vsel %vm285, %v1267, 0
    %1275 = vmatpush.msra.mxu0 0.0
    %1276 = vmatpush.msra.mxu0 0.0
    %1277 = vmatpush.msra.mxu0 0.0
    %1278 = vmatpush.msra.mxu0 0.0
    %1279 = vmatpush.msra.mxu0 0.0
    %1280 = vmatpush.msra.mxu0 0.0
    %1281 = vmatpush.msra.mxu0 0.0
    %1282 = vmatpush.msra.mxu0 0.0
    %1283 = vmatpush.msra.mxu0 0.0
    %1284 = vmatpush.msra.mxu0 0.0
    %1285 = vmatpush.msra.mxu0 0.0
    %1286 = vmatpush.msra.mxu0 0.0
    %1287 = vmatpush.msra.mxu0 0.0
    %1288 = vmatpush.msra.mxu0 0.0
    %1289 = vmatpush.msra.mxu0 0.0
    %1290 = vmatpush.msra.mxu0 %v1270
    %1291 = vmatmul.f32.gmra.mxu0 %v1273
    %v1292 = vpop.f32.mrf.mxu0
    %v1293 = vadd.f32 0.0, %v1292
    %1294 = vdwg.mxu0
    %1295 = vrot.lane.b32.xlu0 %v1187, 64
    %v1296 = vpop.permute.xlu0 %1295
    %v1299 = vsel %vm285, %v1268, 0
    %1301 = vmatpush.msra.mxu0 0.0
    %1302 = vmatpush.msra.mxu0 0.0
    %1303 = vmatpush.msra.mxu0 0.0
    %1304 = vmatpush.msra.mxu0 0.0
    %1305 = vmatpush.msra.mxu0 0.0
    %1306 = vmatpush.msra.mxu0 0.0
    %1307 = vmatpush.msra.mxu0 0.0
    %1308 = vmatpush.msra.mxu0 0.0
    %1309 = vmatpush.msra.mxu0 0.0
    %1310 = vmatpush.msra.mxu0 0.0
    %1311 = vmatpush.msra.mxu0 0.0
    %1312 = vmatpush.msra.mxu0 0.0
    %1313 = vmatpush.msra.mxu0 0.0
    %1314 = vmatpush.msra.mxu0 0.0
    %1315 = vmatpush.msra.mxu0 0.0
    %1316 = vmatpush.msra.mxu0 %v1296
    %1317 = vmatmul.f32.gmra.mxu0 %v1299
    %v1318 = vpop.f32.mrf.mxu0
    %v1319 = vadd.f32 0.0, %v1318
    %1320 = vdwg.mxu0
    %1321 = vrot.lane.b32.xlu0 %v1184, 120
    %v1322 = vpop.permute.xlu0 %1321
    %1323 = vrot.lane.b32.xlu0 %v1184, 88
    %v1324 = vpop.permute.xlu0 %1323
    %v1325 = vsel %vm285, %v1322, 0
    %v1327 = vsel %vm285, %v1324, 0
    %1329 = vmatpush.xpose.msra.mxu0 0.0
    %1330 = vmatpush.xpose.msra.mxu0 0.0
    %1331 = vmatpush.xpose.msra.mxu0 0.0
    %1332 = vmatpush.xpose.msra.mxu0 0.0
    %1333 = vmatpush.xpose.msra.mxu0 0.0
    %1334 = vmatpush.xpose.msra.mxu0 0.0
    %1335 = vmatpush.xpose.msra.mxu0 0.0
    %1336 = vmatpush.xpose.msra.mxu0 0.0
    %1337 = vmatpush.xpose.msra.mxu0 0.0
    %1338 = vmatpush.xpose.msra.mxu0 0.0
    %1339 = vmatpush.xpose.msra.mxu0 0.0
    %1340 = vmatpush.xpose.msra.mxu0 0.0
    %1341 = vmatpush.xpose.msra.mxu0 0.0
    %1342 = vmatpush.xpose.msra.mxu0 0.0
    %1343 = vmatpush.xpose.msra.mxu0 0.0
    %1344 = vmatpush.xpose.msra.mxu0 %v1327
    %1345 = vmatmul.f32.gmra.mxu0 %v1325
    %v1346 = vpop.f32.mrf.mxu0
    %v1347 = vadd.f32 0.0, %v1346
    %1348 = vdwg.mxu0
    %1349 = vrot.lane.b32.xlu0 %v1187, 120
    %v1350 = vpop.permute.xlu0 %1349
    %1351 = vrot.lane.b32.xlu0 %v1187, 88
    %v1352 = vpop.permute.xlu0 %1351
    %v1353 = vsel %vm285, %v1350, 0
    %v1355 = vsel %vm285, %v1352, 0
    %1357 = vmatpush.xpose.msra.mxu0 0.0
    %1358 = vmatpush.xpose.msra.mxu0 0.0
    %1359 = vmatpush.xpose.msra.mxu0 0.0
    %1360 = vmatpush.xpose.msra.mxu0 0.0
    %1361 = vmatpush.xpose.msra.mxu0 0.0
    %1362 = vmatpush.xpose.msra.mxu0 0.0
    %1363 = vmatpush.xpose.msra.mxu0 0.0
    %1364 = vmatpush.xpose.msra.mxu0 0.0
    %1365 = vmatpush.xpose.msra.mxu0 0.0
    %1366 = vmatpush.xpose.msra.mxu0 0.0
    %1367 = vmatpush.xpose.msra.mxu0 0.0
    %1368 = vmatpush.xpose.msra.mxu0 0.0
    %1369 = vmatpush.xpose.msra.mxu0 0.0
    %1370 = vmatpush.xpose.msra.mxu0 0.0
    %1371 = vmatpush.xpose.msra.mxu0 0.0
    %1372 = vmatpush.xpose.msra.mxu0 %v1355
    %1373 = vmatmul.f32.gmra.mxu0 %v1353
    %v1374 = vpop.f32.mrf.mxu0
    %v1375 = vadd.f32 0.0, %v1374
    %1376 = vdwg.mxu0
    %v1377 = vmul.f32 %v1347, 0.35355338
    %v1378 = vmul.f32 %v1375, 0.35355338
    %v1379 = vadd.f32 %v1377, %v341
    %v1380 = vadd.f32 %v1378, %v342
    %v1381 = vsel %vm285, %v1379, -inf
    %1382 = vmax.xlane.f32.xlu0 %v1381
    %v1383 = vpop.xlane.xlu0 %1382
    %v1384 = vsel %vm285, %v1380, -inf
    %1385 = vmax.xlane.f32.xlu0 %v1384
    %v1386 = vpop.xlane.xlu0 %1385
    %v1387 = vsub.f32 %v1379, %v1383
    %v1388 = vsub.f32 %v1380, %v1386
    %v1389 = vmul.f32 %v1387, 1.442695
    %v1390 = vpow.pop %v1389
    %v1391 = vmul.f32 %v1388, 1.442695
    %v1392 = vpow.pop %v1391
    %v1393 = vsel %vm285, %v1390, 0.0
    %1394 = vadd.xlane.f32.xlu0 %v1393
    %v1395 = vpop.xlane.xlu0 %1394
    %v1396 = vsel %vm285, %v1392, 0.0
    %1397 = vadd.xlane.f32.xlu0 %v1396
    %v1398 = vpop.xlane.xlu0 %1397
    %v1399 = vrcp.pop %v1395
    %v1400 = vrcp.pop %v1398
    %v1401 = vmul.f32 %v1390, %v1399
    %v1402 = vmul.f32 %v1392, %v1400
    %1403 = vrot.lane.b32.xlu0 %v1184, 56
    %v1404 = vpop.permute.xlu0 %1403
    %v1407 = vsel %vm285, %v1401, 0
    %1409 = vmatpush.msra.mxu0 0.0
    %1410 = vmatpush.msra.mxu0 0.0
    %1411 = vmatpush.msra.mxu0 0.0
    %1412 = vmatpush.msra.mxu0 0.0
    %1413 = vmatpush.msra.mxu0 0.0
    %1414 = vmatpush.msra.mxu0 0.0
    %1415 = vmatpush.msra.mxu0 0.0
    %1416 = vmatpush.msra.mxu0 0.0
    %1417 = vmatpush.msra.mxu0 0.0
    %1418 = vmatpush.msra.mxu0 0.0
    %1419 = vmatpush.msra.mxu0 0.0
    %1420 = vmatpush.msra.mxu0 0.0
    %1421 = vmatpush.msra.mxu0 0.0
    %1422 = vmatpush.msra.mxu0 0.0
    %1423 = vmatpush.msra.mxu0 0.0
    %1424 = vmatpush.msra.mxu0 %v1404
    %1425 = vmatmul.f32.gmra.mxu0 %v1407
    %v1426 = vpop.f32.mrf.mxu0
    %v1427 = vadd.f32 0.0, %v1426
    %1428 = vdwg.mxu0
    %1429 = vrot.lane.b32.xlu0 %v1187, 56
    %v1430 = vpop.permute.xlu0 %1429
    %v1433 = vsel %vm285, %v1402, 0
    %1435 = vmatpush.msra.mxu0 0.0
    %1436 = vmatpush.msra.mxu0 0.0
    %1437 = vmatpush.msra.mxu0 0.0
    %1438 = vmatpush.msra.mxu0 0.0
    %1439 = vmatpush.msra.mxu0 0.0
    %1440 = vmatpush.msra.mxu0 0.0
    %1441 = vmatpush.msra.mxu0 0.0
    %1442 = vmatpush.msra.mxu0 0.0
    %1443 = vmatpush.msra.mxu0 0.0
    %1444 = vmatpush.msra.mxu0 0.0
    %1445 = vmatpush.msra.mxu0 0.0
    %1446 = vmatpush.msra.mxu0 0.0
    %1447 = vmatpush.msra.mxu0 0.0
    %1448 = vmatpush.msra.mxu0 0.0
    %1449 = vmatpush.msra.mxu0 0.0
    %1450 = vmatpush.msra.mxu0 %v1430
    %1451 = vmatmul.f32.gmra.mxu0 %v1433
    %v1452 = vpop.f32.mrf.mxu0
    %v1453 = vadd.f32 0.0, %v1452
    %1454 = vdwg.mxu0
    %v1456 = vsel %vm285, %v1427, 0
    %v1459 = vsel %vm285, %v1453, 0
    %1461 = vmatpush.msra.mxu0 0.0
    %1462 = vmatpush.msra.mxu0 0.0
    %1463 = vmatpush.msra.mxu0 0.0
    %1464 = vmatpush.msra.mxu0 0.0
    %1465 = vmatpush.msra.mxu0 0.0
    %1466 = vmatpush.msra.mxu0 0.0
    %1467 = vmatpush.msra.mxu0 0.0
    %1468 = vmatpush.msra.mxu0 0.0
    %1469 = vmatpush.msra.mxu0 0.0
    %1470 = vmatpush.msra.mxu0 0.0
    %1471 = vmatpush.msra.mxu0 0.0
    %1472 = vmatpush.msra.mxu0 0.0
    %1473 = vmatpush.msra.mxu0 0.0
    %1474 = vmatpush.msra.mxu0 0.0
    %1475 = vmatpush.msra.mxu0 0.0
    %1476 = vmatpush.msra.mxu0 %v1159
    %1477 = vmatmul.f32.gmra.mxu0 %v1456
    %v1478 = vpop.f32.mrf.mxu0
    %v1479 = vadd.f32 0.0, %v1478
    %1480 = vmatmul.f32.gmra.mxu0 %v1459
    %v1481 = vpop.f32.mrf.mxu0
    %v1482 = vadd.f32 0.0, %v1481
    %1483 = vdwg.mxu0
    %v1485 = vsel %vm285, %v1293, 0
    %v1488 = vsel %vm285, %v1319, 0
    %1490 = vmatpush.msra.mxu0 0.0
    %1491 = vmatpush.msra.mxu0 0.0
    %1492 = vmatpush.msra.mxu0 0.0
    %1493 = vmatpush.msra.mxu0 0.0
    %1494 = vmatpush.msra.mxu0 0.0
    %1495 = vmatpush.msra.mxu0 0.0
    %1496 = vmatpush.msra.mxu0 0.0
    %1497 = vmatpush.msra.mxu0 0.0
    %1498 = vmatpush.msra.mxu0 0.0
    %1499 = vmatpush.msra.mxu0 0.0
    %1500 = vmatpush.msra.mxu0 0.0
    %1501 = vmatpush.msra.mxu0 0.0
    %1502 = vmatpush.msra.mxu0 0.0
    %1503 = vmatpush.msra.mxu0 0.0
    %1504 = vmatpush.msra.mxu0 0.0
    %1505 = vmatpush.msra.mxu0 %v1158
    %1506 = vmatmul.f32.gmra.mxu0 %v1485
    %v1507 = vpop.f32.mrf.mxu0
    %v1508 = vadd.f32 %v1479, %v1507
    %1509 = vmatmul.f32.gmra.mxu0 %v1488
    %v1510 = vpop.f32.mrf.mxu0
    %v1511 = vadd.f32 %v1482, %v1510
    %1512 = vdwg.mxu0
    %1513 = vrot.lane.b32.xlu0 %v1184, 112
    %v1514 = vpop.permute.xlu0 %1513
    %1515 = vrot.lane.b32.xlu0 %v1184, 80
    %v1516 = vpop.permute.xlu0 %1515
    %v1517 = vsel %vm285, %v1514, 0
    %v1519 = vsel %vm285, %v1516, 0
    %1521 = vmatpush.xpose.msra.mxu0 0.0
    %1522 = vmatpush.xpose.msra.mxu0 0.0
    %1523 = vmatpush.xpose.msra.mxu0 0.0
    %1524 = vmatpush.xpose.msra.mxu0 0.0
    %1525 = vmatpush.xpose.msra.mxu0 0.0
    %1526 = vmatpush.xpose.msra.mxu0 0.0
    %1527 = vmatpush.xpose.msra.mxu0 0.0
    %1528 = vmatpush.xpose.msra.mxu0 0.0
    %1529 = vmatpush.xpose.msra.mxu0 0.0
    %1530 = vmatpush.xpose.msra.mxu0 0.0
    %1531 = vmatpush.xpose.msra.mxu0 0.0
    %1532 = vmatpush.xpose.msra.mxu0 0.0
    %1533 = vmatpush.xpose.msra.mxu0 0.0
    %1534 = vmatpush.xpose.msra.mxu0 0.0
    %1535 = vmatpush.xpose.msra.mxu0 0.0
    %1536 = vmatpush.xpose.msra.mxu0 %v1519
    %1537 = vmatmul.f32.gmra.mxu0 %v1517
    %v1538 = vpop.f32.mrf.mxu0
    %v1539 = vadd.f32 0.0, %v1538
    %1540 = vdwg.mxu0
    %1541 = vrot.lane.b32.xlu0 %v1187, 112
    %v1542 = vpop.permute.xlu0 %1541
    %1543 = vrot.lane.b32.xlu0 %v1187, 80
    %v1544 = vpop.permute.xlu0 %1543
    %v1545 = vsel %vm285, %v1542, 0
    %v1547 = vsel %vm285, %v1544, 0
    %1549 = vmatpush.xpose.msra.mxu0 0.0
    %1550 = vmatpush.xpose.msra.mxu0 0.0
    %1551 = vmatpush.xpose.msra.mxu0 0.0
    %1552 = vmatpush.xpose.msra.mxu0 0.0
    %1553 = vmatpush.xpose.msra.mxu0 0.0
    %1554 = vmatpush.xpose.msra.mxu0 0.0
    %1555 = vmatpush.xpose.msra.mxu0 0.0
    %1556 = vmatpush.xpose.msra.mxu0 0.0
    %1557 = vmatpush.xpose.msra.mxu0 0.0
    %1558 = vmatpush.xpose.msra.mxu0 0.0
    %1559 = vmatpush.xpose.msra.mxu0 0.0
    %1560 = vmatpush.xpose.msra.mxu0 0.0
    %1561 = vmatpush.xpose.msra.mxu0 0.0
    %1562 = vmatpush.xpose.msra.mxu0 0.0
    %1563 = vmatpush.xpose.msra.mxu0 0.0
    %1564 = vmatpush.xpose.msra.mxu0 %v1547
    %1565 = vmatmul.f32.gmra.mxu0 %v1545
    %v1566 = vpop.f32.mrf.mxu0
    %v1567 = vadd.f32 0.0, %v1566
    %1568 = vdwg.mxu0
    %v1569 = vmul.f32 %v1539, 0.35355338
    %v1570 = vmul.f32 %v1567, 0.35355338
    %v1571 = vadd.f32 %v1569, %v341
    %v1572 = vadd.f32 %v1570, %v342
    %v1573 = vsel %vm285, %v1571, -inf
    %1574 = vmax.xlane.f32.xlu0 %v1573
    %v1575 = vpop.xlane.xlu0 %1574
    %v1576 = vsel %vm285, %v1572, -inf
    %1577 = vmax.xlane.f32.xlu0 %v1576
    %v1578 = vpop.xlane.xlu0 %1577
    %v1579 = vsub.f32 %v1571, %v1575
    %v1580 = vsub.f32 %v1572, %v1578
    %v1581 = vmul.f32 %v1579, 1.442695
    %v1582 = vpow.pop %v1581
    %v1583 = vmul.f32 %v1580, 1.442695
    %v1584 = vpow.pop %v1583
    %v1585 = vsel %vm285, %v1582, 0.0
    %1586 = vadd.xlane.f32.xlu0 %v1585
    %v1587 = vpop.xlane.xlu0 %1586
    %v1588 = vsel %vm285, %v1584, 0.0
    %1589 = vadd.xlane.f32.xlu0 %v1588
    %v1590 = vpop.xlane.xlu0 %1589
    %v1591 = vrcp.pop %v1587
    %v1592 = vrcp.pop %v1590
    %v1593 = vmul.f32 %v1582, %v1591
    %v1594 = vmul.f32 %v1584, %v1592
    %1595 = vrot.lane.b32.xlu0 %v1184, 48
    %v1596 = vpop.permute.xlu0 %1595
    %v1599 = vsel %vm285, %v1593, 0
    %1601 = vmatpush.msra.mxu0 0.0
    %1602 = vmatpush.msra.mxu0 0.0
    %1603 = vmatpush.msra.mxu0 0.0
    %1604 = vmatpush.msra.mxu0 0.0
    %1605 = vmatpush.msra.mxu0 0.0
    %1606 = vmatpush.msra.mxu0 0.0
    %1607 = vmatpush.msra.mxu0 0.0
    %1608 = vmatpush.msra.mxu0 0.0
    %1609 = vmatpush.msra.mxu0 0.0
    %1610 = vmatpush.msra.mxu0 0.0
    %1611 = vmatpush.msra.mxu0 0.0
    %1612 = vmatpush.msra.mxu0 0.0
    %1613 = vmatpush.msra.mxu0 0.0
    %1614 = vmatpush.msra.mxu0 0.0
    %1615 = vmatpush.msra.mxu0 0.0
    %1616 = vmatpush.msra.mxu0 %v1596
    %1617 = vmatmul.f32.gmra.mxu0 %v1599
    %v1618 = vpop.f32.mrf.mxu0
    %v1619 = vadd.f32 0.0, %v1618
    %1620 = vdwg.mxu0
    %1621 = vrot.lane.b32.xlu0 %v1187, 48
    %v1622 = vpop.permute.xlu0 %1621
    %v1625 = vsel %vm285, %v1594, 0
    %1627 = vmatpush.msra.mxu0 0.0
    %1628 = vmatpush.msra.mxu0 0.0
    %1629 = vmatpush.msra.mxu0 0.0
    %1630 = vmatpush.msra.mxu0 0.0
    %1631 = vmatpush.msra.mxu0 0.0
    %1632 = vmatpush.msra.mxu0 0.0
    %1633 = vmatpush.msra.mxu0 0.0
    %1634 = vmatpush.msra.mxu0 0.0
    %1635 = vmatpush.msra.mxu0 0.0
    %1636 = vmatpush.msra.mxu0 0.0
    %1637 = vmatpush.msra.mxu0 0.0
    %1638 = vmatpush.msra.mxu0 0.0
    %1639 = vmatpush.msra.mxu0 0.0
    %1640 = vmatpush.msra.mxu0 0.0
    %1641 = vmatpush.msra.mxu0 0.0
    %1642 = vmatpush.msra.mxu0 %v1622
    %1643 = vmatmul.f32.gmra.mxu0 %v1625
    %v1644 = vpop.f32.mrf.mxu0
    %v1645 = vadd.f32 0.0, %v1644
    %1646 = vdwg.mxu0
    %v1648 = vsel %vm285, %v1619, 0
    %v1651 = vsel %vm285, %v1645, 0
    %1653 = vmatpush.msra.mxu0 0.0
    %1654 = vmatpush.msra.mxu0 0.0
    %1655 = vmatpush.msra.mxu0 0.0
    %1656 = vmatpush.msra.mxu0 0.0
    %1657 = vmatpush.msra.mxu0 0.0
    %1658 = vmatpush.msra.mxu0 0.0
    %1659 = vmatpush.msra.mxu0 0.0
    %1660 = vmatpush.msra.mxu0 0.0
    %1661 = vmatpush.msra.mxu0 0.0
    %1662 = vmatpush.msra.mxu0 0.0
    %1663 = vmatpush.msra.mxu0 0.0
    %1664 = vmatpush.msra.mxu0 0.0
    %1665 = vmatpush.msra.mxu0 0.0
    %1666 = vmatpush.msra.mxu0 0.0
    %1667 = vmatpush.msra.mxu0 0.0
    %1668 = vmatpush.msra.mxu0 %v1160
    %1669 = vmatmul.f32.gmra.mxu0 %v1648
    %v1670 = vpop.f32.mrf.mxu0
    %v1671 = vadd.f32 0.0, %v1670
    %1672 = vmatmul.f32.gmra.mxu0 %v1651
    %v1673 = vpop.f32.mrf.mxu0
    %v1674 = vadd.f32 0.0, %v1673
    %1675 = vdwg.mxu0
    %v1676 = vadd.f32 %v1508, %v1671
    %v1677 = vadd.f32 %v1511, %v1674
    %1678 = vrot.lane.b32.xlu0 %v1184, 104
    %v1679 = vpop.permute.xlu0 %1678
    %1680 = vrot.lane.b32.xlu0 %v1184, 72
    %v1681 = vpop.permute.xlu0 %1680
    %v1682 = vsel %vm285, %v1679, 0
    %v1684 = vsel %vm285, %v1681, 0
    %1686 = vmatpush.xpose.msra.mxu0 0.0
    %1687 = vmatpush.xpose.msra.mxu0 0.0
    %1688 = vmatpush.xpose.msra.mxu0 0.0
    %1689 = vmatpush.xpose.msra.mxu0 0.0
    %1690 = vmatpush.xpose.msra.mxu0 0.0
    %1691 = vmatpush.xpose.msra.mxu0 0.0
    %1692 = vmatpush.xpose.msra.mxu0 0.0
    %1693 = vmatpush.xpose.msra.mxu0 0.0
    %1694 = vmatpush.xpose.msra.mxu0 0.0
    %1695 = vmatpush.xpose.msra.mxu0 0.0
    %1696 = vmatpush.xpose.msra.mxu0 0.0
    %1697 = vmatpush.xpose.msra.mxu0 0.0
    %1698 = vmatpush.xpose.msra.mxu0 0.0
    %1699 = vmatpush.xpose.msra.mxu0 0.0
    %1700 = vmatpush.xpose.msra.mxu0 0.0
    %1701 = vmatpush.xpose.msra.mxu0 %v1684
    %1702 = vmatmul.f32.gmra.mxu0 %v1682
    %v1703 = vpop.f32.mrf.mxu0
    %v1704 = vadd.f32 0.0, %v1703
    %1705 = vdwg.mxu0
    %1706 = vrot.lane.b32.xlu0 %v1187, 104
    %v1707 = vpop.permute.xlu0 %1706
    %1708 = vrot.lane.b32.xlu0 %v1187, 72
    %v1709 = vpop.permute.xlu0 %1708
    %v1710 = vsel %vm285, %v1707, 0
    %v1712 = vsel %vm285, %v1709, 0
    %1714 = vmatpush.xpose.msra.mxu0 0.0
    %1715 = vmatpush.xpose.msra.mxu0 0.0
    %1716 = vmatpush.xpose.msra.mxu0 0.0
    %1717 = vmatpush.xpose.msra.mxu0 0.0
    %1718 = vmatpush.xpose.msra.mxu0 0.0
    %1719 = vmatpush.xpose.msra.mxu0 0.0
    %1720 = vmatpush.xpose.msra.mxu0 0.0
    %1721 = vmatpush.xpose.msra.mxu0 0.0
    %1722 = vmatpush.xpose.msra.mxu0 0.0
    %1723 = vmatpush.xpose.msra.mxu0 0.0
    %1724 = vmatpush.xpose.msra.mxu0 0.0
    %1725 = vmatpush.xpose.msra.mxu0 0.0
    %1726 = vmatpush.xpose.msra.mxu0 0.0
    %1727 = vmatpush.xpose.msra.mxu0 0.0
    %1728 = vmatpush.xpose.msra.mxu0 0.0
    %1729 = vmatpush.xpose.msra.mxu0 %v1712
    %1730 = vmatmul.f32.gmra.mxu0 %v1710
    %v1731 = vpop.f32.mrf.mxu0
    %v1732 = vadd.f32 0.0, %v1731
    %1733 = vdwg.mxu0
    %v1734 = vmul.f32 %v1704, 0.35355338
    %v1735 = vmul.f32 %v1732, 0.35355338
    %v1736 = vadd.f32 %v1734, %v341
    %v1737 = vadd.f32 %v1735, %v342
    %v1738 = vsel %vm285, %v1736, -inf
    %1739 = vmax.xlane.f32.xlu0 %v1738
    %v1740 = vpop.xlane.xlu0 %1739
    %v1741 = vsel %vm285, %v1737, -inf
    %1742 = vmax.xlane.f32.xlu0 %v1741
    %v1743 = vpop.xlane.xlu0 %1742
    %v1744 = vsub.f32 %v1736, %v1740
    %v1745 = vsub.f32 %v1737, %v1743
    %v1746 = vmul.f32 %v1744, 1.442695
    %v1747 = vpow.pop %v1746
    %v1748 = vmul.f32 %v1745, 1.442695
    %v1749 = vpow.pop %v1748
    %v1750 = vsel %vm285, %v1747, 0.0
    %1751 = vadd.xlane.f32.xlu0 %v1750
    %v1752 = vpop.xlane.xlu0 %1751
    %v1753 = vsel %vm285, %v1749, 0.0
    %1754 = vadd.xlane.f32.xlu0 %v1753
    %v1755 = vpop.xlane.xlu0 %1754
    %v1756 = vrcp.pop %v1752
    %v1757 = vrcp.pop %v1755
    %v1758 = vmul.f32 %v1747, %v1756
    %v1759 = vmul.f32 %v1749, %v1757
    %1760 = vrot.lane.b32.xlu0 %v1184, 40
    %v1761 = vpop.permute.xlu0 %1760
    %v1764 = vsel %vm285, %v1758, 0
    %1766 = vmatpush.msra.mxu0 0.0
    %1767 = vmatpush.msra.mxu0 0.0
    %1768 = vmatpush.msra.mxu0 0.0
    %1769 = vmatpush.msra.mxu0 0.0
    %1770 = vmatpush.msra.mxu0 0.0
    %1771 = vmatpush.msra.mxu0 0.0
    %1772 = vmatpush.msra.mxu0 0.0
    %1773 = vmatpush.msra.mxu0 0.0
    %1774 = vmatpush.msra.mxu0 0.0
    %1775 = vmatpush.msra.mxu0 0.0
    %1776 = vmatpush.msra.mxu0 0.0
    %1777 = vmatpush.msra.mxu0 0.0
    %1778 = vmatpush.msra.mxu0 0.0
    %1779 = vmatpush.msra.mxu0 0.0
    %1780 = vmatpush.msra.mxu0 0.0
    %1781 = vmatpush.msra.mxu0 %v1761
    %1782 = vmatmul.f32.gmra.mxu0 %v1764
    %v1783 = vpop.f32.mrf.mxu0
    %v1784 = vadd.f32 0.0, %v1783
    %1785 = vdwg.mxu0
    %1786 = vrot.lane.b32.xlu0 %v1187, 40
    %v1787 = vpop.permute.xlu0 %1786
    %v1790 = vsel %vm285, %v1759, 0
    %1792 = vmatpush.msra.mxu0 0.0
    %1793 = vmatpush.msra.mxu0 0.0
    %1794 = vmatpush.msra.mxu0 0.0
    %1795 = vmatpush.msra.mxu0 0.0
    %1796 = vmatpush.msra.mxu0 0.0
    %1797 = vmatpush.msra.mxu0 0.0
    %1798 = vmatpush.msra.mxu0 0.0
    %1799 = vmatpush.msra.mxu0 0.0
    %1800 = vmatpush.msra.mxu0 0.0
    %1801 = vmatpush.msra.mxu0 0.0
    %1802 = vmatpush.msra.mxu0 0.0
    %1803 = vmatpush.msra.mxu0 0.0
    %1804 = vmatpush.msra.mxu0 0.0
    %1805 = vmatpush.msra.mxu0 0.0
    %1806 = vmatpush.msra.mxu0 0.0
    %1807 = vmatpush.msra.mxu0 %v1787
    %1808 = vmatmul.f32.gmra.mxu0 %v1790
    %v1809 = vpop.f32.mrf.mxu0
    %v1810 = vadd.f32 0.0, %v1809
    %1811 = vdwg.mxu0
    %v1813 = vsel %vm285, %v1784, 0
    %v1816 = vsel %vm285, %v1810, 0
    %1818 = vmatpush.msra.mxu0 0.0
    %1819 = vmatpush.msra.mxu0 0.0
    %1820 = vmatpush.msra.mxu0 0.0
    %1821 = vmatpush.msra.mxu0 0.0
    %1822 = vmatpush.msra.mxu0 0.0
    %1823 = vmatpush.msra.mxu0 0.0
    %1824 = vmatpush.msra.mxu0 0.0
    %1825 = vmatpush.msra.mxu0 0.0
    %1826 = vmatpush.msra.mxu0 0.0
    %1827 = vmatpush.msra.mxu0 0.0
    %1828 = vmatpush.msra.mxu0 0.0
    %1829 = vmatpush.msra.mxu0 0.0
    %1830 = vmatpush.msra.mxu0 0.0
    %1831 = vmatpush.msra.mxu0 0.0
    %1832 = vmatpush.msra.mxu0 0.0
    %1833 = vmatpush.msra.mxu0 %v1161
    %1834 = vmatmul.f32.gmra.mxu0 %v1813
    %v1835 = vpop.f32.mrf.mxu0
    %v1836 = vadd.f32 0.0, %v1835
    %1837 = vmatmul.f32.gmra.mxu0 %v1816
    %v1838 = vpop.f32.mrf.mxu0
    %v1839 = vadd.f32 0.0, %v1838
    %1840 = vdwg.mxu0
    %v1841 = vadd.f32 %v1676, %v1836
    %v1842 = vadd.f32 %v1677, %v1839
    %v1844 = vperm.slane %v1162, 0
    %v1846 = vadd.f32 %v1841, %v1844
    %v1847 = vadd.f32 %v1842, %v1844
    %v1848 = vadd.f32 %v1846, %v231
    %v1849 = vadd.f32 %v1847, %v232
    %v1850 = vld [vmem:[%s43] sm:$0x1]
    %v1851 = vld [vmem:[%s45] sm:$0x1]
    %v1852 = vsel %vm252, %v1848, 0.0
    %1853 = vadd.xlane.f32.xlu0 %v1852
    %v1854 = vpop.xlane.xlu0 %1853
    %v1855 = vsel %vm252, %v1849, 0.0
    %1856 = vadd.xlane.f32.xlu0 %v1855
    %v1857 = vpop.xlane.xlu0 %1856
    %v1858 = vmul.f32 %v1854, %v964
    %v1859 = vmul.f32 %v1857, %v964
    %v1860 = vsub.f32 %v1848, %v1858
    %v1861 = vsub.f32 %v1849, %v1859
    %v1862 = vmul.f32 %v1860, %v1860
    %v1863 = vmul.f32 %v1861, %v1861
    %v1864 = vsel %vm252, %v1862, 0.0
    %1865 = vadd.xlane.f32.xlu0 %v1864
    %v1866 = vpop.xlane.xlu0 %1865
    %v1867 = vsel %vm252, %v1863, 0.0
    %1868 = vadd.xlane.f32.xlu0 %v1867
    %v1869 = vpop.xlane.xlu0 %1868
    %v1870 = vmul.f32 %v1866, %v964
    %v1871 = vmul.f32 %v1869, %v964
    %v1872 = vadd.f32 %v1870, 1e-05
    %v1873 = vadd.f32 %v1871, 1e-05
    %v1874 = vrsqrt.pop %v1872
    %v1875 = vmul.f32 %v1874, %v1872
    %v1876 = vmul.f32 %v1875, %v1874
    %v1877 = vmul.f32 0.5, %v1876
    %v1878 = vsub.f32 1.5, %v1877
    %v1879 = vmul.f32 %v1874, %v1878
    %vm1880 = vweird.f32 %v1872
    %vm1881 = vweird.f32 %v1874
    %vm1882 = vmor %vm1880, %vm1881
    %v1883 = vsel %vm1882, %v1874, %v1879
    %v1884 = vrsqrt.pop %v1873
    %v1885 = vmul.f32 %v1884, %v1873
    %v1886 = vmul.f32 %v1885, %v1884
    %v1887 = vmul.f32 0.5, %v1886
    %v1888 = vsub.f32 1.5, %v1887
    %v1889 = vmul.f32 %v1884, %v1888
    %vm1890 = vweird.f32 %v1873
    %vm1891 = vweird.f32 %v1884
    %vm1892 = vmor %vm1890, %vm1891
    %v1893 = vsel %vm1892, %v1884, %v1889
    %v1894 = vmul.f32 %v1860, %v1883
    %v1895 = vmul.f32 %v1861, %v1893
    %v1897 = vperm.slane %v1850, 0
    %v1899 = vmul.f32 %v1894, %v1897
    %v1900 = vmul.f32 %v1895, %v1897
    %v1902 = vperm.slane %v1851, 0
    %v1904 = vadd.f32 %v1899, %v1902
    %v1905 = vadd.f32 %v1900, %v1902
    %v1906 = vld [vmem:[%s47] sm:$0xff]
    %v1907 = vld [vmem:[%s47 + $0x8] sm:$0xff]
    %v1908 = vld [vmem:[%s47 + $0x10] sm:$0xff]
    %v1909 = vld [vmem:[%s47 + $0x18] sm:$0xff]
    %v1910 = vld [vmem:[%s49] sm:$0x1]
    %v1911 = vld [vmem:[%s51] sm:$0xff]
    %v1912 = vld [vmem:[%s51 + $0x8] sm:$0xff]
    %v1913 = vld [vmem:[%s51 + $0x10] sm:$0xff]
    %v1914 = vld [vmem:[%s51 + $0x18] sm:$0xff]
    %v1915 = vld [vmem:[%s53] sm:$0x1]
    %v1917 = vperm.slane %v1910, 0
    %v1920 = vsel %vm252, %v1904, 0
    %v1923 = vsel %vm252, %v1905, 0
    %1925 = vmatpush.msra.mxu0 0.0
    %1926 = vmatpush.msra.mxu0 0.0
    %1927 = vmatpush.msra.mxu0 0.0
    %1928 = vmatpush.msra.mxu0 0.0
    %1929 = vmatpush.msra.mxu0 0.0
    %1930 = vmatpush.msra.mxu0 0.0
    %1931 = vmatpush.msra.mxu0 0.0
    %1932 = vmatpush.msra.mxu0 0.0
    %1933 = vmatpush.msra.mxu0 0.0
    %1934 = vmatpush.msra.mxu0 0.0
    %1935 = vmatpush.msra.mxu0 0.0
    %1936 = vmatpush.msra.mxu0 0.0
    %1937 = vmatpush.msra.mxu0 %v1909
    %1938 = vmatpush.msra.mxu0 %v1908
    %1939 = vmatpush.msra.mxu0 %v1907
    %1940 = vmatpush.msra.mxu0 %v1906
    %1941 = vmatmul.f32.gmra.mxu0 %v1920
    %v1942 = vpop.f32.mrf.mxu0
    %v1943 = vadd.f32 %v1917, %v1942
    %1944 = vmatmul.f32.gmra.mxu0 %v1923
    %v1945 = vpop.f32.mrf.mxu0
    %v1946 = vadd.f32 %v1917, %v1945
    %1947 = vdwg.mxu0
    %1952 = vrot.lane.b32.xlu0 %v1906, 96
    %v1953 = vpop.permute.xlu0 %1952
    %1954 = vrot.lane.b32.xlu0 %v1907, 96
    %v1955 = vpop.permute.xlu0 %1954
    %1956 = vrot.lane.b32.xlu0 %v1908, 96
    %v1957 = vpop.permute.xlu0 %1956
    %1958 = vrot.lane.b32.xlu0 %v1909, 96
    %v1959 = vpop.permute.xlu0 %1958
    %1964 = vrot.lane.b32.xlu0 %v1917, 96
    %v1965 = vpop.permute.xlu0 %1964
    %v1968 = vsel %vm252, %v1151, 0
    %v1971 = vsel %vm252, %v1152, 0
    %1973 = vmatpush.msra.mxu0 0.0
    %1974 = vmatpush.msra.mxu0 0.0
    %1975 = vmatpush.msra.mxu0 0.0
    %1976 = vmatpush.msra.mxu0 0.0
    %1977 = vmatpush.msra.mxu0 0.0
    %1978 = vmatpush.msra.mxu0 0.0
    %1979 = vmatpush.msra.mxu0 0.0
    %1980 = vmatpush.msra.mxu0 0.0
    %1981 = vmatpush.msra.mxu0 0.0
    %1982 = vmatpush.msra.mxu0 0.0
    %1983 = vmatpush.msra.mxu0 0.0
    %1984 = vmatpush.msra.mxu0 0.0
    %1985 = vmatpush.msra.mxu0 %v1959
    %1986 = vmatpush.msra.mxu0 %v1957
    %1987 = vmatpush.msra.mxu0 %v1955
    %1988 = vmatpush.msra.mxu0 %v1953
    %1989 = vmatmul.f32.gmra.mxu0 %v1968
    %v1990 = vpop.f32.mrf.mxu0
    %v1991 = vadd.f32 %v1965, %v1990
    %1992 = vmatmul.f32.gmra.mxu0 %v1971
    %v1993 = vpop.f32.mrf.mxu0
    %v1994 = vadd.f32 %v1965, %v1993
    %1995 = vdwg.mxu0
    %v1997 = vsel %vm285, %v1943, 0
    %v2000 = vsel %vm285, %v1991, 0
    %2002 = vmatpush.xpose.msra.mxu0 0.0
    %2003 = vmatpush.xpose.msra.mxu0 0.0
    %2004 = vmatpush.xpose.msra.mxu0 0.0
    %2005 = vmatpush.xpose.msra.mxu0 0.0
    %2006 = vmatpush.xpose.msra.mxu0 0.0
    %2007 = vmatpush.xpose.msra.mxu0 0.0
    %2008 = vmatpush.xpose.msra.mxu0 0.0
    %2009 = vmatpush.xpose.msra.mxu0 0.0
    %2010 = vmatpush.xpose.msra.mxu0 0.0
    %2011 = vmatpush.xpose.msra.mxu0 0.0
    %2012 = vmatpush.xpose.msra.mxu0 0.0
    %2013 = vmatpush.xpose.msra.mxu0 0.0
    %2014 = vmatpush.xpose.msra.mxu0 0.0
    %2015 = vmatpush.xpose.msra.mxu0 0.0
    %2016 = vmatpush.xpose.msra.mxu0 0.0
    %2017 = vmatpush.xpose.msra.mxu0 %v2000
    %2018 = vmatmul.f32.gmra.mxu0 %v1997
    %v2019 = vpop.f32.mrf.mxu0
    %v2020 = vadd.f32 0.0, %v2019
    %2021 = vdwg.mxu0
    %v2023 = vsel %vm285, %v1946, 0
    %v2026 = vsel %vm285, %v1994, 0
    %2028 = vmatpush.xpose.msra.mxu0 0.0
    %2029 = vmatpush.xpose.msra.mxu0 0.0
    %2030 = vmatpush.xpose.msra.mxu0 0.0
    %2031 = vmatpush.xpose.msra.mxu0 0.0
    %2032 = vmatpush.xpose.msra.mxu0 0.0
    %2033 = vmatpush.xpose.msra.mxu0 0.0
    %2034 = vmatpush.xpose.msra.mxu0 0.0
    %2035 = vmatpush.xpose.msra.mxu0 0.0
    %2036 = vmatpush.xpose.msra.mxu0 0.0
    %2037 = vmatpush.xpose.msra.mxu0 0.0
    %2038 = vmatpush.xpose.msra.mxu0 0.0
    %2039 = vmatpush.xpose.msra.mxu0 0.0
    %2040 = vmatpush.xpose.msra.mxu0 0.0
    %2041 = vmatpush.xpose.msra.mxu0 0.0
    %2042 = vmatpush.xpose.msra.mxu0 0.0
    %2043 = vmatpush.xpose.msra.mxu0 %v2026
    %2044 = vmatmul.f32.gmra.mxu0 %v2023
    %v2045 = vpop.f32.mrf.mxu0
    %v2046 = vadd.f32 0.0, %v2045
    %2047 = vdwg.mxu0
    %v2048 = vmul.f32 %v2020, 0.35355338
    %v2049 = vmul.f32 %v2046, 0.35355338
    %v2050 = vadd.f32 %v2048, %v341
    %v2051 = vadd.f32 %v2049, %v342
    %v2052 = vsel %vm285, %v2050, -inf
    %2053 = vmax.xlane.f32.xlu0 %v2052
    %v2054 = vpop.xlane.xlu0 %2053
    %v2055 = vsel %vm285, %v2051, -inf
    %2056 = vmax.xlane.f32.xlu0 %v2055
    %v2057 = vpop.xlane.xlu0 %2056
    %v2058 = vsub.f32 %v2050, %v2054
    %v2059 = vsub.f32 %v2051, %v2057
    %v2060 = vmul.f32 %v2058, 1.442695
    %v2061 = vpow.pop %v2060
    %v2062 = vmul.f32 %v2059, 1.442695
    %v2063 = vpow.pop %v2062
    %v2064 = vsel %vm285, %v2061, 0.0
    %2065 = vadd.xlane.f32.xlu0 %v2064
    %v2066 = vpop.xlane.xlu0 %2065
    %v2067 = vsel %vm285, %v2063, 0.0
    %2068 = vadd.xlane.f32.xlu0 %v2067
    %v2069 = vpop.xlane.xlu0 %2068
    %v2070 = vrcp.pop %v2066
    %v2071 = vrcp.pop %v2069
    %v2072 = vmul.f32 %v2061, %v2070
    %v2073 = vmul.f32 %v2063, %v2071
    %2074 = vrot.lane.b32.xlu0 %v1991, 96
    %v2075 = vpop.permute.xlu0 %2074
    %v2078 = vsel %vm285, %v2072, 0
    %2080 = vmatpush.msra.mxu0 0.0
    %2081 = vmatpush.msra.mxu0 0.0
    %2082 = vmatpush.msra.mxu0 0.0
    %2083 = vmatpush.msra.mxu0 0.0
    %2084 = vmatpush.msra.mxu0 0.0
    %2085 = vmatpush.msra.mxu0 0.0
    %2086 = vmatpush.msra.mxu0 0.0
    %2087 = vmatpush.msra.mxu0 0.0
    %2088 = vmatpush.msra.mxu0 0.0
    %2089 = vmatpush.msra.mxu0 0.0
    %2090 = vmatpush.msra.mxu0 0.0
    %2091 = vmatpush.msra.mxu0 0.0
    %2092 = vmatpush.msra.mxu0 0.0
    %2093 = vmatpush.msra.mxu0 0.0
    %2094 = vmatpush.msra.mxu0 0.0
    %2095 = vmatpush.msra.mxu0 %v2075
    %2096 = vmatmul.f32.gmra.mxu0 %v2078
    %v2097 = vpop.f32.mrf.mxu0
    %v2098 = vadd.f32 0.0, %v2097
    %2099 = vdwg.mxu0
    %2100 = vrot.lane.b32.xlu0 %v1994, 96
    %v2101 = vpop.permute.xlu0 %2100
    %v2104 = vsel %vm285, %v2073, 0
    %2106 = vmatpush.msra.mxu0 0.0
    %2107 = vmatpush.msra.mxu0 0.0
    %2108 = vmatpush.msra.mxu0 0.0
    %2109 = vmatpush.msra.mxu0 0.0
    %2110 = vmatpush.msra.mxu0 0.0
    %2111 = vmatpush.msra.mxu0 0.0
    %2112 = vmatpush.msra.mxu0 0.0
    %2113 = vmatpush.msra.mxu0 0.0
    %2114 = vmatpush.msra.mxu0 0.0
    %2115 = vmatpush.msra.mxu0 0.0
    %2116 = vmatpush.msra.mxu0 0.0
    %2117 = vmatpush.msra.mxu0 0.0
    %2118 = vmatpush.msra.mxu0 0.0
    %2119 = vmatpush.msra.mxu0 0.0
    %2120 = vmatpush.msra.mxu0 0.0
    %2121 = vmatpush.msra.mxu0 %v2101
    %2122 = vmatmul.f32.gmra.mxu0 %v2104
    %v2123 = vpop.f32.mrf.mxu0
    %v2124 = vadd.f32 0.0, %v2123
    %2125 = vdwg.mxu0
    %2126 = vrot.lane.b32.xlu0 %v1943, 120
    %v2127 = vpop.permute.xlu0 %2126
    %2128 = vrot.lane.b32.xlu0 %v1991, 120
    %v2129 = vpop.permute.xlu0 %2128
    %v2130 = vsel %vm285, %v2127, 0
    %v2132 = vsel %vm285, %v2129, 0
    %2134 = vmatpush.xpose.msra.mxu0 0.0
    %2135 = vmatpush.xpose.msra.mxu0 0.0
    %2136 = vmatpush.xpose.msra.mxu0 0.0
    %2137 = vmatpush.xpose.msra.mxu0 0.0
    %2138 = vmatpush.xpose.msra.mxu0 0.0
    %2139 = vmatpush.xpose.msra.mxu0 0.0
    %2140 = vmatpush.xpose.msra.mxu0 0.0
    %2141 = vmatpush.xpose.msra.mxu0 0.0
    %2142 = vmatpush.xpose.msra.mxu0 0.0
    %2143 = vmatpush.xpose.msra.mxu0 0.0
    %2144 = vmatpush.xpose.msra.mxu0 0.0
    %2145 = vmatpush.xpose.msra.mxu0 0.0
    %2146 = vmatpush.xpose.msra.mxu0 0.0
    %2147 = vmatpush.xpose.msra.mxu0 0.0
    %2148 = vmatpush.xpose.msra.mxu0 0.0
    %2149 = vmatpush.xpose.msra.mxu0 %v2132
    %2150 = vmatmul.f32.gmra.mxu0 %v2130
    %v2151 = vpop.f32.mrf.mxu0
    %v2152 = vadd.f32 0.0, %v2151
    %2153 = vdwg.mxu0
    %2154 = vrot.lane.b32.xlu0 %v1946, 120
    %v2155 = vpop.permute.xlu0 %2154
    %2156 = vrot.lane.b32.xlu0 %v1994, 120
    %v2157 = vpop.permute.xlu0 %2156
    %v2158 = vsel %vm285, %v2155, 0
    %v2160 = vsel %vm285, %v2157, 0
    %2162 = vmatpush.xpose.msra.mxu0 0.0
    %2163 = vmatpush.xpose.msra.mxu0 0.0
    %2164 = vmatpush.xpose.msra.mxu0 0.0
    %2165 = vmatpush.xpose.msra.mxu0 0.0
    %2166 = vmatpush.xpose.msra.mxu0 0.0
    %2167 = vmatpush.xpose.msra.mxu0 0.0
    %2168 = vmatpush.xpose.msra.mxu0 0.0
    %2169 = vmatpush.xpose.msra.mxu0 0.0
    %2170 = vmatpush.xpose.msra.mxu0 0.0
    %2171 = vmatpush.xpose.msra.mxu0 0.0
    %2172 = vmatpush.xpose.msra.mxu0 0.0
    %2173 = vmatpush.xpose.msra.mxu0 0.0
    %2174 = vmatpush.xpose.msra.mxu0 0.0
    %2175 = vmatpush.xpose.msra.mxu0 0.0
    %2176 = vmatpush.xpose.msra.mxu0 0.0
    %2177 = vmatpush.xpose.msra.mxu0 %v2160
    %2178 = vmatmul.f32.gmra.mxu0 %v2158
    %v2179 = vpop.f32.mrf.mxu0
    %v2180 = vadd.f32 0.0, %v2179
    %2181 = vdwg.mxu0
    %v2182 = vmul.f32 %v2152, 0.35355338
    %v2183 = vmul.f32 %v2180, 0.35355338
    %v2184 = vadd.f32 %v2182, %v341
    %v2185 = vadd.f32 %v2183, %v342
    %v2186 = vsel %vm285, %v2184, -inf
    %2187 = vmax.xlane.f32.xlu0 %v2186
    %v2188 = vpop.xlane.xlu0 %2187
    %v2189 = vsel %vm285, %v2185, -inf
    %2190 = vmax.xlane.f32.xlu0 %v2189
    %v2191 = vpop.xlane.xlu0 %2190
    %v2192 = vsub.f32 %v2184, %v2188
    %v2193 = vsub.f32 %v2185, %v2191
    %v2194 = vmul.f32 %v2192, 1.442695
    %v2195 = vpow.pop %v2194
    %v2196 = vmul.f32 %v2193, 1.442695
    %v2197 = vpow.pop %v2196
    %v2198 = vsel %vm285, %v2195, 0.0
    %2199 = vadd.xlane.f32.xlu0 %v2198
    %v2200 = vpop.xlane.xlu0 %2199
    %v2201 = vsel %vm285, %v2197, 0.0
    %2202 = vadd.xlane.f32.xlu0 %v2201
    %v2203 = vpop.xlane.xlu0 %2202
    %v2204 = vrcp.pop %v2200
    %v2205 = vrcp.pop %v2203
    %v2206 = vmul.f32 %v2195, %v2204
    %v2207 = vmul.f32 %v2197, %v2205
    %2208 = vrot.lane.b32.xlu0 %v1991, 88
    %v2209 = vpop.permute.xlu0 %2208
    %v2212 = vsel %vm285, %v2206, 0
    %2214 = vmatpush.msra.mxu0 0.0
    %2215 = vmatpush.msra.mxu0 0.0
    %2216 = vmatpush.msra.mxu0 0.0
    %2217 = vmatpush.msra.mxu0 0.0
    %2218 = vmatpush.msra.mxu0 0.0
    %2219 = vmatpush.msra.mxu0 0.0
    %2220 = vmatpush.msra.mxu0 0.0
    %2221 = vmatpush.msra.mxu0 0.0
    %2222 = vmatpush.msra.mxu0 0.0
    %2223 = vmatpush.msra.mxu0 0.0
    %2224 = vmatpush.msra.mxu0 0.0
    %2225 = vmatpush.msra.mxu0 0.0
    %2226 = vmatpush.msra.mxu0 0.0
    %2227 = vmatpush.msra.mxu0 0.0
    %2228 = vmatpush.msra.mxu0 0.0
    %2229 = vmatpush.msra.mxu0 %v2209
    %2230 = vmatmul.f32.gmra.mxu0 %v2212
    %v2231 = vpop.f32.mrf.mxu0
    %v2232 = vadd.f32 0.0, %v2231
    %2233 = vdwg.mxu0
    %2234 = vrot.lane.b32.xlu0 %v1994, 88
    %v2235 = vpop.permute.xlu0 %2234
    %v2238 = vsel %vm285, %v2207, 0
    %2240 = vmatpush.msra.mxu0 0.0
    %2241 = vmatpush.msra.mxu0 0.0
    %2242 = vmatpush.msra.mxu0 0.0
    %2243 = vmatpush.msra.mxu0 0.0
    %2244 = vmatpush.msra.mxu0 0.0
    %2245 = vmatpush.msra.mxu0 0.0
    %2246 = vmatpush.msra.mxu0 0.0
    %2247 = vmatpush.msra.mxu0 0.0
    %2248 = vmatpush.msra.mxu0 0.0
    %2249 = vmatpush.msra.mxu0 0.0
    %2250 = vmatpush.msra.mxu0 0.0
    %2251 = vmatpush.msra.mxu0 0.0
    %2252 = vmatpush.msra.mxu0 0.0
    %2253 = vmatpush.msra.mxu0 0.0
    %2254 = vmatpush.msra.mxu0 0.0
    %2255 = vmatpush.msra.mxu0 %v2235
    %2256 = vmatmul.f32.gmra.mxu0 %v2238
    %v2257 = vpop.f32.mrf.mxu0
    %v2258 = vadd.f32 0.0, %v2257
    %2259 = vdwg.mxu0
    %v2261 = vsel %vm285, %v2232, 0
    %v2264 = vsel %vm285, %v2258, 0
    %2266 = vmatpush.msra.mxu0 0.0
    %2267 = vmatpush.msra.mxu0 0.0
    %2268 = vmatpush.msra.mxu0 0.0
    %2269 = vmatpush.msra.mxu0 0.0
    %2270 = vmatpush.msra.mxu0 0.0
    %2271 = vmatpush.msra.mxu0 0.0
    %2272 = vmatpush.msra.mxu0 0.0
    %2273 = vmatpush.msra.mxu0 0.0
    %2274 = vmatpush.msra.mxu0 0.0
    %2275 = vmatpush.msra.mxu0 0.0
    %2276 = vmatpush.msra.mxu0 0.0
    %2277 = vmatpush.msra.mxu0 0.0
    %2278 = vmatpush.msra.mxu0 0.0
    %2279 = vmatpush.msra.mxu0 0.0
    %2280 = vmatpush.msra.mxu0 0.0
    %2281 = vmatpush.msra.mxu0 %v1912
    %2282 = vmatmul.f32.gmra.mxu0 %v2261
    %v2283 = vpop.f32.mrf.mxu0
    %v2284 = vadd.f32 0.0, %v2283
    %2285 = vmatmul.f32.gmra.mxu0 %v2264
    %v2286 = vpop.f32.mrf.mxu0
    %v2287 = vadd.f32 0.0, %v2286
    %2288 = vdwg.mxu0
    %v2290 = vsel %vm285, %v2098, 0
    %v2293 = vsel %vm285, %v2124, 0
    %2295 = vmatpush.msra.mxu0 0.0
    %2296 = vmatpush.msra.mxu0 0.0
    %2297 = vmatpush.msra.mxu0 0.0
    %2298 = vmatpush.msra.mxu0 0.0
    %2299 = vmatpush.msra.mxu0 0.0
    %2300 = vmatpush.msra.mxu0 0.0
    %2301 = vmatpush.msra.mxu0 0.0
    %2302 = vmatpush.msra.mxu0 0.0
    %2303 = vmatpush.msra.mxu0 0.0
    %2304 = vmatpush.msra.mxu0 0.0
    %2305 = vmatpush.msra.mxu0 0.0
    %2306 = vmatpush.msra.mxu0 0.0
    %2307 = vmatpush.msra.mxu0 0.0
    %2308 = vmatpush.msra.mxu0 0.0
    %2309 = vmatpush.msra.mxu0 0.0
    %2310 = vmatpush.msra.mxu0 %v1911
    %2311 = vmatmul.f32.gmra.mxu0 %v2290
    %v2312 = vpop.f32.mrf.mxu0
    %v2313 = vadd.f32 %v2284, %v2312
    %2314 = vmatmul.f32.gmra.mxu0 %v2293
    %v2315 = vpop.f32.mrf.mxu0
    %v2316 = vadd.f32 %v2287, %v2315
    %2317 = vdwg.mxu0
    %2318 = vrot.lane.b32.xlu0 %v1943, 112
    %v2319 = vpop.permute.xlu0 %2318
    %2320 = vrot.lane.b32.xlu0 %v1991, 112
    %v2321 = vpop.permute.xlu0 %2320
    %v2322 = vsel %vm285, %v2319, 0
    %v2324 = vsel %vm285, %v2321, 0
    %2326 = vmatpush.xpose.msra.mxu0 0.0
    %2327 = vmatpush.xpose.msra.mxu0 0.0
    %2328 = vmatpush.xpose.msra.mxu0 0.0
    %2329 = vmatpush.xpose.msra.mxu0 0.0
    %2330 = vmatpush.xpose.msra.mxu0 0.0
    %2331 = vmatpush.xpose.msra.mxu0 0.0
    %2332 = vmatpush.xpose.msra.mxu0 0.0
    %2333 = vmatpush.xpose.msra.mxu0 0.0
    %2334 = vmatpush.xpose.msra.mxu0 0.0
    %2335 = vmatpush.xpose.msra.mxu0 0.0
    %2336 = vmatpush.xpose.msra.mxu0 0.0
    %2337 = vmatpush.xpose.msra.mxu0 0.0
    %2338 = vmatpush.xpose.msra.mxu0 0.0
    %2339 = vmatpush.xpose.msra.mxu0 0.0
    %2340 = vmatpush.xpose.msra.mxu0 0.0
    %2341 = vmatpush.xpose.msra.mxu0 %v2324
    %2342 = vmatmul.f32.gmra.mxu0 %v2322
    %v2343 = vpop.f32.mrf.mxu0
    %v2344 = vadd.f32 0.0, %v2343
    %2345 = vdwg.mxu0
    %2346 = vrot.lane.b32.xlu0 %v1946, 112
    %v2347 = vpop.permute.xlu0 %2346
    %2348 = vrot.lane.b32.xlu0 %v1994, 112
    %v2349 = vpop.permute.xlu0 %2348
    %v2350 = vsel %vm285, %v2347, 0
    %v2352 = vsel %vm285, %v2349, 0
    %2354 = vmatpush.xpose.msra.mxu0 0.0
    %2355 = vmatpush.xpose.msra.mxu0 0.0
    %2356 = vmatpush.xpose.msra.mxu0 0.0
    %2357 = vmatpush.xpose.msra.mxu0 0.0
    %2358 = vmatpush.xpose.msra.mxu0 0.0
    %2359 = vmatpush.xpose.msra.mxu0 0.0
    %2360 = vmatpush.xpose.msra.mxu0 0.0
    %2361 = vmatpush.xpose.msra.mxu0 0.0
    %2362 = vmatpush.xpose.msra.mxu0 0.0
    %2363 = vmatpush.xpose.msra.mxu0 0.0
    %2364 = vmatpush.xpose.msra.mxu0 0.0
    %2365 = vmatpush.xpose.msra.mxu0 0.0
    %2366 = vmatpush.xpose.msra.mxu0 0.0
    %2367 = vmatpush.xpose.msra.mxu0 0.0
    %2368 = vmatpush.xpose.msra.mxu0 0.0
    %2369 = vmatpush.xpose.msra.mxu0 %v2352
    %2370 = vmatmul.f32.gmra.mxu0 %v2350
    %v2371 = vpop.f32.mrf.mxu0
    %v2372 = vadd.f32 0.0, %v2371
    %2373 = vdwg.mxu0
    %v2374 = vmul.f32 %v2344, 0.35355338
    %v2375 = vmul.f32 %v2372, 0.35355338
    %v2376 = vadd.f32 %v2374, %v341
    %v2377 = vadd.f32 %v2375, %v342
    %v2378 = vsel %vm285, %v2376, -inf
    %2379 = vmax.xlane.f32.xlu0 %v2378
    %v2380 = vpop.xlane.xlu0 %2379
    %v2381 = vsel %vm285, %v2377, -inf
    %2382 = vmax.xlane.f32.xlu0 %v2381
    %v2383 = vpop.xlane.xlu0 %2382
    %v2384 = vsub.f32 %v2376, %v2380
    %v2385 = vsub.f32 %v2377, %v2383
    %v2386 = vmul.f32 %v2384, 1.442695
    %v2387 = vpow.pop %v2386
    %v2388 = vmul.f32 %v2385, 1.442695
    %v2389 = vpow.pop %v2388
    %v2390 = vsel %vm285, %v2387, 0.0
    %2391 = vadd.xlane.f32.xlu0 %v2390
    %v2392 = vpop.xlane.xlu0 %2391
    %v2393 = vsel %vm285, %v2389, 0.0
    %2394 = vadd.xlane.f32.xlu0 %v2393
    %v2395 = vpop.xlane.xlu0 %2394
    %v2396 = vrcp.pop %v2392
    %v2397 = vrcp.pop %v2395
    %v2398 = vmul.f32 %v2387, %v2396
    %v2399 = vmul.f32 %v2389, %v2397
    %2400 = vrot.lane.b32.xlu0 %v1991, 80
    %v2401 = vpop.permute.xlu0 %2400
    %v2404 = vsel %vm285, %v2398, 0
    %2406 = vmatpush.msra.mxu0 0.0
    %2407 = vmatpush.msra.mxu0 0.0
    %2408 = vmatpush.msra.mxu0 0.0
    %2409 = vmatpush.msra.mxu0 0.0
    %2410 = vmatpush.msra.mxu0 0.0
    %2411 = vmatpush.msra.mxu0 0.0
    %2412 = vmatpush.msra.mxu0 0.0
    %2413 = vmatpush.msra.mxu0 0.0
    %2414 = vmatpush.msra.mxu0 0.0
    %2415 = vmatpush.msra.mxu0 0.0
    %2416 = vmatpush.msra.mxu0 0.0
    %2417 = vmatpush.msra.mxu0 0.0
    %2418 = vmatpush.msra.mxu0 0.0
    %2419 = vmatpush.msra.mxu0 0.0
    %2420 = vmatpush.msra.mxu0 0.0
    %2421 = vmatpush.msra.mxu0 %v2401
    %2422 = vmatmul.f32.gmra.mxu0 %v2404
    %v2423 = vpop.f32.mrf.mxu0
    %v2424 = vadd.f32 0.0, %v2423
    %2425 = vdwg.mxu0
    %2426 = vrot.lane.b32.xlu0 %v1994, 80
    %v2427 = vpop.permute.xlu0 %2426
    %v2430 = vsel %vm285, %v2399, 0
    %2432 = vmatpush.msra.mxu0 0.0
    %2433 = vmatpush.msra.mxu0 0.0
    %2434 = vmatpush.msra.mxu0 0.0
    %2435 = vmatpush.msra.mxu0 0.0
    %2436 = vmatpush.msra.mxu0 0.0
    %2437 = vmatpush.msra.mxu0 0.0
    %2438 = vmatpush.msra.mxu0 0.0
    %2439 = vmatpush.msra.mxu0 0.0
    %2440 = vmatpush.msra.mxu0 0.0
    %2441 = vmatpush.msra.mxu0 0.0
    %2442 = vmatpush.msra.mxu0 0.0
    %2443 = vmatpush.msra.mxu0 0.0
    %2444 = vmatpush.msra.mxu0 0.0
    %2445 = vmatpush.msra.mxu0 0.0
    %2446 = vmatpush.msra.mxu0 0.0
    %2447 = vmatpush.msra.mxu0 %v2427
    %2448 = vmatmul.f32.gmra.mxu0 %v2430
    %v2449 = vpop.f32.mrf.mxu0
    %v2450 = vadd.f32 0.0, %v2449
    %2451 = vdwg.mxu0
    %v2453 = vsel %vm285, %v2424, 0
    %v2456 = vsel %vm285, %v2450, 0
    %2458 = vmatpush.msra.mxu0 0.0
    %2459 = vmatpush.msra.mxu0 0.0
    %2460 = vmatpush.msra.mxu0 0.0
    %2461 = vmatpush.msra.mxu0 0.0
    %2462 = vmatpush.msra.mxu0 0.0
    %2463 = vmatpush.msra.mxu0 0.0
    %2464 = vmatpush.msra.mxu0 0.0
    %2465 = vmatpush.msra.mxu0 0.0
    %2466 = vmatpush.msra.mxu0 0.0
    %2467 = vmatpush.msra.mxu0 0.0
    %2468 = vmatpush.msra.mxu0 0.0
    %2469 = vmatpush.msra.mxu0 0.0
    %2470 = vmatpush.msra.mxu0 0.0
    %2471 = vmatpush.msra.mxu0 0.0
    %2472 = vmatpush.msra.mxu0 0.0
    %2473 = vmatpush.msra.mxu0 %v1913
    %2474 = vmatmul.f32.gmra.mxu0 %v2453
    %v2475 = vpop.f32.mrf.mxu0
    %v2476 = vadd.f32 0.0, %v2475
    %2477 = vmatmul.f32.gmra.mxu0 %v2456
    %v2478 = vpop.f32.mrf.mxu0
    %v2479 = vadd.f32 0.0, %v2478
    %2480 = vdwg.mxu0
    %v2481 = vadd.f32 %v2313, %v2476
    %v2482 = vadd.f32 %v2316, %v2479
    %2483 = vrot.lane.b32.xlu0 %v1943, 104
    %v2484 = vpop.permute.xlu0 %2483
    %2485 = vrot.lane.b32.xlu0 %v1991, 104
    %v2486 = vpop.permute.xlu0 %2485
    %v2487 = vsel %vm285, %v2484, 0
    %v2489 = vsel %vm285, %v2486, 0
    %2491 = vmatpush.xpose.msra.mxu0 0.0
    %2492 = vmatpush.xpose.msra.mxu0 0.0
    %2493 = vmatpush.xpose.msra.mxu0 0.0
    %2494 = vmatpush.xpose.msra.mxu0 0.0
    %2495 = vmatpush.xpose.msra.mxu0 0.0
    %2496 = vmatpush.xpose.msra.mxu0 0.0
    %2497 = vmatpush.xpose.msra.mxu0 0.0
    %2498 = vmatpush.xpose.msra.mxu0 0.0
    %2499 = vmatpush.xpose.msra.mxu0 0.0
    %2500 = vmatpush.xpose.msra.mxu0 0.0
    %2501 = vmatpush.xpose.msra.mxu0 0.0
    %2502 = vmatpush.xpose.msra.mxu0 0.0
    %2503 = vmatpush.xpose.msra.mxu0 0.0
    %2504 = vmatpush.xpose.msra.mxu0 0.0
    %2505 = vmatpush.xpose.msra.mxu0 0.0
    %2506 = vmatpush.xpose.msra.mxu0 %v2489
    %2507 = vmatmul.f32.gmra.mxu0 %v2487
    %v2508 = vpop.f32.mrf.mxu0
    %v2509 = vadd.f32 0.0, %v2508
    %2510 = vdwg.mxu0
    %2511 = vrot.lane.b32.xlu0 %v1946, 104
    %v2512 = vpop.permute.xlu0 %2511
    %2513 = vrot.lane.b32.xlu0 %v1994, 104
    %v2514 = vpop.permute.xlu0 %2513
    %v2515 = vsel %vm285, %v2512, 0
    %v2517 = vsel %vm285, %v2514, 0
    %2519 = vmatpush.xpose.msra.mxu0 0.0
    %2520 = vmatpush.xpose.msra.mxu0 0.0
    %2521 = vmatpush.xpose.msra.mxu0 0.0
    %2522 = vmatpush.xpose.msra.mxu0 0.0
    %2523 = vmatpush.xpose.msra.mxu0 0.0
    %2524 = vmatpush.xpose.msra.mxu0 0.0
    %2525 = vmatpush.xpose.msra.mxu0 0.0
    %2526 = vmatpush.xpose.msra.mxu0 0.0
    %2527 = vmatpush.xpose.msra.mxu0 0.0
    %2528 = vmatpush.xpose.msra.mxu0 0.0
    %2529 = vmatpush.xpose.msra.mxu0 0.0
    %2530 = vmatpush.xpose.msra.mxu0 0.0
    %2531 = vmatpush.xpose.msra.mxu0 0.0
    %2532 = vmatpush.xpose.msra.mxu0 0.0
    %2533 = vmatpush.xpose.msra.mxu0 0.0
    %2534 = vmatpush.xpose.msra.mxu0 %v2517
    %2535 = vmatmul.f32.gmra.mxu0 %v2515
    %v2536 = vpop.f32.mrf.mxu0
    %v2537 = vadd.f32 0.0, %v2536
    %2538 = vdwg.mxu0
    %v2539 = vmul.f32 %v2509, 0.35355338
    %v2540 = vmul.f32 %v2537, 0.35355338
    %v2541 = vadd.f32 %v2539, %v341
    %v2542 = vadd.f32 %v2540, %v342
    %v2543 = vsel %vm285, %v2541, -inf
    %2544 = vmax.xlane.f32.xlu0 %v2543
    %v2545 = vpop.xlane.xlu0 %2544
    %v2546 = vsel %vm285, %v2542, -inf
    %2547 = vmax.xlane.f32.xlu0 %v2546
    %v2548 = vpop.xlane.xlu0 %2547
    %v2549 = vsub.f32 %v2541, %v2545
    %v2550 = vsub.f32 %v2542, %v2548
    %v2551 = vmul.f32 %v2549, 1.442695
    %v2552 = vpow.pop %v2551
    %v2553 = vmul.f32 %v2550, 1.442695
    %v2554 = vpow.pop %v2553
    %v2555 = vsel %vm285, %v2552, 0.0
    %2556 = vadd.xlane.f32.xlu0 %v2555
    %v2557 = vpop.xlane.xlu0 %2556
    %v2558 = vsel %vm285, %v2554, 0.0
    %2559 = vadd.xlane.f32.xlu0 %v2558
    %v2560 = vpop.xlane.xlu0 %2559
    %v2561 = vrcp.pop %v2557
    %v2562 = vrcp.pop %v2560
    %v2563 = vmul.f32 %v2552, %v2561
    %v2564 = vmul.f32 %v2554, %v2562
    %2565 = vrot.lane.b32.xlu0 %v1991, 72
    %v2566 = vpop.permute.xlu0 %2565
    %v2569 = vsel %vm285, %v2563, 0
    %2571 = vmatpush.msra.mxu0 0.0
    %2572 = vmatpush.msra.mxu0 0.0
    %2573 = vmatpush.msra.mxu0 0.0
    %2574 = vmatpush.msra.mxu0 0.0
    %2575 = vmatpush.msra.mxu0 0.0
    %2576 = vmatpush.msra.mxu0 0.0
    %2577 = vmatpush.msra.mxu0 0.0
    %2578 = vmatpush.msra.mxu0 0.0
    %2579 = vmatpush.msra.mxu0 0.0
    %2580 = vmatpush.msra.mxu0 0.0
    %2581 = vmatpush.msra.mxu0 0.0
    %2582 = vmatpush.msra.mxu0 0.0
    %2583 = vmatpush.msra.mxu0 0.0
    %2584 = vmatpush.msra.mxu0 0.0
    %2585 = vmatpush.msra.mxu0 0.0
    %2586 = vmatpush.msra.mxu0 %v2566
    %2587 = vmatmul.f32.gmra.mxu0 %v2569
    %v2588 = vpop.f32.mrf.mxu0
    %v2589 = vadd.f32 0.0, %v2588
    %2590 = vdwg.mxu0
    %2591 = vrot.lane.b32.xlu0 %v1994, 72
    %v2592 = vpop.permute.xlu0 %2591
    %v2595 = vsel %vm285, %v2564, 0
    %2597 = vmatpush.msra.mxu0 0.0
    %2598 = vmatpush.msra.mxu0 0.0
    %2599 = vmatpush.msra.mxu0 0.0
    %2600 = vmatpush.msra.mxu0 0.0
    %2601 = vmatpush.msra.mxu0 0.0
    %2602 = vmatpush.msra.mxu0 0.0
    %2603 = vmatpush.msra.mxu0 0.0
    %2604 = vmatpush.msra.mxu0 0.0
    %2605 = vmatpush.msra.mxu0 0.0
    %2606 = vmatpush.msra.mxu0 0.0
    %2607 = vmatpush.msra.mxu0 0.0
    %2608 = vmatpush.msra.mxu0 0.0
    %2609 = vmatpush.msra.mxu0 0.0
    %2610 = vmatpush.msra.mxu0 0.0
    %2611 = vmatpush.msra.mxu0 0.0
    %2612 = vmatpush.msra.mxu0 %v2592
    %2613 = vmatmul.f32.gmra.mxu0 %v2595
    %v2614 = vpop.f32.mrf.mxu0
    %v2615 = vadd.f32 0.0, %v2614
    %2616 = vdwg.mxu0
    %v2618 = vsel %vm285, %v2589, 0
    %v2621 = vsel %vm285, %v2615, 0
    %2623 = vmatpush.msra.mxu0 0.0
    %2624 = vmatpush.msra.mxu0 0.0
    %2625 = vmatpush.msra.mxu0 0.0
    %2626 = vmatpush.msra.mxu0 0.0
    %2627 = vmatpush.msra.mxu0 0.0
    %2628 = vmatpush.msra.mxu0 0.0
    %2629 = vmatpush.msra.mxu0 0.0
    %2630 = vmatpush.msra.mxu0 0.0
    %2631 = vmatpush.msra.mxu0 0.0
    %2632 = vmatpush.msra.mxu0 0.0
    %2633 = vmatpush.msra.mxu0 0.0
    %2634 = vmatpush.msra.mxu0 0.0
    %2635 = vmatpush.msra.mxu0 0.0
    %2636 = vmatpush.msra.mxu0 0.0
    %2637 = vmatpush.msra.mxu0 0.0
    %2638 = vmatpush.msra.mxu0 %v1914
    %2639 = vmatmul.f32.gmra.mxu0 %v2618
    %v2640 = vpop.f32.mrf.mxu0
    %v2641 = vadd.f32 0.0, %v2640
    %2642 = vmatmul.f32.gmra.mxu0 %v2621
    %v2643 = vpop.f32.mrf.mxu0
    %v2644 = vadd.f32 0.0, %v2643
    %2645 = vdwg.mxu0
    %v2646 = vadd.f32 %v2481, %v2641
    %v2647 = vadd.f32 %v2482, %v2644
    %v2649 = vperm.slane %v1915, 0
    %v2651 = vadd.f32 %v2646, %v2649
    %v2652 = vadd.f32 %v2647, %v2649
    %v2653 = vadd.f32 %v2651, %v1904
    %v2654 = vadd.f32 %v2652, %v1905
    %v2655 = vld [vmem:[%s55] sm:$0x1]
    %v2656 = vld [vmem:[%s57] sm:$0x1]
    %v2657 = vsel %vm252, %v2653, 0.0
    %2658 = vadd.xlane.f32.xlu0 %v2657
    %v2659 = vpop.xlane.xlu0 %2658
    %v2660 = vsel %vm252, %v2654, 0.0
    %2661 = vadd.xlane.f32.xlu0 %v2660
    %v2662 = vpop.xlane.xlu0 %2661
    %v2663 = vmul.f32 %v2659, %v964
    %v2664 = vmul.f32 %v2662, %v964
    %v2665 = vsub.f32 %v2653, %v2663
    %v2666 = vsub.f32 %v2654, %v2664
    %v2667 = vmul.f32 %v2665, %v2665
    %v2668 = vmul.f32 %v2666, %v2666
    %v2669 = vsel %vm252, %v2667, 0.0
    %2670 = vadd.xlane.f32.xlu0 %v2669
    %v2671 = vpop.xlane.xlu0 %2670
    %v2672 = vsel %vm252, %v2668, 0.0
    %2673 = vadd.xlane.f32.xlu0 %v2672
    %v2674 = vpop.xlane.xlu0 %2673
    %v2675 = vmul.f32 %v2671, %v964
    %v2676 = vmul.f32 %v2674, %v964
    %v2677 = vadd.f32 %v2675, 1e-05
    %v2678 = vadd.f32 %v2676, 1e-05
    %v2679 = vrsqrt.pop %v2677
    %v2680 = vmul.f32 %v2679, %v2677
    %v2681 = vmul.f32 %v2680, %v2679
    %v2682 = vmul.f32 0.5, %v2681
    %v2683 = vsub.f32 1.5, %v2682
    %v2684 = vmul.f32 %v2679, %v2683
    %vm2685 = vweird.f32 %v2677
    %vm2686 = vweird.f32 %v2679
    %vm2687 = vmor %vm2685, %vm2686
    %v2688 = vsel %vm2687, %v2679, %v2684
    %v2689 = vrsqrt.pop %v2678
    %v2690 = vmul.f32 %v2689, %v2678
    %v2691 = vmul.f32 %v2690, %v2689
    %v2692 = vmul.f32 0.5, %v2691
    %v2693 = vsub.f32 1.5, %v2692
    %v2694 = vmul.f32 %v2689, %v2693
    %vm2695 = vweird.f32 %v2678
    %vm2696 = vweird.f32 %v2689
    %vm2697 = vmor %vm2695, %vm2696
    %v2698 = vsel %vm2697, %v2689, %v2694
    %v2699 = vmul.f32 %v2665, %v2688
    %v2700 = vmul.f32 %v2666, %v2698
    %v2702 = vperm.slane %v2655, 0
    %v2704 = vmul.f32 %v2699, %v2702
    %v2705 = vmul.f32 %v2700, %v2702
    %v2707 = vperm.slane %v2656, 0
    %v2709 = vadd.f32 %v2704, %v2707
    %v2710 = vadd.f32 %v2705, %v2707
    %v2711 = vld [vmem:[%s59] sm:$0xff]
    %v2712 = vld [vmem:[%s59 + $0x8] sm:$0xff]
    %v2713 = vld [vmem:[%s59 + $0x10] sm:$0xff]
    %v2714 = vld [vmem:[%s59 + $0x18] sm:$0xff]
    %v2715 = vld [vmem:[%s61] sm:$0x1]
    %v2716 = vld [vmem:[%s63] sm:$0xff]
    %v2717 = vld [vmem:[%s63 + $0x8] sm:$0xff]
    %v2718 = vld [vmem:[%s63 + $0x10] sm:$0xff]
    %v2719 = vld [vmem:[%s63 + $0x18] sm:$0xff]
    %v2720 = vld [vmem:[%s63 + $0x20] sm:$0xff]
    %v2721 = vld [vmem:[%s63 + $0x28] sm:$0xff]
    %v2722 = vld [vmem:[%s63 + $0x30] sm:$0xff]
    %v2723 = vld [vmem:[%s63 + $0x38] sm:$0xff]
    %v2724 = vld [vmem:[%s63 + $0x40] sm:$0xff]
    %v2725 = vld [vmem:[%s63 + $0x48] sm:$0xff]
    %v2726 = vld [vmem:[%s63 + $0x50] sm:$0xff]
    %v2727 = vld [vmem:[%s63 + $0x58] sm:$0xff]
    %v2728 = vld [vmem:[%s63 + $0x60] sm:$0xff]
    %v2729 = vld [vmem:[%s63 + $0x68] sm:$0xff]
    %v2730 = vld [vmem:[%s63 + $0x70] sm:$0xff]
    %v2731 = vld [vmem:[%s63 + $0x78] sm:$0xff]
    %v2732 = vld [vmem:[%s65] sm:$0x1]
    %v2734 = vperm.slane %v2715, 0
    %v2737 = vsel %vm252, %v2709, 0
    %v2740 = vsel %vm252, %v2710, 0
    %2742 = vmatpush.msra.mxu0 0.0
    %2743 = vmatpush.msra.mxu0 0.0
    %2744 = vmatpush.msra.mxu0 0.0
    %2745 = vmatpush.msra.mxu0 0.0
    %2746 = vmatpush.msra.mxu0 0.0
    %2747 = vmatpush.msra.mxu0 0.0
    %2748 = vmatpush.msra.mxu0 0.0
    %2749 = vmatpush.msra.mxu0 0.0
    %2750 = vmatpush.msra.mxu0 0.0
    %2751 = vmatpush.msra.mxu0 0.0
    %2752 = vmatpush.msra.mxu0 0.0
    %2753 = vmatpush.msra.mxu0 0.0
    %2754 = vmatpush.msra.mxu0 %v2714
    %2755 = vmatpush.msra.mxu0 %v2713
    %2756 = vmatpush.msra.mxu0 %v2712
    %2757 = vmatpush.msra.mxu0 %v2711
    %2758 = vmatmul.f32.gmra.mxu0 %v2737
    %v2759 = vpop.f32.mrf.mxu0
    %v2760 = vadd.f32 %v2734, %v2759
    %2761 = vmatmul.f32.gmra.mxu0 %v2740
    %v2762 = vpop.f32.mrf.mxu0
    %v2763 = vadd.f32 %v2734, %v2762
    %2764 = vdwg.mxu0
    %v2765 = vmax.f32 %v2760, 0.0
    %v2766 = vmax.f32 %v2763, 0.0
    %v2768 = vperm.slane %v2732, 0
    %2770 = vmatpush.msra.mxu0 %v2731
    %2771 = vmatpush.msra.mxu0 %v2730
    %2772 = vmatpush.msra.mxu0 %v2729
    %2773 = vmatpush.msra.mxu0 %v2728
    %2774 = vmatpush.msra.mxu0 %v2727
    %2775 = vmatpush.msra.mxu0 %v2726
    %2776 = vmatpush.msra.mxu0 %v2725
    %2777 = vmatpush.msra.mxu0 %v2724
    %2778 = vmatpush.msra.mxu0 %v2723
    %2779 = vmatpush.msra.mxu0 %v2722
    %2780 = vmatpush.msra.mxu0 %v2721
    %2781 = vmatpush.msra.mxu0 %v2720
    %2782 = vmatpush.msra.mxu0 %v2719
    %2783 = vmatpush.msra.mxu0 %v2718
    %2784 = vmatpush.msra.mxu0 %v2717
    %2785 = vmatpush.msra.mxu0 %v2716
    %2786 = vmatmul.f32.gmra.mxu0 %v2765
    %v2787 = vpop.f32.mrf.mxu0
    %v2788 = vadd.f32 %v2768, %v2787
    %2789 = vmatmul.f32.gmra.mxu0 %v2766
    %v2790 = vpop.f32.mrf.mxu0
    %v2791 = vadd.f32 %v2768, %v2790
    %2792 = vdwg.mxu0
    %v2793 = vadd.f32 %v2788, %v2709
    %v2794 = vadd.f32 %v2791, %v2710
    %v2795 = vld [vmem:[%s67] sm:$0x1]
    %v2796 = vld [vmem:[%s69] sm:$0x1]
    %v2797 = vsel %vm252, %v2793, 0.0
    %2798 = vadd.xlane.f32.xlu0 %v2797
    %v2799 = vpop.xlane.xlu0 %2798
    %v2800 = vsel %vm252, %v2794, 0.0
    %2801 = vadd.xlane.f32.xlu0 %v2800
    %v2802 = vpop.xlane.xlu0 %2801
    %v2803 = vmul.f32 %v2799, %v964
    %v2804 = vmul.f32 %v2802, %v964
    %v2805 = vsub.f32 %v2793, %v2803
    %v2806 = vsub.f32 %v2794, %v2804
    %v2807 = vmul.f32 %v2805, %v2805
    %v2808 = vmul.f32 %v2806, %v2806
    %v2809 = vsel %vm252, %v2807, 0.0
    %2810 = vadd.xlane.f32.xlu0 %v2809
    %v2811 = vpop.xlane.xlu0 %2810
    %v2812 = vsel %vm252, %v2808, 0.0
    %2813 = vadd.xlane.f32.xlu0 %v2812
    %v2814 = vpop.xlane.xlu0 %2813
    %v2815 = vmul.f32 %v2811, %v964
    %v2816 = vmul.f32 %v2814, %v964
    %v2817 = vadd.f32 %v2815, 1e-05
    %v2818 = vadd.f32 %v2816, 1e-05
    %v2819 = vrsqrt.pop %v2817
    %v2820 = vmul.f32 %v2819, %v2817
    %v2821 = vmul.f32 %v2820, %v2819
    %v2822 = vmul.f32 0.5, %v2821
    %v2823 = vsub.f32 1.5, %v2822
    %v2824 = vmul.f32 %v2819, %v2823
    %vm2825 = vweird.f32 %v2817
    %vm2826 = vweird.f32 %v2819
    %vm2827 = vmor %vm2825, %vm2826
    %v2828 = vsel %vm2827, %v2819, %v2824
    %v2829 = vrsqrt.pop %v2818
    %v2830 = vmul.f32 %v2829, %v2818
    %v2831 = vmul.f32 %v2830, %v2829
    %v2832 = vmul.f32 0.5, %v2831
    %v2833 = vsub.f32 1.5, %v2832
    %v2834 = vmul.f32 %v2829, %v2833
    %vm2835 = vweird.f32 %v2818
    %vm2836 = vweird.f32 %v2829
    %vm2837 = vmor %vm2835, %vm2836
    %v2838 = vsel %vm2837, %v2829, %v2834
    %v2839 = vmul.f32 %v2805, %v2828
    %v2840 = vmul.f32 %v2806, %v2838
    %v2842 = vperm.slane %v2795, 0
    %v2844 = vmul.f32 %v2839, %v2842
    %v2845 = vmul.f32 %v2840, %v2842
    %v2847 = vperm.slane %v2796, 0
    %v2849 = vadd.f32 %v2844, %v2847
    %v2850 = vadd.f32 %v2845, %v2847
    %v2851 = vld [vmem:[%s71] sm:$0xff]
    %v2852 = vld [vmem:[%s71 + $0x8] sm:$0xff]
    %v2853 = vld [vmem:[%s71 + $0x10] sm:$0xff]
    %v2854 = vld [vmem:[%s71 + $0x18] sm:$0xff]
    %v2855 = vld [vmem:[%s73] sm:$0x1]
    %v2857 = vperm.slane %v2855, 0
    %v2860 = vsel %vm252, %v2849, 0
    %v2863 = vsel %vm252, %v2850, 0
    %2865 = vmatpush.msra.mxu0 0.0
    %2866 = vmatpush.msra.mxu0 0.0
    %2867 = vmatpush.msra.mxu0 0.0
    %2868 = vmatpush.msra.mxu0 0.0
    %2869 = vmatpush.msra.mxu0 0.0
    %2870 = vmatpush.msra.mxu0 0.0
    %2871 = vmatpush.msra.mxu0 0.0
    %2872 = vmatpush.msra.mxu0 0.0
    %2873 = vmatpush.msra.mxu0 0.0
    %2874 = vmatpush.msra.mxu0 0.0
    %2875 = vmatpush.msra.mxu0 0.0
    %2876 = vmatpush.msra.mxu0 0.0
    %2877 = vmatpush.msra.mxu0 %v2854
    %2878 = vmatpush.msra.mxu0 %v2853
    %2879 = vmatpush.msra.mxu0 %v2852
    %2880 = vmatpush.msra.mxu0 %v2851
    %2881 = vmatmul.f32.gmra.mxu0 %v2860
    %v2882 = vpop.f32.mrf.mxu0
    %v2883 = vadd.f32 %v2857, %v2882
    %2884 = vmatmul.f32.gmra.mxu0 %v2863
    %v2885 = vpop.f32.mrf.mxu0
    %v2886 = vadd.f32 %v2857, %v2885
    %2887 = vdwg.mxu0
    %vm2888 = vcmask 80896
    %2889 = vst.msk [vmem:[#allocation2] sm:$0xff] %vm2888, %v2883
    %2890 = vst.msk [vmem:[#allocation2 + $0x8] sm:$0xff] %vm2888, %v2886
    // Predicated region
    $region150: #{_lambda_.1} parent=1 // pred_check
      _
    $region151: #{_lambda_.1} parent=1 // pred_check_branch
      %2892 = sbr.rel (0) target = $region153
    $region152: #{_lambda_.1} parent=1 // pred_region
      %2894 = vsyncadd [#allocation3], 0
      %s2895 = sshll.u32 [#allocation2], 4
      %s2896 = int_to_ptr.vmem [resolvable:$true] %s2895
      %s2897 = sshll.u32 %s75, 4
      %s2898 = int_to_ptr.hbm [resolvable:$true] %s2897
      %2903 = dma.vmem_to_hbm [thread:$0]  %s2896, 256, %s2898, [#allocation3], 128, 128, 8
    $region153: #{_lambda_.1} parent=1 // pred_fallthru
      _
    // Predicated region
    $region154: #{_lambda_.1} parent=1 // pred_check
      _
    $region155: #{_lambda_.1} parent=1 // pred_check_branch
      %2905 = sbr.rel (0) target = $region157
    $region156: #{_lambda_.1} parent=1 // pred_region
      %2907 = vsyncadd [#allocation5], 0
      %s2908 = sshll.u32 [#allocation4], 4
      %s2909 = int_to_ptr.vmem [resolvable:$true] %s2908
      %s2910 = sshll.u32 %s77, 4
      %s2911 = int_to_ptr.hbm [resolvable:$true] %s2910
      %2916 = dma.vmem_to_hbm [thread:$0]  %s2909, 256, %s2911, [#allocation5], 128, 128, 8
    $region157: #{_lambda_.1} parent=1 // pred_fallthru
      _
    // Predicated region
    $region158: #{_lambda_.1} parent=1 // pred_check
      _
    $region159: #{_lambda_.1} parent=1 // pred_check_branch
      %2918 = sbr.rel (0) target = $region161
    $region160: #{_lambda_.1} parent=1 // pred_region
      %2920 = dma.done [#allocation3], 256
    $region161: #{_lambda_.1} parent=1 // pred_fallthru
      _
    // Predicated region
    $region162: #{_lambda_.1} parent=1 // pred_check
      _
    $region163: #{_lambda_.1} parent=1 // pred_check_branch
      %2922 = sbr.rel (0) target = $region165
    $region164: #{_lambda_.1} parent=1 // pred_region
      %2924 = dma.done [#allocation5], 256
    $region165: #{_lambda_.1} parent=1 // pred_fallthru
      _
    %2925 = vsyncpa [#allocation3], 1
    %2926 = vsyncpa [#allocation5], 1

</llo_original>
